<compile_context>
chip_gen: v6e
topology: v6e:2x2x1
jax: 0.10.0
libtpu: 0.0.40
codegen_flags: <defaults>
</compile_context>

<pallas_src>
import math

import jax
import jax.numpy as jnp
from jax.experimental import pallas as pl
from jax.experimental.pallas import tpu as pltpu

KERNEL_SIZES = (3, 4, 5)
LANE = 128
B_TILE = 8          # batch rows per grid step


def _round_up(x, m):
    return (x + m - 1) // m * m


def cha_cnn_kernel(x3_ref, x4_ref, x5_ref,
                   w3_ref, b3_ref, w4_ref, b4_ref, w5_ref, b5_ref,
                   mask_ref, fcw_ref, fcb_ref, out_ref):
    """One batch tile: 3x (im2col matmul + bias + ReLU + max-pool) -> dropout -> FC."""
    feats = []
    for x_ref, w_ref, b_ref in ((x3_ref, w3_ref, b3_ref),
                                (x4_ref, w4_ref, b4_ref),
                                (x5_ref, w5_ref, b5_ref)):
        bt, t, ke = x_ref.shape
        c = w_ref.shape[-1]
        x = x_ref[...].reshape(bt * t, ke)                     # bf16, K*E contraction
        acc = jnp.dot(x, w_ref[...],
                      preferred_element_type=jnp.float32)      # (bt*t, Cpad) f32
        act = jnp.maximum(acc + b_ref[...], 0.0)               # bias + ReLU (f32)
        feats.append(jnp.max(act.reshape(bt, t, c), axis=1))   # max_pool1d over T
    feat = jnp.concatenate(feats, axis=1)                      # (bt, 3*Cpad) f32
    feat = feat * mask_ref[...]                                # inverted dropout
    logits = jnp.dot(feat.astype(fcw_ref.dtype), fcw_ref[...],
                     preferred_element_type=jnp.float32)
    out_ref[...] = logits + fcb_ref[...]


def init_params(key, vocab_size, embedding_size, num_classes, kernel_num):
    """Deterministic parameter init (shapes match the PyTorch module)."""
    keys = jax.random.split(key, 9)
    embed = jax.random.normal(keys[0], (vocab_size, embedding_size), jnp.float32)
    convs = []
    for i, K in enumerate(KERNEL_SIZES):
        fan_in = 1 * K * embedding_size
        bound = 1.0 / math.sqrt(fan_in)
        w = jax.random.uniform(keys[1 + 2 * i], (kernel_num, K, embedding_size),
                               jnp.float32, -bound, bound)   # Conv2d (C,1,K,E) squeezed
        b = jax.random.uniform(keys[2 + 2 * i], (kernel_num,),
                               jnp.float32, -bound, bound)
        convs.append((w, b))
    feat_dim = len(KERNEL_SIZES) * kernel_num
    bound = 1.0 / math.sqrt(feat_dim)
    fc_w = jax.random.uniform(keys[7], (num_classes, feat_dim),
                              jnp.float32, -bound, bound)
    fc_b = jax.random.uniform(keys[8], (num_classes,),
                              jnp.float32, -bound, bound)
    return dict(embed=embed, convs=convs, fc_w=fc_w, fc_b=fc_b)


def cha_cnn_lstm_forward(params, tokens, *, dropout_rate, train=True,
                         dropout_key=None):
    embed = params["embed"]
    B, L = tokens.shape
    E = embed.shape[1]
    C = params["convs"][0][0].shape[0]
    num_classes = params["fc_b"].shape[0]

    Cpad = _round_up(C, LANE)
    NCpad = _round_up(num_classes, LANE)
    feat_pad = len(KERNEL_SIZES) * Cpad
    Bp = _round_up(B, B_TILE)

    # nn.Embedding lookup + unsqueeze(1) + ReflectionPad2d((0, 0, 1, 1))
    emb = jnp.take(embed, tokens, axis=0)                          # (B, L, E)
    emb = jnp.pad(emb, ((0, 0), (1, 1), (0, 0)), mode="reflect")   # (B, L+2, E)
    emb = jnp.pad(emb, ((0, Bp - B), (0, 0), (0, 0)))              # batch pad
    Lp = L + 2

    # im2col: one lane-dense (Bp, T_K, K*E) slab per kernel size; conv weight
    # flattened to (K*E, Cpad) so each conv is a single deep-contraction matmul.
    xcols, ws, bs, Ts = [], [], [], []
    for (w, b), K in zip(params["convs"], KERNEL_SIZES):
        T = Lp - K + 1
        Ts.append(T)
        xcols.append(jnp.concatenate(
            [emb[:, k:k + T, :] for k in range(K)], axis=-1
        ).astype(jnp.bfloat16))                                    # (Bp, T, K*E)
        w_flat = jnp.transpose(w, (1, 2, 0)).reshape(K * E, C)     # (K*E, C)
        ws.append(jnp.pad(w_flat, ((0, 0), (0, Cpad - C))).astype(jnp.bfloat16))
        bs.append(jnp.pad(b, (0, Cpad - C)).reshape(1, Cpad).astype(jnp.float32))

    # Inverted-dropout mask (padded channels produce zero features, so their
    # mask values are irrelevant).
    if train:
        keep = 1.0 - dropout_rate
        mask = jax.random.bernoulli(dropout_key, keep, (Bp, feat_pad))
        mask = mask.astype(jnp.float32) / keep
    else:
        mask = jnp.ones((Bp, feat_pad), jnp.float32)

    # FC weight rearranged to the padded [C3|0|C4|0|C5|0] feature layout.
    fc_w_t = jnp.transpose(params["fc_w"])                         # (3*C, NC)
    blocks = []
    for i in range(len(KERNEL_SIZES)):
        blk = fc_w_t[i * C:(i + 1) * C]
        blocks.append(jnp.pad(blk, ((0, Cpad - C), (0, NCpad - num_classes))))
    fc_w = jnp.concatenate(blocks, axis=0).astype(jnp.bfloat16)    # (feat_pad, NCpad)
    fc_b = jnp.pad(params["fc_b"], (0, NCpad - num_classes)).reshape(1, NCpad)
    fc_b = fc_b.astype(jnp.float32)

    grid = (Bp // B_TILE,)

    def batch3(i):
        return (i, 0, 0)

    def batch2(i):
        return (i, 0)

    def fixed2(i):
        return (0, 0)

    in_specs = [
        pl.BlockSpec((B_TILE, Ts[0], 3 * E), batch3),
        pl.BlockSpec((B_TILE, Ts[1], 4 * E), batch3),
        pl.BlockSpec((B_TILE, Ts[2], 5 * E), batch3),
        pl.BlockSpec((3 * E, Cpad), fixed2),
        pl.BlockSpec((1, Cpad), fixed2),
        pl.BlockSpec((4 * E, Cpad), fixed2),
        pl.BlockSpec((1, Cpad), fixed2),
        pl.BlockSpec((5 * E, Cpad), fixed2),
        pl.BlockSpec((1, Cpad), fixed2),
        pl.BlockSpec((B_TILE, feat_pad), batch2),
        pl.BlockSpec((feat_pad, NCpad), fixed2),
        pl.BlockSpec((1, NCpad), fixed2),
    ]
    out_specs = pl.BlockSpec((B_TILE, NCpad), batch2)

    operands = (*xcols, ws[0], bs[0], ws[1], bs[1], ws[2], bs[2], mask, fc_w, fc_b)
    flops = sum(2 * Bp * T * (K * E) * Cpad for T, K in zip(Ts, KERNEL_SIZES))
    flops += 2 * Bp * feat_pad * NCpad
    bytes_accessed = sum(int(o.size) * o.dtype.itemsize for o in operands)
    bytes_accessed += Bp * NCpad * 4

    logits_pad = pl.pallas_call(
        cha_cnn_kernel,
        out_shape=jax.ShapeDtypeStruct((Bp, NCpad), jnp.float32),
        grid=grid,
        in_specs=in_specs,
        out_specs=out_specs,
        compiler_params=pltpu.CompilerParams(
            dimension_semantics=("parallel",),
            vmem_limit_bytes=32 * 1024 * 1024),
        cost_estimate=pl.CostEstimate(
            flops=int(flops), transcendentals=0,
            bytes_accessed=int(bytes_accessed)),
    )(*operands)

    return logits_pad[:B, :num_classes]


def reference_forward(params, tokens):
    """Pure-JAX f32 reference of the PyTorch forward (eval mode, no dropout)."""
    emb = jnp.take(params["embed"], tokens, axis=0)
    emb = jnp.pad(emb, ((0, 0), (1, 1), (0, 0)), mode="reflect")
    feats = []
    for (w, b), K in zip(params["convs"], KERNEL_SIZES):
        T = emb.shape[1] - K + 1
        win = jnp.stack([emb[:, k:k + T, :] for k in range(K)], axis=2)  # (B,T,K,E)
        out = jnp.einsum("btke,cke->btc", win, w) + b
        feats.append(jnp.max(jnp.maximum(out, 0.0), axis=1))
    feat = jnp.concatenate(feats, axis=1)
    return feat @ params["fc_w"].T + params["fc_b"]


if __name__ == "__main__":
    vocab_size = 50
    embedding_size = 32
    num_classes = 8
    dropout_rate = 0.5
    kernel_num = 100          # module default
    B, L = 2, 16

    key = jax.random.PRNGKey(0)
    pkey, tkey, dkey = jax.random.split(key, 3)

    params = init_params(pkey, vocab_size, embedding_size, num_classes, kernel_num)
    tokens = jax.random.randint(tkey, (B, L), 0, vocab_size, dtype=jnp.int32)

    # Eval-mode correctness check against the pure-JAX f32 reference.
    out_eval = cha_cnn_lstm_forward(params, tokens, dropout_rate=dropout_rate,
                                    train=False)
    ref_eval = reference_forward(params, tokens)
    jax.block_until_ready(out_eval)
    assert out_eval.shape == (B, num_classes)
    max_err = float(jnp.max(jnp.abs(out_eval - ref_eval)))
    assert max_err < 0.1, f"kernel vs reference mismatch: {max_err}"

    # Train-mode run (with dropout).
    logits = cha_cnn_lstm_forward(params, tokens, dropout_rate=dropout_rate,
                                  train=True, dropout_key=dkey)
    jax.block_until_ready(logits)
    assert logits.shape == (B, num_classes)
    assert logits.dtype == jnp.float32
    print("KERNEL_OK")
</pallas_src>

<mosaic_0001>
module attributes {stable_mosaic.version = 11 : i64} {
  func.func @cha_cnn_kernel(%arg0: i32, %arg1: memref<8x16x96xbf16, #tpu.memory_space<vmem>>, %arg2: memref<8x15x128xbf16, #tpu.memory_space<vmem>>, %arg3: memref<8x14x160xbf16, #tpu.memory_space<vmem>>, %arg4: memref<96x128xbf16, #tpu.memory_space<vmem>>, %arg5: memref<1x128xf32, #tpu.memory_space<vmem>>, %arg6: memref<128x128xbf16, #tpu.memory_space<vmem>>, %arg7: memref<1x128xf32, #tpu.memory_space<vmem>>, %arg8: memref<160x128xbf16, #tpu.memory_space<vmem>>, %arg9: memref<1x128xf32, #tpu.memory_space<vmem>>, %arg10: memref<8x384xf32, #tpu.memory_space<vmem>>, %arg11: memref<384x128xbf16, #tpu.memory_space<vmem>>, %arg12: memref<1x128xf32, #tpu.memory_space<vmem>>, %arg13: memref<8x128xf32, #tpu.memory_space<vmem>>) attributes {dimension_semantics = [#tpu.dimension_semantics<parallel>], iteration_bounds = array<i64: 1>, scalar_prefetch = 0 : i64, scratch_operands = 0 : i64, tpu.core_type = #tpu.core_type<tc>, window_params = [{transform_indices = @transform_0, window_bounds = array<i64: 8, 16, 96>}, {transform_indices = @transform_1, window_bounds = array<i64: 8, 15, 128>}, {transform_indices = @transform_2, window_bounds = array<i64: 8, 14, 160>}, {pipeline_mode = #tpu.pipeline_mode<synchronous>, transform_indices = @transform_3, window_bounds = array<i64: 96, 128>}, {pipeline_mode = #tpu.pipeline_mode<synchronous>, transform_indices = @transform_4, window_bounds = array<i64: 1, 128>}, {pipeline_mode = #tpu.pipeline_mode<synchronous>, transform_indices = @transform_5, window_bounds = array<i64: 128, 128>}, {pipeline_mode = #tpu.pipeline_mode<synchronous>, transform_indices = @transform_6, window_bounds = array<i64: 1, 128>}, {pipeline_mode = #tpu.pipeline_mode<synchronous>, transform_indices = @transform_7, window_bounds = array<i64: 160, 128>}, {pipeline_mode = #tpu.pipeline_mode<synchronous>, transform_indices = @transform_8, window_bounds = array<i64: 1, 128>}, {transform_indices = @transform_9, window_bounds = array<i64: 8, 384>}, {pipeline_mode = #tpu.pipeline_mode<synchronous>, transform_indices = @transform_10, window_bounds = array<i64: 384, 128>}, {pipeline_mode = #tpu.pipeline_mode<synchronous>, transform_indices = @transform_11, window_bounds = array<i64: 1, 128>}, {transform_indices = @transform_12, window_bounds = array<i64: 8, 128>}]} {
    %c0 = arith.constant 0 : index
    %c0_0 = arith.constant 0 : index
    %c0_1 = arith.constant 0 : index
    %0 = vector.load %arg1[%c0, %c0_0, %c0_1] : memref<8x16x96xbf16, #tpu.memory_space<vmem>>, vector<8x16x96xbf16>
    %1 = vector.shape_cast %0 : vector<8x16x96xbf16> to vector<128x96xbf16>
    %c0_2 = arith.constant 0 : index
    %c0_3 = arith.constant 0 : index
    %2 = vector.load %arg4[%c0_2, %c0_3] : memref<96x128xbf16, #tpu.memory_space<vmem>>, vector<96x128xbf16>
    %cst = arith.constant dense<0.000000e+00> : vector<128x128xf32>
    %3 = tpu.matmul %1, %2, %cst {dimension_numbers = #tpu.dot_dimension_numbers<[1], [0], [0], [1], [0, 0, 1, 1], [], []>} : vector<128x96xbf16>, vector<96x128xbf16>, vector<128x128xf32> -> vector<128x128xf32>
    %c0_4 = arith.constant 0 : index
    %c0_5 = arith.constant 0 : index
    %4 = vector.load %arg5[%c0_4, %c0_5] : memref<1x128xf32, #tpu.memory_space<vmem>>, vector<1x128xf32>
    %5 = vector.broadcast %4 : vector<1x128xf32> to vector<128x128xf32>
    %6 = arith.addf %3, %5 : vector<128x128xf32>
    %cst_6 = arith.constant 0.000000e+00 : f32
    %7 = vector.broadcast %cst_6 : f32 to vector<128x128xf32>
    %8 = arith.maximumf %6, %7 : vector<128x128xf32>
    %9 = vector.shape_cast %8 : vector<128x128xf32> to vector<8x16x128xf32>
    %cst_7 = arith.constant dense<0xFF800000> : vector<8x128xf32>
    %10 = vector.multi_reduction <maximumf>, %9, %cst_7 [1] : vector<8x16x128xf32> to vector<8x128xf32>
    %c0_8 = arith.constant 0 : index
    %c0_9 = arith.constant 0 : index
    %c0_10 = arith.constant 0 : index
    %11 = vector.load %arg2[%c0_8, %c0_9, %c0_10] : memref<8x15x128xbf16, #tpu.memory_space<vmem>>, vector<8x15x128xbf16>
    %12 = vector.shape_cast %11 : vector<8x15x128xbf16> to vector<120x128xbf16>
    %c0_11 = arith.constant 0 : index
    %c0_12 = arith.constant 0 : index
    %13 = vector.load %arg6[%c0_11, %c0_12] : memref<128x128xbf16, #tpu.memory_space<vmem>>, vector<128x128xbf16>
    %cst_13 = arith.constant dense<0.000000e+00> : vector<120x128xf32>
    %14 = tpu.matmul %12, %13, %cst_13 {dimension_numbers = #tpu.dot_dimension_numbers<[1], [0], [0], [1], [0, 0, 1, 1], [], []>} : vector<120x128xbf16>, vector<128x128xbf16>, vector<120x128xf32> -> vector<120x128xf32>
    %c0_14 = arith.constant 0 : index
    %c0_15 = arith.constant 0 : index
    %15 = vector.load %arg7[%c0_14, %c0_15] : memref<1x128xf32, #tpu.memory_space<vmem>>, vector<1x128xf32>
    %16 = vector.broadcast %15 : vector<1x128xf32> to vector<120x128xf32>
    %17 = arith.addf %14, %16 : vector<120x128xf32>
    %cst_16 = arith.constant 0.000000e+00 : f32
    %18 = vector.broadcast %cst_16 : f32 to vector<120x128xf32>
    %19 = arith.maximumf %17, %18 : vector<120x128xf32>
    %20 = vector.shape_cast %19 : vector<120x128xf32> to vector<8x15x128xf32>
    %cst_17 = arith.constant dense<0xFF800000> : vector<8x128xf32>
    %21 = vector.multi_reduction <maximumf>, %20, %cst_17 [1] : vector<8x15x128xf32> to vector<8x128xf32>
    %c0_18 = arith.constant 0 : index
    %c0_19 = arith.constant 0 : index
    %c0_20 = arith.constant 0 : index
    %22 = vector.load %arg3[%c0_18, %c0_19, %c0_20] : memref<8x14x160xbf16, #tpu.memory_space<vmem>>, vector<8x14x160xbf16>
    %23 = vector.shape_cast %22 : vector<8x14x160xbf16> to vector<112x160xbf16>
    %c0_21 = arith.constant 0 : index
    %c0_22 = arith.constant 0 : index
    %24 = vector.load %arg8[%c0_21, %c0_22] : memref<160x128xbf16, #tpu.memory_space<vmem>>, vector<160x128xbf16>
    %cst_23 = arith.constant dense<0.000000e+00> : vector<112x128xf32>
    %25 = tpu.matmul %23, %24, %cst_23 {dimension_numbers = #tpu.dot_dimension_numbers<[1], [0], [0], [1], [0, 0, 1, 1], [], []>} : vector<112x160xbf16>, vector<160x128xbf16>, vector<112x128xf32> -> vector<112x128xf32>
    %c0_24 = arith.constant 0 : index
    %c0_25 = arith.constant 0 : index
    %26 = vector.load %arg9[%c0_24, %c0_25] : memref<1x128xf32, #tpu.memory_space<vmem>>, vector<1x128xf32>
    %27 = vector.broadcast %26 : vector<1x128xf32> to vector<112x128xf32>
    %28 = arith.addf %25, %27 : vector<112x128xf32>
    %cst_26 = arith.constant 0.000000e+00 : f32
    %29 = vector.broadcast %cst_26 : f32 to vector<112x128xf32>
    %30 = arith.maximumf %28, %29 : vector<112x128xf32>
    %31 = vector.shape_cast %30 : vector<112x128xf32> to vector<8x14x128xf32>
    %cst_27 = arith.constant dense<0xFF800000> : vector<8x128xf32>
    %32 = vector.multi_reduction <maximumf>, %31, %cst_27 [1] : vector<8x14x128xf32> to vector<8x128xf32>
    %33 = tpu.concatenate %10, %21, %32 in 1 : vector<8x128xf32>, vector<8x128xf32>, vector<8x128xf32> -> vector<8x384xf32>
    %c0_28 = arith.constant 0 : index
    %c0_29 = arith.constant 0 : index
    %34 = vector.load %arg10[%c0_28, %c0_29] : memref<8x384xf32, #tpu.memory_space<vmem>>, vector<8x384xf32>
    %35 = arith.mulf %33, %34 : vector<8x384xf32>
    %36 = arith.truncf %35 : vector<8x384xf32> to vector<8x384xbf16>
    %c0_30 = arith.constant 0 : index
    %c0_31 = arith.constant 0 : index
    %37 = vector.load %arg11[%c0_30, %c0_31] : memref<384x128xbf16, #tpu.memory_space<vmem>>, vector<384x128xbf16>
    %cst_32 = arith.constant dense<0.000000e+00> : vector<8x128xf32>
    %38 = tpu.matmul %36, %37, %cst_32 {dimension_numbers = #tpu.dot_dimension_numbers<[1], [0], [0], [1], [0, 0, 1, 1], [], []>} : vector<8x384xbf16>, vector<384x128xbf16>, vector<8x128xf32> -> vector<8x128xf32>
    %c0_33 = arith.constant 0 : index
    %c0_34 = arith.constant 0 : index
    %39 = vector.load %arg12[%c0_33, %c0_34] : memref<1x128xf32, #tpu.memory_space<vmem>>, vector<1x128xf32>
    %40 = vector.broadcast %39 : vector<1x128xf32> to vector<8x128xf32>
    %41 = arith.addf %38, %40 : vector<8x128xf32>
    %c0_35 = arith.constant 0 : index
    %c0_36 = arith.constant 0 : index
    %42 = vector.load %arg13[%c0_35, %c0_36] : memref<8x128xf32, #tpu.memory_space<vmem>>, vector<8x128xf32>
    tpu.vector_store %arg13[%c0_35, %c0_36], %41 {strides = array<i32>} : memref<8x128xf32, #tpu.memory_space<vmem>>, vector<8x128xf32>,
    return
  }
  func.func @transform_0(%arg0: i32) -> (i32, i32, i32) {
    %c0_i32 = arith.constant 0 : i32
    %c0_i32_0 = arith.constant 0 : i32
    %c0_i32_1 = arith.constant 0 : i32
    return %arg0, %c0_i32, %c0_i32_0 : i32, i32, i32
  }
  func.func @transform_1(%arg0: i32) -> (i32, i32, i32) {
    %c0_i32 = arith.constant 0 : i32
    %c0_i32_0 = arith.constant 0 : i32
    %c0_i32_1 = arith.constant 0 : i32
    return %arg0, %c0_i32, %c0_i32_0 : i32, i32, i32
  }
  func.func @transform_2(%arg0: i32) -> (i32, i32, i32) {
    %c0_i32 = arith.constant 0 : i32
    %c0_i32_0 = arith.constant 0 : i32
    %c0_i32_1 = arith.constant 0 : i32
    return %arg0, %c0_i32, %c0_i32_0 : i32, i32, i32
  }
  func.func @transform_3(%arg0: i32) -> (i32, i32) {
    %c0_i32 = arith.constant 0 : i32
    %c0_i32_0 = arith.constant 0 : i32
    %c0_i32_1 = arith.constant 0 : i32
    return %c0_i32, %c0_i32_0 : i32, i32
  }
  func.func @transform_4(%arg0: i32) -> (i32, i32) {
    %c0_i32 = arith.constant 0 : i32
    %c0_i32_0 = arith.constant 0 : i32
    %c0_i32_1 = arith.constant 0 : i32
    return %c0_i32, %c0_i32_0 : i32, i32
  }
  func.func @transform_5(%arg0: i32) -> (i32, i32) {
    %c0_i32 = arith.constant 0 : i32
    %c0_i32_0 = arith.constant 0 : i32
    %c0_i32_1 = arith.constant 0 : i32
    return %c0_i32, %c0_i32_0 : i32, i32
  }
  func.func @transform_6(%arg0: i32) -> (i32, i32) {
    %c0_i32 = arith.constant 0 : i32
    %c0_i32_0 = arith.constant 0 : i32
    %c0_i32_1 = arith.constant 0 : i32
    return %c0_i32, %c0_i32_0 : i32, i32
  }
  func.func @transform_7(%arg0: i32) -> (i32, i32) {
    %c0_i32 = arith.constant 0 : i32
    %c0_i32_0 = arith.constant 0 : i32
    %c0_i32_1 = arith.constant 0 : i32
    return %c0_i32, %c0_i32_0 : i32, i32
  }
  func.func @transform_8(%arg0: i32) -> (i32, i32) {
    %c0_i32 = arith.constant 0 : i32
    %c0_i32_0 = arith.constant 0 : i32
    %c0_i32_1 = arith.constant 0 : i32
    return %c0_i32, %c0_i32_0 : i32, i32
  }
  func.func @transform_9(%arg0: i32) -> (i32, i32) {
    %c0_i32 = arith.constant 0 : i32
    %c0_i32_0 = arith.constant 0 : i32
    return %arg0, %c0_i32 : i32, i32
  }
  func.func @transform_10(%arg0: i32) -> (i32, i32) {
    %c0_i32 = arith.constant 0 : i32
    %c0_i32_0 = arith.constant 0 : i32
    %c0_i32_1 = arith.constant 0 : i32
    return %c0_i32, %c0_i32_0 : i32, i32
  }
  func.func @transform_11(%arg0: i32) -> (i32, i32) {
    %c0_i32 = arith.constant 0 : i32
    %c0_i32_0 = arith.constant 0 : i32
    %c0_i32_1 = arith.constant 0 : i32
    return %c0_i32, %c0_i32_0 : i32, i32
  }
  func.func @transform_12(%arg0: i32) -> (i32, i32) {
    %c0_i32 = arith.constant 0 : i32
    %c0_i32_0 = arith.constant 0 : i32
    return %arg0, %c0_i32 : i32, i32
  }
}

</mosaic_0001>

<llo_original>
// kernel: tpu_custom_call.1
$region0: #{tpu_custom_call.1}
  #allocation0 [shape = 'u32[]', space=smem, size = 0x4, offset = 0x4, fixed_abs, tag = 'smem constant byte address 0x4 - core index']
  #allocation1 [shape = 'u32[144,128]{1,0:T(1,128)}', space=vmem, size = 0x12000, scoped, tag = 'internal scratch']
  %s0 = inlined_call_operand.vmem [shape: bf16[8,16,96], index: 0, kind: input, shape index: {}]
  %s1 = inlined_call_operand.vmem [shape: bf16[8,15,128], index: 1, kind: input, shape index: {}]
  %s2 = inlined_call_operand.vmem [shape: bf16[8,14,160], index: 2, kind: input, shape index: {}]
  %s3 = inlined_call_operand.hbm [shape: bf16[96,128], index: 3, kind: input, shape index: {}]
  %s4 = inlined_call_operand.vmem [shape: f32[1,128], index: 4, kind: input, shape index: {}]
  %s5 = inlined_call_operand.hbm [shape: bf16[128,128], index: 5, kind: input, shape index: {}]
  %s6 = inlined_call_operand.vmem [shape: f32[1,128], index: 6, kind: input, shape index: {}]
  %s7 = inlined_call_operand.vmem [shape: bf16[160,128], index: 7, kind: input, shape index: {}]
  %s8 = inlined_call_operand.vmem [shape: f32[1,128], index: 8, kind: input, shape index: {}]
  %s9 = inlined_call_operand.vmem [shape: f32[8,384], index: 9, kind: input, shape index: {}]
  %s10 = inlined_call_operand.vmem [shape: bf16[384,128], index: 10, kind: input, shape index: {}]
  %s11 = inlined_call_operand.vmem [shape: f32[1,128], index: 11, kind: input, shape index: {}]
  %s12 = inlined_call_operand.hbm [shape: f32[8,128], index: 12, kind: output, shape index: {}]
  %s13 = sld [smem:[#allocation0]]
  $region66: #{tpu_custom_call.1} parent=0
    _
  %s15 = ssub.s32 1, %s13
  %s16 = scalar_select 0, %s15, %s13
  $region1: #{tpu_custom_call.1} parent=0
    #allocation2 [shape = 'u8[24576]{0}', space=vmem, size = 0x6000, scoped, tag = 'input window, operand 3, single buffered']
    #allocation3 [shape = 's32[1]{0}', space=sflag, size = 0x4, scoped, tag = 'scoped memory for tpu_custom_call.1']
    #allocation4 [shape = 's32[1]{0}', space=sflag, size = 0x4, scoped, tag = 'scoped memory for tpu_custom_call.1']
    #allocation5 [shape = 'u8[32768]{0}', space=vmem, size = 0x8000, scoped, tag = 'input window, operand 5, single buffered']
    #allocation6 [shape = 's32[1]{0}', space=sflag, size = 0x4, scoped, tag = 'scoped memory for tpu_custom_call.1']
    #allocation7 [shape = 'u8[4096]{0}', space=vmem, size = 0x1000, scoped, tag = 'output window, operand 0, single buffered']
    %17 = vsyncpa [#allocation3], 0
    %18 = vsyncpa [#allocation6], 0
    %19 = vsyncpa [#allocation4], 0
    // Predicated region
    $region2: #{tpu_custom_call.1} parent=1 // pred_check
      _
    $region3: #{tpu_custom_call.1} parent=1 // pred_check_branch
      %21 = sbr.rel (0) target = $region5
    $region4: #{tpu_custom_call.1} parent=1 // pred_region
      _
    $region5: #{tpu_custom_call.1} parent=1 // pred_fallthru
      _
    // Predicated region
    $region6: #{tpu_custom_call.1} parent=1 // pred_check
      _
    $region7: #{tpu_custom_call.1} parent=1 // pred_check_branch
      %23 = sbr.rel (0) target = $region9
    $region8: #{tpu_custom_call.1} parent=1 // pred_region
      _
    $region9: #{tpu_custom_call.1} parent=1 // pred_fallthru
      _
    // Predicated region
    $region10: #{tpu_custom_call.1} parent=1 // pred_check
      _
    $region11: #{tpu_custom_call.1} parent=1 // pred_check_branch
      %25 = sbr.rel (0) target = $region13
    $region12: #{tpu_custom_call.1} parent=1 // pred_region
      _
    $region13: #{tpu_custom_call.1} parent=1 // pred_fallthru
      _
    // Predicated region
    $region14: #{tpu_custom_call.1} parent=1 // pred_check
      _
    $region15: #{tpu_custom_call.1} parent=1 // pred_check_branch
      %27 = sbr.rel (0) target = $region17
    $region16: #{tpu_custom_call.1} parent=1 // pred_region
      %s29 = ssub.s32 768, 768
      %30 = vsyncadd [#allocation3], %s29
      %s31 = sshll.u32 [#allocation2], 4
      %s32 = int_to_ptr.vmem [resolvable:$true] %s31
      %37 = dma.hbm_to_vmem [thread:$0]  %s3, 768, %s32, [#allocation3], 64, 64, 4
    $region17: #{tpu_custom_call.1} parent=1 // pred_fallthru
      _
    // Predicated region
    $region18: #{tpu_custom_call.1} parent=1 // pred_check
      _
    $region19: #{tpu_custom_call.1} parent=1 // pred_check_branch
      %39 = sbr.rel (0) target = $region21
    $region20: #{tpu_custom_call.1} parent=1 // pred_region
      _
    $region21: #{tpu_custom_call.1} parent=1 // pred_fallthru
      _
    // Predicated region
    $region22: #{tpu_custom_call.1} parent=1 // pred_check
      _
    $region23: #{tpu_custom_call.1} parent=1 // pred_check_branch
      %41 = sbr.rel (0) target = $region25
    $region24: #{tpu_custom_call.1} parent=1 // pred_region
      %s43 = ssub.s32 1024, 1024
      %44 = vsyncadd [#allocation6], %s43
      %s45 = sshll.u32 [#allocation5], 4
      %s46 = int_to_ptr.vmem [resolvable:$true] %s45
      %51 = dma.hbm_to_vmem [thread:$0]  %s5, 1024, %s46, [#allocation6], 64, 64, 4
    $region25: #{tpu_custom_call.1} parent=1 // pred_fallthru
      _
    // Predicated region
    $region26: #{tpu_custom_call.1} parent=1 // pred_check
      _
    $region27: #{tpu_custom_call.1} parent=1 // pred_check_branch
      %53 = sbr.rel (0) target = $region29
    $region28: #{tpu_custom_call.1} parent=1 // pred_region
      _
    $region29: #{tpu_custom_call.1} parent=1 // pred_fallthru
      _
    // Predicated region
    $region30: #{tpu_custom_call.1} parent=1 // pred_check
      _
    $region31: #{tpu_custom_call.1} parent=1 // pred_check_branch
      %55 = sbr.rel (0) target = $region33
    $region32: #{tpu_custom_call.1} parent=1 // pred_region
      _
    $region33: #{tpu_custom_call.1} parent=1 // pred_fallthru
      _
    // Predicated region
    $region34: #{tpu_custom_call.1} parent=1 // pred_check
      _
    $region35: #{tpu_custom_call.1} parent=1 // pred_check_branch
      %57 = sbr.rel (0) target = $region37
    $region36: #{tpu_custom_call.1} parent=1 // pred_region
      _
    $region37: #{tpu_custom_call.1} parent=1 // pred_fallthru
      _
    // Predicated region
    $region38: #{tpu_custom_call.1} parent=1 // pred_check
      _
    $region39: #{tpu_custom_call.1} parent=1 // pred_check_branch
      %59 = sbr.rel (0) target = $region41
    $region40: #{tpu_custom_call.1} parent=1 // pred_region
      _
    $region41: #{tpu_custom_call.1} parent=1 // pred_fallthru
      _
    // Predicated region
    $region42: #{tpu_custom_call.1} parent=1 // pred_check
      _
    $region43: #{tpu_custom_call.1} parent=1 // pred_check_branch
      %61 = sbr.rel (0) target = $region45
    $region44: #{tpu_custom_call.1} parent=1 // pred_region
      _
    $region45: #{tpu_custom_call.1} parent=1 // pred_fallthru
      _
    // Predicated region
    $region46: #{tpu_custom_call.1} parent=1 // pred_check
      _
    $region47: #{tpu_custom_call.1} parent=1 // pred_check_branch
      %63 = sbr.rel (0) target = $region49
    $region48: #{tpu_custom_call.1} parent=1 // pred_region
      _
    $region49: #{tpu_custom_call.1} parent=1 // pred_fallthru
      _
    // Predicated region
    $region50: #{tpu_custom_call.1} parent=1 // pred_check
      _
    $region51: #{tpu_custom_call.1} parent=1 // pred_check_branch
      %65 = sbr.rel (0) target = $region53
    $region52: #{tpu_custom_call.1} parent=1 // pred_region
      %66 = dma.done [#allocation3], 768
    $region53: #{tpu_custom_call.1} parent=1 // pred_fallthru
      _
    // Predicated region
    $region54: #{tpu_custom_call.1} parent=1 // pred_check
      _
    $region55: #{tpu_custom_call.1} parent=1 // pred_check_branch
      %68 = sbr.rel (0) target = $region57
    $region56: #{tpu_custom_call.1} parent=1 // pred_region
      %69 = dma.done [#allocation6], 1024
    $region57: #{tpu_custom_call.1} parent=1 // pred_fallthru
      _
    %v71 = vld [vmem:[%s0] sm:$0xf]
    %v72 = vld [vmem:[%s0 + $0x4] sm:$0xf]
    %v73 = vld [vmem:[%s0 + $0x8] sm:$0xf]
    %v74 = vld [vmem:[%s0 + $0xc] sm:$0xf]
    %v75 = vld [vmem:[%s0 + $0x10] sm:$0xf]
    %v76 = vld [vmem:[%s0 + $0x14] sm:$0xf]
    %v77 = vld [vmem:[%s0 + $0x18] sm:$0xf]
    %v78 = vld [vmem:[%s0 + $0x1c] sm:$0xf]
    %v79 = vld [vmem:[%s0 + $0x20] sm:$0xf]
    %v80 = vld [vmem:[%s0 + $0x24] sm:$0xf]
    %v81 = vld [vmem:[%s0 + $0x28] sm:$0xf]
    %v82 = vld [vmem:[%s0 + $0x2c] sm:$0xf]
    %v83 = vld [vmem:[%s0 + $0x30] sm:$0xf]
    %v84 = vld [vmem:[%s0 + $0x34] sm:$0xf]
    %v85 = vld [vmem:[%s0 + $0x38] sm:$0xf]
    %v86 = vld [vmem:[%s0 + $0x3c] sm:$0xf]
    %v87 = vld [vmem:[#allocation2] sm:$0xf]
    %v88 = vld [vmem:[#allocation2 + $0x4] sm:$0xf]
    %v89 = vld [vmem:[#allocation2 + $0x8] sm:$0xf]
    %v90 = vld [vmem:[#allocation2 + $0xc] sm:$0xf]
    %v91 = vld [vmem:[#allocation2 + $0x10] sm:$0xf]
    %v92 = vld [vmem:[#allocation2 + $0x14] sm:$0xf]
    %v93 = vld [vmem:[#allocation2 + $0x18] sm:$0xf]
    %v94 = vld [vmem:[#allocation2 + $0x1c] sm:$0xf]
    %v95 = vld [vmem:[#allocation2 + $0x20] sm:$0xf]
    %v96 = vld [vmem:[#allocation2 + $0x24] sm:$0xf]
    %v97 = vld [vmem:[#allocation2 + $0x28] sm:$0xf]
    %v98 = vld [vmem:[#allocation2 + $0x2c] sm:$0xf]
    %v99 = vld [vmem:[%s4] sm:$0x1]
    %v101 = vlaneseq
    %v102 = vshrl.u32 %v101, 7
    %v103 = vsub.s32 0, %v102
    %v104 = vrot.slane %v99, %v103
    %v122 = vunpack.c.l.b16 %v71
    %v123 = vunpack.c.l.b16 %v72
    %v124 = vunpack.c.l.b16 %v73
    %v125 = vunpack.c.l.b16 %v74
    %v126 = vunpack.c.l.b16 %v75
    %v127 = vunpack.c.l.b16 %v76
    %v128 = vunpack.c.l.b16 %v77
    %v129 = vunpack.c.l.b16 %v78
    %v130 = vunpack.c.l.b16 %v79
    %v131 = vunpack.c.l.b16 %v80
    %v132 = vunpack.c.l.b16 %v81
    %v133 = vunpack.c.l.b16 %v82
    %v134 = vunpack.c.l.b16 %v83
    %v135 = vunpack.c.l.b16 %v84
    %v136 = vunpack.c.l.b16 %v85
    %v137 = vunpack.c.l.b16 %v86
    %v138 = vpack.c.b16 %v123, %v122
    %v139 = vpack.c.b16 %v125, %v124
    %v140 = vpack.c.b16 %v127, %v126
    %v141 = vpack.c.b16 %v129, %v128
    %v142 = vpack.c.b16 %v131, %v130
    %v143 = vpack.c.b16 %v133, %v132
    %v144 = vpack.c.b16 %v135, %v134
    %v145 = vpack.c.b16 %v137, %v136
    %v158 = vunpack.c.l.b16 %v87
    %v159 = vunpack.c.l.b16 %v88
    %v160 = vunpack.c.l.b16 %v89
    %v161 = vunpack.c.l.b16 %v90
    %v162 = vunpack.c.l.b16 %v91
    %v163 = vunpack.c.l.b16 %v92
    %v164 = vunpack.c.l.b16 %v93
    %v165 = vunpack.c.l.b16 %v94
    %v166 = vunpack.c.l.b16 %v95
    %v167 = vunpack.c.l.b16 %v96
    %v168 = vunpack.c.l.b16 %v97
    %v169 = vunpack.c.l.b16 %v98
    %v170 = vpack.c.b16 %v159, %v158
    %v171 = vpack.c.b16 %v161, %v160
    %v172 = vpack.c.b16 %v163, %v162
    %v173 = vpack.c.b16 %v165, %v164
    %v174 = vpack.c.b16 %v167, %v166
    %v175 = vpack.c.b16 %v169, %v168
    %vm182 = vcmask 785408
    %v184 = vsel %vm182, %v138, 0
    %v187 = vsel %vm182, %v139, 0
    %v190 = vsel %vm182, %v140, 0
    %v193 = vsel %vm182, %v141, 0
    %v196 = vsel %vm182, %v142, 0
    %v199 = vsel %vm182, %v143, 0
    %v202 = vsel %vm182, %v144, 0
    %v205 = vsel %vm182, %v145, 0
    %207 = vmatprep.subr.bf16.mxu0 0
    %208 = vmatpush1.bf16.msra.mxu0 0
    %209 = vmatprep.subr.bf16.mxu0 0
    %210 = vmatpush1.bf16.msra.mxu0 0
    %211 = vmatprep.subr.bf16.mxu0 0
    %212 = vmatpush1.bf16.msra.mxu0 %v175
    %213 = vmatprep.subr.bf16.mxu0 0
    %214 = vmatpush1.bf16.msra.mxu0 %v174
    %215 = vmatprep.subr.bf16.mxu0 0
    %216 = vmatpush1.bf16.msra.mxu0 %v173
    %217 = vmatprep.subr.bf16.mxu0 0
    %218 = vmatpush1.bf16.msra.mxu0 %v172
    %219 = vmatprep.subr.bf16.mxu0 0
    %220 = vmatpush1.bf16.msra.mxu0 %v171
    %221 = vmatprep.subr.bf16.mxu0 0
    %222 = vmatpush1.bf16.msra.mxu0 %v170
    %223 = vmatprep.subr.bf16.mxu0 0
    %224 = vmatpush2.bf16.msra.mxu0 0
    %225 = vmatprep.subr.bf16.mxu0 0
    %226 = vmatpush2.bf16.msra.mxu0 0
    %227 = vmatprep.subr.bf16.mxu0 0
    %228 = vmatpush2.bf16.msra.mxu0 0
    %229 = vmatprep.subr.bf16.mxu0 0
    %230 = vmatpush2.bf16.msra.mxu0 0
    %231 = vmatprep.subr.bf16.mxu0 0
    %232 = vmatpush2.bf16.msra.mxu0 0
    %233 = vmatprep.subr.bf16.mxu0 0
    %234 = vmatpush2.bf16.msra.mxu0 0
    %235 = vmatprep.subr.bf16.mxu0 0
    %236 = vmatpush2.bf16.msra.mxu0 0
    %237 = vmatprep.subr.bf16.mxu0 0
    %238 = vmatpush2.bf16.msra.mxu0 0
    %239 = vmatprep.mubr.bf16.mxu0 0
    %240 = vmatmul.mubr.bf16.gmra.mxu0 %v184
    %v241 = vpop.f32.mrf.mxu0
    %v242 = vadd.f32 %v104, %v241
    %v243 = vpop.f32.mrf.mxu0
    %v244 = vpop.f32.mrf.mxu0
    %v245 = vadd.f32 %v104, %v244
    %v246 = vpop.f32.mrf.mxu0
    %247 = vmatprep.mubr.bf16.mxu0 0
    %248 = vmatmul.mubr.bf16.gmra.mxu0 %v187
    %v249 = vpop.f32.mrf.mxu0
    %v250 = vadd.f32 %v104, %v249
    %v251 = vpop.f32.mrf.mxu0
    %v252 = vpop.f32.mrf.mxu0
    %v253 = vadd.f32 %v104, %v252
    %v254 = vpop.f32.mrf.mxu0
    %255 = vmatprep.mubr.bf16.mxu0 0
    %256 = vmatmul.mubr.bf16.gmra.mxu0 %v190
    %v257 = vpop.f32.mrf.mxu0
    %v258 = vadd.f32 %v104, %v257
    %v259 = vpop.f32.mrf.mxu0
    %v260 = vpop.f32.mrf.mxu0
    %v261 = vadd.f32 %v104, %v260
    %v262 = vpop.f32.mrf.mxu0
    %263 = vmatprep.mubr.bf16.mxu0 0
    %264 = vmatmul.mubr.bf16.gmra.mxu0 %v193
    %v265 = vpop.f32.mrf.mxu0
    %v266 = vadd.f32 %v104, %v265
    %v267 = vpop.f32.mrf.mxu0
    %v268 = vpop.f32.mrf.mxu0
    %v269 = vadd.f32 %v104, %v268
    %v270 = vpop.f32.mrf.mxu0
    %271 = vmatprep.mubr.bf16.mxu0 0
    %272 = vmatmul.mubr.bf16.gmra.mxu0 %v196
    %v273 = vpop.f32.mrf.mxu0
    %v274 = vadd.f32 %v104, %v273
    %v275 = vpop.f32.mrf.mxu0
    %v276 = vpop.f32.mrf.mxu0
    %v277 = vadd.f32 %v104, %v276
    %v278 = vpop.f32.mrf.mxu0
    %279 = vmatprep.mubr.bf16.mxu0 0
    %280 = vmatmul.mubr.bf16.gmra.mxu0 %v199
    %v281 = vpop.f32.mrf.mxu0
    %v282 = vadd.f32 %v104, %v281
    %v283 = vpop.f32.mrf.mxu0
    %v284 = vpop.f32.mrf.mxu0
    %v285 = vadd.f32 %v104, %v284
    %v286 = vpop.f32.mrf.mxu0
    %287 = vmatprep.mubr.bf16.mxu0 0
    %288 = vmatmul.mubr.bf16.gmra.mxu0 %v202
    %v289 = vpop.f32.mrf.mxu0
    %v290 = vadd.f32 %v104, %v289
    %v291 = vpop.f32.mrf.mxu0
    %v292 = vpop.f32.mrf.mxu0
    %v293 = vadd.f32 %v104, %v292
    %v294 = vpop.f32.mrf.mxu0
    %295 = vmatprep.mubr.bf16.mxu0 0
    %296 = vmatmul.mubr.bf16.gmra.mxu0 %v205
    %v297 = vpop.f32.mrf.mxu0
    %v298 = vadd.f32 %v104, %v297
    %v299 = vpop.f32.mrf.mxu0
    %v300 = vpop.f32.mrf.mxu0
    %v301 = vadd.f32 %v104, %v300
    %v302 = vpop.f32.mrf.mxu0
    %303 = vdwg.mxu0
    %v304 = vmax.f32 %v242, 0.0
    %v305 = vmax.f32 %v245, 0.0
    %v306 = vmax.f32 %v250, 0.0
    %v307 = vmax.f32 %v253, 0.0
    %v308 = vmax.f32 %v258, 0.0
    %v309 = vmax.f32 %v261, 0.0
    %v310 = vmax.f32 %v266, 0.0
    %v311 = vmax.f32 %v269, 0.0
    %v312 = vmax.f32 %v274, 0.0
    %v313 = vmax.f32 %v277, 0.0
    %v314 = vmax.f32 %v282, 0.0
    %v315 = vmax.f32 %v285, 0.0
    %v316 = vmax.f32 %v290, 0.0
    %v317 = vmax.f32 %v293, 0.0
    %v318 = vmax.f32 %v298, 0.0
    %v319 = vmax.f32 %v301, 0.0
    %v320 = vmax.f32 %v304, %v305
    %v321 = vrot.slane %v320, 4
    %v322 = vmax.f32 %v320, %v321
    %v323 = vrot.slane %v322, 2
    %v324 = vmax.f32 %v322, %v323
    %v325 = vrot.slane %v324, 1
    %v326 = vmax.f32 %v324, %v325
    %v327 = vmax.f32 %v306, %v307
    %v328 = vrot.slane %v327, 4
    %v329 = vmax.f32 %v327, %v328
    %v330 = vrot.slane %v329, 2
    %v331 = vmax.f32 %v329, %v330
    %v332 = vrot.slane %v331, 1
    %v333 = vmax.f32 %v331, %v332
    %v334 = vmax.f32 %v308, %v309
    %v335 = vrot.slane %v334, 4
    %v336 = vmax.f32 %v334, %v335
    %v337 = vrot.slane %v336, 2
    %v338 = vmax.f32 %v336, %v337
    %v339 = vrot.slane %v338, 1
    %v340 = vmax.f32 %v338, %v339
    %v341 = vmax.f32 %v310, %v311
    %v342 = vrot.slane %v341, 4
    %v343 = vmax.f32 %v341, %v342
    %v344 = vrot.slane %v343, 2
    %v345 = vmax.f32 %v343, %v344
    %v346 = vrot.slane %v345, 1
    %v347 = vmax.f32 %v345, %v346
    %v348 = vmax.f32 %v312, %v313
    %v349 = vrot.slane %v348, 4
    %v350 = vmax.f32 %v348, %v349
    %v351 = vrot.slane %v350, 2
    %v352 = vmax.f32 %v350, %v351
    %v353 = vrot.slane %v352, 1
    %v354 = vmax.f32 %v352, %v353
    %v355 = vmax.f32 %v314, %v315
    %v356 = vrot.slane %v355, 4
    %v357 = vmax.f32 %v355, %v356
    %v358 = vrot.slane %v357, 2
    %v359 = vmax.f32 %v357, %v358
    %v360 = vrot.slane %v359, 1
    %v361 = vmax.f32 %v359, %v360
    %v362 = vmax.f32 %v316, %v317
    %v363 = vrot.slane %v362, 4
    %v364 = vmax.f32 %v362, %v363
    %v365 = vrot.slane %v364, 2
    %v366 = vmax.f32 %v364, %v365
    %v367 = vrot.slane %v366, 1
    %v368 = vmax.f32 %v366, %v367
    %v369 = vmax.f32 %v318, %v319
    %v370 = vrot.slane %v369, 4
    %v371 = vmax.f32 %v369, %v370
    %v372 = vrot.slane %v371, 2
    %v373 = vmax.f32 %v371, %v372
    %v374 = vrot.slane %v373, 1
    %v375 = vmax.f32 %v373, %v374
    %v376 = vld [vmem:[%s1] sm:$0xf]
    %v377 = vld [vmem:[%s1 + $0x4] sm:$0xf]
    %v378 = vld [vmem:[%s1 + $0x8] sm:$0xf]
    %v379 = vld [vmem:[%s1 + $0xc] sm:$0xf]
    %v380 = vld [vmem:[%s1 + $0x10] sm:$0xf]
    %v381 = vld [vmem:[%s1 + $0x14] sm:$0xf]
    %v382 = vld [vmem:[%s1 + $0x18] sm:$0xf]
    %v383 = vld [vmem:[%s1 + $0x1c] sm:$0xf]
    %v384 = vld [vmem:[%s1 + $0x20] sm:$0xf]
    %v385 = vld [vmem:[%s1 + $0x24] sm:$0xf]
    %v386 = vld [vmem:[%s1 + $0x28] sm:$0xf]
    %v387 = vld [vmem:[%s1 + $0x2c] sm:$0xf]
    %v388 = vld [vmem:[%s1 + $0x30] sm:$0xf]
    %v389 = vld [vmem:[%s1 + $0x34] sm:$0xf]
    %v390 = vld [vmem:[%s1 + $0x38] sm:$0xf]
    %v391 = vld [vmem:[%s1 + $0x3c] sm:$0xf]
    %v409 = vunpack.c.l.s4 1966171168
    %v410 = vunpack.c.0.s8 %v409
    %v411 = vlaneseq
    %v412 = vshrl.u32 %v411, 7
    %v413 = vsub.s32 %v410, %v412
    %v414 = vrot.slane %v376, %v413
    %v415 = vcombine.high %v414, %v414
    %v417 = vunpack.c.l.s4 1966171168
    %v418 = vunpack.c.0.s8 %v417
    %v419 = vlaneseq
    %v420 = vshrl.u32 %v419, 7
    %v421 = vsub.s32 %v418, %v420
    %v422 = vrot.slane %v414, %v421
    %v424 = vunpack.c.l.s4 1966171168
    %v425 = vunpack.c.0.s8 %v424
    %v426 = vlaneseq
    %v427 = vshrl.u32 %v426, 7
    %v428 = vsub.s32 %v425, %v427
    %v429 = vrot.slane %v415, %v428
    %v430 = vcombine.high %v422, %v422
    %v431 = vcombine.high %v429, %v429
    %v433 = vunpack.c.l.s4 1966171168
    %v434 = vunpack.c.0.s8 %v433
    %v435 = vlaneseq
    %v436 = vshrl.u32 %v435, 7
    %v437 = vsub.s32 %v434, %v436
    %v438 = vrot.slane %v377, %v437
    %v439 = vcombine.high %v438, %v438
    %v441 = vunpack.c.l.s4 1966171168
    %v442 = vunpack.c.0.s8 %v441
    %v443 = vlaneseq
    %v444 = vshrl.u32 %v443, 7
    %v445 = vsub.s32 %v442, %v444
    %v446 = vrot.slane %v438, %v445
    %v448 = vunpack.c.l.s4 1966171168
    %v449 = vunpack.c.0.s8 %v448
    %v450 = vlaneseq
    %v451 = vshrl.u32 %v450, 7
    %v452 = vsub.s32 %v449, %v451
    %v453 = vrot.slane %v439, %v452
    %v454 = vcombine.high %v446, %v446
    %v455 = vcombine.high %v453, %v453
    %v457 = vunpack.c.l.s4 1966171168
    %v458 = vunpack.c.0.s8 %v457
    %v459 = vlaneseq
    %v460 = vshrl.u32 %v459, 7
    %v461 = vsub.s32 %v458, %v460
    %v462 = vrot.slane %v378, %v461
    %v463 = vcombine.high %v462, %v462
    %v465 = vunpack.c.l.s4 1966171168
    %v466 = vunpack.c.0.s8 %v465
    %v467 = vlaneseq
    %v468 = vshrl.u32 %v467, 7
    %v469 = vsub.s32 %v466, %v468
    %v470 = vrot.slane %v462, %v469
    %v472 = vunpack.c.l.s4 1966171168
    %v473 = vunpack.c.0.s8 %v472
    %v474 = vlaneseq
    %v475 = vshrl.u32 %v474, 7
    %v476 = vsub.s32 %v473, %v475
    %v477 = vrot.slane %v463, %v476
    %v478 = vcombine.high %v470, %v470
    %v479 = vcombine.high %v477, %v477
    %v481 = vunpack.c.l.s4 1966171168
    %v482 = vunpack.c.0.s8 %v481
    %v483 = vlaneseq
    %v484 = vshrl.u32 %v483, 7
    %v485 = vsub.s32 %v482, %v484
    %v486 = vrot.slane %v379, %v485
    %v487 = vcombine.high %v486, %v486
    %v489 = vunpack.c.l.s4 1966171168
    %v490 = vunpack.c.0.s8 %v489
    %v491 = vlaneseq
    %v492 = vshrl.u32 %v491, 7
    %v493 = vsub.s32 %v490, %v492
    %v494 = vrot.slane %v486, %v493
    %v496 = vunpack.c.l.s4 1966171168
    %v497 = vunpack.c.0.s8 %v496
    %v498 = vlaneseq
    %v499 = vshrl.u32 %v498, 7
    %v500 = vsub.s32 %v497, %v499
    %v501 = vrot.slane %v487, %v500
    %v502 = vcombine.high %v494, %v494
    %v503 = vcombine.high %v501, %v501
    %v505 = vunpack.c.l.s4 1966171168
    %v506 = vunpack.c.0.s8 %v505
    %v507 = vlaneseq
    %v508 = vshrl.u32 %v507, 7
    %v509 = vsub.s32 %v506, %v508
    %v510 = vrot.slane %v380, %v509
    %v511 = vcombine.high %v510, %v510
    %v513 = vunpack.c.l.s4 1966171168
    %v514 = vunpack.c.0.s8 %v513
    %v515 = vlaneseq
    %v516 = vshrl.u32 %v515, 7
    %v517 = vsub.s32 %v514, %v516
    %v518 = vrot.slane %v510, %v517
    %v520 = vunpack.c.l.s4 1966171168
    %v521 = vunpack.c.0.s8 %v520
    %v522 = vlaneseq
    %v523 = vshrl.u32 %v522, 7
    %v524 = vsub.s32 %v521, %v523
    %v525 = vrot.slane %v511, %v524
    %v526 = vcombine.high %v518, %v518
    %v527 = vcombine.high %v525, %v525
    %v529 = vunpack.c.l.s4 1966171168
    %v530 = vunpack.c.0.s8 %v529
    %v531 = vlaneseq
    %v532 = vshrl.u32 %v531, 7
    %v533 = vsub.s32 %v530, %v532
    %v534 = vrot.slane %v381, %v533
    %v535 = vcombine.high %v534, %v534
    %v537 = vunpack.c.l.s4 1966171168
    %v538 = vunpack.c.0.s8 %v537
    %v539 = vlaneseq
    %v540 = vshrl.u32 %v539, 7
    %v541 = vsub.s32 %v538, %v540
    %v542 = vrot.slane %v534, %v541
    %v544 = vunpack.c.l.s4 1966171168
    %v545 = vunpack.c.0.s8 %v544
    %v546 = vlaneseq
    %v547 = vshrl.u32 %v546, 7
    %v548 = vsub.s32 %v545, %v547
    %v549 = vrot.slane %v535, %v548
    %v550 = vcombine.high %v542, %v542
    %v551 = vcombine.high %v549, %v549
    %v553 = vunpack.c.l.s4 1966171168
    %v554 = vunpack.c.0.s8 %v553
    %v555 = vlaneseq
    %v556 = vshrl.u32 %v555, 7
    %v557 = vsub.s32 %v554, %v556
    %v558 = vrot.slane %v382, %v557
    %v559 = vcombine.high %v558, %v558
    %v561 = vunpack.c.l.s4 1966171168
    %v562 = vunpack.c.0.s8 %v561
    %v563 = vlaneseq
    %v564 = vshrl.u32 %v563, 7
    %v565 = vsub.s32 %v562, %v564
    %v566 = vrot.slane %v558, %v565
    %v568 = vunpack.c.l.s4 1966171168
    %v569 = vunpack.c.0.s8 %v568
    %v570 = vlaneseq
    %v571 = vshrl.u32 %v570, 7
    %v572 = vsub.s32 %v569, %v571
    %v573 = vrot.slane %v559, %v572
    %v574 = vcombine.high %v566, %v566
    %v575 = vcombine.high %v573, %v573
    %v577 = vunpack.c.l.s4 1966171168
    %v578 = vunpack.c.0.s8 %v577
    %v579 = vlaneseq
    %v580 = vshrl.u32 %v579, 7
    %v581 = vsub.s32 %v578, %v580
    %v582 = vrot.slane %v383, %v581
    %v583 = vcombine.high %v582, %v582
    %v585 = vunpack.c.l.s4 1966171168
    %v586 = vunpack.c.0.s8 %v585
    %v587 = vlaneseq
    %v588 = vshrl.u32 %v587, 7
    %v589 = vsub.s32 %v586, %v588
    %v590 = vrot.slane %v582, %v589
    %v592 = vunpack.c.l.s4 1966171168
    %v593 = vunpack.c.0.s8 %v592
    %v594 = vlaneseq
    %v595 = vshrl.u32 %v594, 7
    %v596 = vsub.s32 %v593, %v595
    %v597 = vrot.slane %v583, %v596
    %v598 = vcombine.high %v590, %v590
    %v599 = vcombine.high %v597, %v597
    %v601 = vunpack.c.l.s4 1966171168
    %v602 = vunpack.c.0.s8 %v601
    %v603 = vlaneseq
    %v604 = vshrl.u32 %v603, 7
    %v605 = vsub.s32 %v602, %v604
    %v606 = vrot.slane %v384, %v605
    %v607 = vcombine.high %v606, %v606
    %v609 = vunpack.c.l.s4 1966171168
    %v610 = vunpack.c.0.s8 %v609
    %v611 = vlaneseq
    %v612 = vshrl.u32 %v611, 7
    %v613 = vsub.s32 %v610, %v612
    %v614 = vrot.slane %v606, %v613
    %v616 = vunpack.c.l.s4 1966171168
    %v617 = vunpack.c.0.s8 %v616
    %v618 = vlaneseq
    %v619 = vshrl.u32 %v618, 7
    %v620 = vsub.s32 %v617, %v619
    %v621 = vrot.slane %v607, %v620
    %v622 = vcombine.high %v614, %v614
    %v623 = vcombine.high %v621, %v621
    %v625 = vunpack.c.l.s4 1966171168
    %v626 = vunpack.c.0.s8 %v625
    %v627 = vlaneseq
    %v628 = vshrl.u32 %v627, 7
    %v629 = vsub.s32 %v626, %v628
    %v630 = vrot.slane %v385, %v629
    %v631 = vcombine.high %v630, %v630
    %v633 = vunpack.c.l.s4 1966171168
    %v634 = vunpack.c.0.s8 %v633
    %v635 = vlaneseq
    %v636 = vshrl.u32 %v635, 7
    %v637 = vsub.s32 %v634, %v636
    %v638 = vrot.slane %v630, %v637
    %v640 = vunpack.c.l.s4 1966171168
    %v641 = vunpack.c.0.s8 %v640
    %v642 = vlaneseq
    %v643 = vshrl.u32 %v642, 7
    %v644 = vsub.s32 %v641, %v643
    %v645 = vrot.slane %v631, %v644
    %v646 = vcombine.high %v638, %v638
    %v647 = vcombine.high %v645, %v645
    %v649 = vunpack.c.l.s4 1966171168
    %v650 = vunpack.c.0.s8 %v649
    %v651 = vlaneseq
    %v652 = vshrl.u32 %v651, 7
    %v653 = vsub.s32 %v650, %v652
    %v654 = vrot.slane %v386, %v653
    %v655 = vcombine.high %v654, %v654
    %v657 = vunpack.c.l.s4 1966171168
    %v658 = vunpack.c.0.s8 %v657
    %v659 = vlaneseq
    %v660 = vshrl.u32 %v659, 7
    %v661 = vsub.s32 %v658, %v660
    %v662 = vrot.slane %v654, %v661
    %v664 = vunpack.c.l.s4 1966171168
    %v665 = vunpack.c.0.s8 %v664
    %v666 = vlaneseq
    %v667 = vshrl.u32 %v666, 7
    %v668 = vsub.s32 %v665, %v667
    %v669 = vrot.slane %v655, %v668
    %v670 = vcombine.high %v662, %v662
    %v671 = vcombine.high %v669, %v669
    %v673 = vunpack.c.l.s4 1966171168
    %v674 = vunpack.c.0.s8 %v673
    %v675 = vlaneseq
    %v676 = vshrl.u32 %v675, 7
    %v677 = vsub.s32 %v674, %v676
    %v678 = vrot.slane %v387, %v677
    %v679 = vcombine.high %v678, %v678
    %v681 = vunpack.c.l.s4 1966171168
    %v682 = vunpack.c.0.s8 %v681
    %v683 = vlaneseq
    %v684 = vshrl.u32 %v683, 7
    %v685 = vsub.s32 %v682, %v684
    %v686 = vrot.slane %v678, %v685
    %v688 = vunpack.c.l.s4 1966171168
    %v689 = vunpack.c.0.s8 %v688
    %v690 = vlaneseq
    %v691 = vshrl.u32 %v690, 7
    %v692 = vsub.s32 %v689, %v691
    %v693 = vrot.slane %v679, %v692
    %v694 = vcombine.high %v686, %v686
    %v695 = vcombine.high %v693, %v693
    %v697 = vunpack.c.l.s4 1966171168
    %v698 = vunpack.c.0.s8 %v697
    %v699 = vlaneseq
    %v700 = vshrl.u32 %v699, 7
    %v701 = vsub.s32 %v698, %v700
    %v702 = vrot.slane %v388, %v701
    %v703 = vcombine.high %v702, %v702
    %v705 = vunpack.c.l.s4 1966171168
    %v706 = vunpack.c.0.s8 %v705
    %v707 = vlaneseq
    %v708 = vshrl.u32 %v707, 7
    %v709 = vsub.s32 %v706, %v708
    %v710 = vrot.slane %v702, %v709
    %v712 = vunpack.c.l.s4 1966171168
    %v713 = vunpack.c.0.s8 %v712
    %v714 = vlaneseq
    %v715 = vshrl.u32 %v714, 7
    %v716 = vsub.s32 %v713, %v715
    %v717 = vrot.slane %v703, %v716
    %v718 = vcombine.high %v710, %v710
    %v719 = vcombine.high %v717, %v717
    %v721 = vunpack.c.l.s4 1966171168
    %v722 = vunpack.c.0.s8 %v721
    %v723 = vlaneseq
    %v724 = vshrl.u32 %v723, 7
    %v725 = vsub.s32 %v722, %v724
    %v726 = vrot.slane %v389, %v725
    %v727 = vcombine.high %v726, %v726
    %v729 = vunpack.c.l.s4 1966171168
    %v730 = vunpack.c.0.s8 %v729
    %v731 = vlaneseq
    %v732 = vshrl.u32 %v731, 7
    %v733 = vsub.s32 %v730, %v732
    %v734 = vrot.slane %v726, %v733
    %v736 = vunpack.c.l.s4 1966171168
    %v737 = vunpack.c.0.s8 %v736
    %v738 = vlaneseq
    %v739 = vshrl.u32 %v738, 7
    %v740 = vsub.s32 %v737, %v739
    %v741 = vrot.slane %v727, %v740
    %v742 = vcombine.high %v734, %v734
    %v743 = vcombine.high %v741, %v741
    %v745 = vunpack.c.l.s4 1966171168
    %v746 = vunpack.c.0.s8 %v745
    %v747 = vlaneseq
    %v748 = vshrl.u32 %v747, 7
    %v749 = vsub.s32 %v746, %v748
    %v750 = vrot.slane %v390, %v749
    %v751 = vcombine.high %v750, %v750
    %v753 = vunpack.c.l.s4 1966171168
    %v754 = vunpack.c.0.s8 %v753
    %v755 = vlaneseq
    %v756 = vshrl.u32 %v755, 7
    %v757 = vsub.s32 %v754, %v756
    %v758 = vrot.slane %v750, %v757
    %v760 = vunpack.c.l.s4 1966171168
    %v761 = vunpack.c.0.s8 %v760
    %v762 = vlaneseq
    %v763 = vshrl.u32 %v762, 7
    %v764 = vsub.s32 %v761, %v763
    %v765 = vrot.slane %v751, %v764
    %v766 = vcombine.high %v758, %v758
    %v767 = vcombine.high %v765, %v765
    %v769 = vunpack.c.l.s4 1966171168
    %v770 = vunpack.c.0.s8 %v769
    %v771 = vlaneseq
    %v772 = vshrl.u32 %v771, 7
    %v773 = vsub.s32 %v770, %v772
    %v774 = vrot.slane %v391, %v773
    %v775 = vcombine.high %v774, %v774
    %v777 = vunpack.c.l.s4 1966171168
    %v778 = vunpack.c.0.s8 %v777
    %v779 = vlaneseq
    %v780 = vshrl.u32 %v779, 7
    %v781 = vsub.s32 %v778, %v780
    %v782 = vrot.slane %v774, %v781
    %v784 = vunpack.c.l.s4 1966171168
    %v785 = vunpack.c.0.s8 %v784
    %v786 = vlaneseq
    %v787 = vshrl.u32 %v786, 7
    %v788 = vsub.s32 %v785, %v787
    %v789 = vrot.slane %v775, %v788
    %v790 = vcombine.high %v782, %v782
    %v791 = vcombine.high %v789, %v789
    %v792 = vunpack.i.l.s16 %v422
    %v793 = vunpack.i.h.s16 %v422
    %v794 = vunpack.i.l.s16 %v429
    %v795 = vunpack.i.h.s16 %v429
    %v796 = vunpack.i.l.s16 %v430
    %v797 = vunpack.i.h.s16 %v430
    %v798 = vunpack.i.l.s16 %v431
    %v799 = vunpack.i.h.s16 %v431
    %v800 = vunpack.i.l.s16 %v446
    %v801 = vunpack.i.h.s16 %v446
    %v802 = vunpack.i.l.s16 %v453
    %v803 = vunpack.i.h.s16 %v453
    %v804 = vunpack.i.l.s16 %v454
    %v805 = vunpack.i.h.s16 %v454
    %v806 = vunpack.i.l.s16 %v455
    %v807 = vunpack.i.l.s16 %v470
    %v808 = vunpack.i.h.s16 %v470
    %v809 = vunpack.i.l.s16 %v477
    %v810 = vunpack.i.h.s16 %v477
    %v811 = vunpack.i.l.s16 %v478
    %v812 = vunpack.i.h.s16 %v478
    %v813 = vunpack.i.l.s16 %v479
    %v814 = vunpack.i.h.s16 %v479
    %v815 = vunpack.i.l.s16 %v494
    %v816 = vunpack.i.h.s16 %v494
    %v817 = vunpack.i.l.s16 %v501
    %v818 = vunpack.i.h.s16 %v501
    %v819 = vunpack.i.l.s16 %v502
    %v820 = vunpack.i.h.s16 %v502
    %v821 = vunpack.i.l.s16 %v503
    %v822 = vunpack.i.l.s16 %v518
    %v823 = vunpack.i.h.s16 %v518
    %v824 = vunpack.i.l.s16 %v525
    %v825 = vunpack.i.h.s16 %v525
    %v826 = vunpack.i.l.s16 %v526
    %v827 = vunpack.i.h.s16 %v526
    %v828 = vunpack.i.l.s16 %v527
    %v829 = vunpack.i.h.s16 %v527
    %v830 = vunpack.i.l.s16 %v542
    %v831 = vunpack.i.h.s16 %v542
    %v832 = vunpack.i.l.s16 %v549
    %v833 = vunpack.i.h.s16 %v549
    %v834 = vunpack.i.l.s16 %v550
    %v835 = vunpack.i.h.s16 %v550
    %v836 = vunpack.i.l.s16 %v551
    %v837 = vunpack.i.l.s16 %v566
    %v838 = vunpack.i.h.s16 %v566
    %v839 = vunpack.i.l.s16 %v573
    %v840 = vunpack.i.h.s16 %v573
    %v841 = vunpack.i.l.s16 %v574
    %v842 = vunpack.i.h.s16 %v574
    %v843 = vunpack.i.l.s16 %v575
    %v844 = vunpack.i.h.s16 %v575
    %v845 = vunpack.i.l.s16 %v590
    %v846 = vunpack.i.h.s16 %v590
    %v847 = vunpack.i.l.s16 %v597
    %v848 = vunpack.i.h.s16 %v597
    %v849 = vunpack.i.l.s16 %v598
    %v850 = vunpack.i.h.s16 %v598
    %v851 = vunpack.i.l.s16 %v599
    %v852 = vunpack.i.l.s16 %v614
    %v853 = vunpack.i.h.s16 %v614
    %v854 = vunpack.i.l.s16 %v621
    %v855 = vunpack.i.h.s16 %v621
    %v856 = vunpack.i.l.s16 %v622
    %v857 = vunpack.i.h.s16 %v622
    %v858 = vunpack.i.l.s16 %v623
    %v859 = vunpack.i.h.s16 %v623
    %v860 = vunpack.i.l.s16 %v638
    %v861 = vunpack.i.h.s16 %v638
    %v862 = vunpack.i.l.s16 %v645
    %v863 = vunpack.i.h.s16 %v645
    %v864 = vunpack.i.l.s16 %v646
    %v865 = vunpack.i.h.s16 %v646
    %v866 = vunpack.i.l.s16 %v647
    %v867 = vunpack.i.l.s16 %v662
    %v868 = vunpack.i.h.s16 %v662
    %v869 = vunpack.i.l.s16 %v669
    %v870 = vunpack.i.h.s16 %v669
    %v871 = vunpack.i.l.s16 %v670
    %v872 = vunpack.i.h.s16 %v670
    %v873 = vunpack.i.l.s16 %v671
    %v874 = vunpack.i.h.s16 %v671
    %v875 = vunpack.i.l.s16 %v686
    %v876 = vunpack.i.h.s16 %v686
    %v877 = vunpack.i.l.s16 %v693
    %v878 = vunpack.i.h.s16 %v693
    %v879 = vunpack.i.l.s16 %v694
    %v880 = vunpack.i.h.s16 %v694
    %v881 = vunpack.i.l.s16 %v695
    %v882 = vunpack.i.l.s16 %v710
    %v883 = vunpack.i.h.s16 %v710
    %v884 = vunpack.i.l.s16 %v717
    %v885 = vunpack.i.h.s16 %v717
    %v886 = vunpack.i.l.s16 %v718
    %v887 = vunpack.i.h.s16 %v718
    %v888 = vunpack.i.l.s16 %v719
    %v889 = vunpack.i.h.s16 %v719
    %v890 = vunpack.i.l.s16 %v734
    %v891 = vunpack.i.h.s16 %v734
    %v892 = vunpack.i.l.s16 %v741
    %v893 = vunpack.i.h.s16 %v741
    %v894 = vunpack.i.l.s16 %v742
    %v895 = vunpack.i.h.s16 %v742
    %v896 = vunpack.i.l.s16 %v743
    %v897 = vunpack.i.l.s16 %v758
    %v898 = vunpack.i.h.s16 %v758
    %v899 = vunpack.i.l.s16 %v765
    %v900 = vunpack.i.h.s16 %v765
    %v901 = vunpack.i.l.s16 %v766
    %v902 = vunpack.i.h.s16 %v766
    %v903 = vunpack.i.l.s16 %v767
    %v904 = vunpack.i.h.s16 %v767
    %v905 = vunpack.i.l.s16 %v782
    %v906 = vunpack.i.h.s16 %v782
    %v907 = vunpack.i.l.s16 %v789
    %v908 = vunpack.i.h.s16 %v789
    %v909 = vunpack.i.l.s16 %v790
    %v910 = vunpack.i.h.s16 %v790
    %v911 = vunpack.i.l.s16 %v791
    %v912 = vld [vmem:[#allocation5] sm:$0xf]
    %v913 = vld [vmem:[#allocation5 + $0x4] sm:$0xf]
    %v914 = vld [vmem:[#allocation5 + $0x8] sm:$0xf]
    %v915 = vld [vmem:[#allocation5 + $0xc] sm:$0xf]
    %v916 = vld [vmem:[#allocation5 + $0x10] sm:$0xf]
    %v917 = vld [vmem:[#allocation5 + $0x14] sm:$0xf]
    %v918 = vld [vmem:[#allocation5 + $0x18] sm:$0xf]
    %v919 = vld [vmem:[#allocation5 + $0x1c] sm:$0xf]
    %v920 = vld [vmem:[#allocation5 + $0x20] sm:$0xf]
    %v921 = vld [vmem:[#allocation5 + $0x24] sm:$0xf]
    %v922 = vld [vmem:[#allocation5 + $0x28] sm:$0xf]
    %v923 = vld [vmem:[#allocation5 + $0x2c] sm:$0xf]
    %v924 = vld [vmem:[#allocation5 + $0x30] sm:$0xf]
    %v925 = vld [vmem:[#allocation5 + $0x34] sm:$0xf]
    %v926 = vld [vmem:[#allocation5 + $0x38] sm:$0xf]
    %v927 = vld [vmem:[#allocation5 + $0x3c] sm:$0xf]
    %v928 = vld [vmem:[%s6] sm:$0x1]
    %v930 = vlaneseq
    %v931 = vshrl.u32 %v930, 7
    %v932 = vsub.s32 0, %v931
    %v933 = vrot.slane %v928, %v932
    %v935 = vpack.i.b16 %v793, %v792
    %v936 = vpack.i.b16 %v795, %v794
    %v937 = vpack.i.b16 %v797, %v796
    %v938 = vpack.i.b16 %v799, %v798
    %v939 = vpack.i.b16 %v801, %v800
    %v940 = vpack.i.b16 %v803, %v802
    %v941 = vpack.i.b16 %v805, %v804
    %v942 = vpack.i.b16 %v807, %v806
    %v943 = vpack.i.b16 %v809, %v808
    %v944 = vpack.i.b16 %v811, %v810
    %v945 = vpack.i.b16 %v813, %v812
    %v946 = vpack.i.b16 %v815, %v814
    %v947 = vpack.i.b16 %v817, %v816
    %v948 = vpack.i.b16 %v819, %v818
    %v949 = vpack.i.b16 %v821, %v820
    %v950 = vpack.i.b16 %v823, %v822
    %v951 = vpack.i.b16 %v825, %v824
    %v952 = vpack.i.b16 %v827, %v826
    %v953 = vpack.i.b16 %v829, %v828
    %v954 = vpack.i.b16 %v831, %v830
    %v955 = vpack.i.b16 %v833, %v832
    %v956 = vpack.i.b16 %v835, %v834
    %v957 = vpack.i.b16 %v837, %v836
    %v958 = vpack.i.b16 %v839, %v838
    %v959 = vpack.i.b16 %v841, %v840
    %v960 = vpack.i.b16 %v843, %v842
    %v961 = vpack.i.b16 %v845, %v844
    %v962 = vpack.i.b16 %v847, %v846
    %v963 = vpack.i.b16 %v849, %v848
    %v964 = vpack.i.b16 %v851, %v850
    %v965 = vpack.i.b16 %v853, %v852
    %v966 = vpack.i.b16 %v855, %v854
    %v967 = vpack.i.b16 %v857, %v856
    %v968 = vpack.i.b16 %v859, %v858
    %v969 = vpack.i.b16 %v861, %v860
    %v970 = vpack.i.b16 %v863, %v862
    %v971 = vpack.i.b16 %v865, %v864
    %v972 = vpack.i.b16 %v867, %v866
    %v973 = vpack.i.b16 %v869, %v868
    %v974 = vpack.i.b16 %v871, %v870
    %v975 = vpack.i.b16 %v873, %v872
    %v976 = vpack.i.b16 %v875, %v874
    %v977 = vpack.i.b16 %v877, %v876
    %v978 = vpack.i.b16 %v879, %v878
    %v979 = vpack.i.b16 %v881, %v880
    %v980 = vpack.i.b16 %v883, %v882
    %v981 = vpack.i.b16 %v885, %v884
    %v982 = vpack.i.b16 %v887, %v886
    %v983 = vpack.i.b16 %v889, %v888
    %v984 = vpack.i.b16 %v891, %v890
    %v985 = vpack.i.b16 %v893, %v892
    %v986 = vpack.i.b16 %v895, %v894
    %v987 = vpack.i.b16 %v897, %v896
    %v988 = vpack.i.b16 %v899, %v898
    %v989 = vpack.i.b16 %v901, %v900
    %v990 = vpack.i.b16 %v903, %v902
    %v991 = vpack.i.b16 %v905, %v904
    %v992 = vpack.i.b16 %v907, %v906
    %v993 = vpack.i.b16 %v909, %v908
    %v994 = vpack.i.b16 %v911, %v910
    %v995 = vcombine.low %v935, %v936
    %v996 = vcombine.low %v937, %v938
    %v997 = vcombine.low %v939, %v940
    %v998 = vcombine.low %v941, %v942
    %v1000 = vunpack.c.l.s4 1966171168
    %v1001 = vunpack.c.0.s8 %v1000
    %v1002 = vlaneseq
    %v1003 = vshrl.u32 %v1002, 7
    %v1004 = vsub.s32 %v1001, %v1003
    %v1005 = vrot.slane %v995, %v1004
    %v1007 = vunpack.c.l.s4 1966171168
    %v1008 = vunpack.c.0.s8 %v1007
    %v1009 = vlaneseq
    %v1010 = vshrl.u32 %v1009, 7
    %v1011 = vsub.s32 %v1008, %v1010
    %v1012 = vrot.slane %v996, %v1011
    %v1014 = vunpack.c.l.s4 1966171168
    %v1015 = vunpack.c.0.s8 %v1014
    %v1016 = vlaneseq
    %v1017 = vshrl.u32 %v1016, 7
    %v1018 = vsub.s32 %v1015, %v1017
    %v1019 = vrot.slane %v997, %v1018
    %v1021 = vunpack.c.l.s4 1966171168
    %v1022 = vunpack.c.0.s8 %v1021
    %v1023 = vlaneseq
    %v1024 = vshrl.u32 %v1023, 7
    %v1025 = vsub.s32 %v1022, %v1024
    %v1026 = vrot.slane %v998, %v1025
    %v1027 = vcombine.low %v1005, %v1012
    %v1028 = vcombine.low %v1019, %v1026
    %v1030 = vunpack.c.l.s4 1966171168
    %v1031 = vunpack.c.0.s8 %v1030
    %v1032 = vlaneseq
    %v1033 = vshrl.u32 %v1032, 7
    %v1034 = vsub.s32 %v1031, %v1033
    %v1035 = vrot.slane %v1027, %v1034
    %v1037 = vunpack.c.l.s4 1966171168
    %v1038 = vunpack.c.0.s8 %v1037
    %v1039 = vlaneseq
    %v1040 = vshrl.u32 %v1039, 7
    %v1041 = vsub.s32 %v1038, %v1040
    %v1042 = vrot.slane %v1028, %v1041
    %v1043 = vcombine.low %v1035, %v1042
    %v1044 = vcombine.low %v943, %v944
    %v1045 = vcombine.low %v945, %v946
    %v1046 = vcombine.low %v947, %v948
    %v1047 = vcombine.low %v949, %v950
    %v1049 = vunpack.c.l.s4 1966171168
    %v1050 = vunpack.c.0.s8 %v1049
    %v1051 = vlaneseq
    %v1052 = vshrl.u32 %v1051, 7
    %v1053 = vsub.s32 %v1050, %v1052
    %v1054 = vrot.slane %v1044, %v1053
    %v1056 = vunpack.c.l.s4 1966171168
    %v1057 = vunpack.c.0.s8 %v1056
    %v1058 = vlaneseq
    %v1059 = vshrl.u32 %v1058, 7
    %v1060 = vsub.s32 %v1057, %v1059
    %v1061 = vrot.slane %v1045, %v1060
    %v1063 = vunpack.c.l.s4 1966171168
    %v1064 = vunpack.c.0.s8 %v1063
    %v1065 = vlaneseq
    %v1066 = vshrl.u32 %v1065, 7
    %v1067 = vsub.s32 %v1064, %v1066
    %v1068 = vrot.slane %v1046, %v1067
    %v1070 = vunpack.c.l.s4 1966171168
    %v1071 = vunpack.c.0.s8 %v1070
    %v1072 = vlaneseq
    %v1073 = vshrl.u32 %v1072, 7
    %v1074 = vsub.s32 %v1071, %v1073
    %v1075 = vrot.slane %v1047, %v1074
    %v1076 = vcombine.low %v1054, %v1061
    %v1077 = vcombine.low %v1068, %v1075
    %v1079 = vunpack.c.l.s4 1966171168
    %v1080 = vunpack.c.0.s8 %v1079
    %v1081 = vlaneseq
    %v1082 = vshrl.u32 %v1081, 7
    %v1083 = vsub.s32 %v1080, %v1082
    %v1084 = vrot.slane %v1076, %v1083
    %v1086 = vunpack.c.l.s4 1966171168
    %v1087 = vunpack.c.0.s8 %v1086
    %v1088 = vlaneseq
    %v1089 = vshrl.u32 %v1088, 7
    %v1090 = vsub.s32 %v1087, %v1089
    %v1091 = vrot.slane %v1077, %v1090
    %v1092 = vcombine.low %v1084, %v1091
    %v1093 = vcombine.low %v951, %v952
    %v1094 = vcombine.low %v953, %v954
    %v1095 = vcombine.low %v955, %v956
    %v1096 = vcombine.low %v957, %v958
    %v1098 = vunpack.c.l.s4 1966171168
    %v1099 = vunpack.c.0.s8 %v1098
    %v1100 = vlaneseq
    %v1101 = vshrl.u32 %v1100, 7
    %v1102 = vsub.s32 %v1099, %v1101
    %v1103 = vrot.slane %v1093, %v1102
    %v1105 = vunpack.c.l.s4 1966171168
    %v1106 = vunpack.c.0.s8 %v1105
    %v1107 = vlaneseq
    %v1108 = vshrl.u32 %v1107, 7
    %v1109 = vsub.s32 %v1106, %v1108
    %v1110 = vrot.slane %v1094, %v1109
    %v1112 = vunpack.c.l.s4 1966171168
    %v1113 = vunpack.c.0.s8 %v1112
    %v1114 = vlaneseq
    %v1115 = vshrl.u32 %v1114, 7
    %v1116 = vsub.s32 %v1113, %v1115
    %v1117 = vrot.slane %v1095, %v1116
    %v1119 = vunpack.c.l.s4 1966171168
    %v1120 = vunpack.c.0.s8 %v1119
    %v1121 = vlaneseq
    %v1122 = vshrl.u32 %v1121, 7
    %v1123 = vsub.s32 %v1120, %v1122
    %v1124 = vrot.slane %v1096, %v1123
    %v1125 = vcombine.low %v1103, %v1110
    %v1126 = vcombine.low %v1117, %v1124
    %v1128 = vunpack.c.l.s4 1966171168
    %v1129 = vunpack.c.0.s8 %v1128
    %v1130 = vlaneseq
    %v1131 = vshrl.u32 %v1130, 7
    %v1132 = vsub.s32 %v1129, %v1131
    %v1133 = vrot.slane %v1125, %v1132
    %v1135 = vunpack.c.l.s4 1966171168
    %v1136 = vunpack.c.0.s8 %v1135
    %v1137 = vlaneseq
    %v1138 = vshrl.u32 %v1137, 7
    %v1139 = vsub.s32 %v1136, %v1138
    %v1140 = vrot.slane %v1126, %v1139
    %v1141 = vcombine.low %v1133, %v1140
    %v1142 = vcombine.low %v959, %v960
    %v1143 = vcombine.low %v961, %v962
    %v1144 = vcombine.low %v963, %v964
    %v1145 = vcombine.low %v965, %v966
    %v1147 = vunpack.c.l.s4 1966171168
    %v1148 = vunpack.c.0.s8 %v1147
    %v1149 = vlaneseq
    %v1150 = vshrl.u32 %v1149, 7
    %v1151 = vsub.s32 %v1148, %v1150
    %v1152 = vrot.slane %v1142, %v1151
    %v1154 = vunpack.c.l.s4 1966171168
    %v1155 = vunpack.c.0.s8 %v1154
    %v1156 = vlaneseq
    %v1157 = vshrl.u32 %v1156, 7
    %v1158 = vsub.s32 %v1155, %v1157
    %v1159 = vrot.slane %v1143, %v1158
    %v1161 = vunpack.c.l.s4 1966171168
    %v1162 = vunpack.c.0.s8 %v1161
    %v1163 = vlaneseq
    %v1164 = vshrl.u32 %v1163, 7
    %v1165 = vsub.s32 %v1162, %v1164
    %v1166 = vrot.slane %v1144, %v1165
    %v1168 = vunpack.c.l.s4 1966171168
    %v1169 = vunpack.c.0.s8 %v1168
    %v1170 = vlaneseq
    %v1171 = vshrl.u32 %v1170, 7
    %v1172 = vsub.s32 %v1169, %v1171
    %v1173 = vrot.slane %v1145, %v1172
    %v1174 = vcombine.low %v1152, %v1159
    %v1175 = vcombine.low %v1166, %v1173
    %v1177 = vunpack.c.l.s4 1966171168
    %v1178 = vunpack.c.0.s8 %v1177
    %v1179 = vlaneseq
    %v1180 = vshrl.u32 %v1179, 7
    %v1181 = vsub.s32 %v1178, %v1180
    %v1182 = vrot.slane %v1174, %v1181
    %v1184 = vunpack.c.l.s4 1966171168
    %v1185 = vunpack.c.0.s8 %v1184
    %v1186 = vlaneseq
    %v1187 = vshrl.u32 %v1186, 7
    %v1188 = vsub.s32 %v1185, %v1187
    %v1189 = vrot.slane %v1175, %v1188
    %v1190 = vcombine.low %v1182, %v1189
    %v1191 = vcombine.low %v967, %v968
    %v1192 = vcombine.low %v969, %v970
    %v1193 = vcombine.low %v971, %v972
    %v1194 = vcombine.low %v973, %v974
    %v1196 = vunpack.c.l.s4 1966171168
    %v1197 = vunpack.c.0.s8 %v1196
    %v1198 = vlaneseq
    %v1199 = vshrl.u32 %v1198, 7
    %v1200 = vsub.s32 %v1197, %v1199
    %v1201 = vrot.slane %v1191, %v1200
    %v1203 = vunpack.c.l.s4 1966171168
    %v1204 = vunpack.c.0.s8 %v1203
    %v1205 = vlaneseq
    %v1206 = vshrl.u32 %v1205, 7
    %v1207 = vsub.s32 %v1204, %v1206
    %v1208 = vrot.slane %v1192, %v1207
    %v1210 = vunpack.c.l.s4 1966171168
    %v1211 = vunpack.c.0.s8 %v1210
    %v1212 = vlaneseq
    %v1213 = vshrl.u32 %v1212, 7
    %v1214 = vsub.s32 %v1211, %v1213
    %v1215 = vrot.slane %v1193, %v1214
    %v1217 = vunpack.c.l.s4 1966171168
    %v1218 = vunpack.c.0.s8 %v1217
    %v1219 = vlaneseq
    %v1220 = vshrl.u32 %v1219, 7
    %v1221 = vsub.s32 %v1218, %v1220
    %v1222 = vrot.slane %v1194, %v1221
    %v1223 = vcombine.low %v1201, %v1208
    %v1224 = vcombine.low %v1215, %v1222
    %v1226 = vunpack.c.l.s4 1966171168
    %v1227 = vunpack.c.0.s8 %v1226
    %v1228 = vlaneseq
    %v1229 = vshrl.u32 %v1228, 7
    %v1230 = vsub.s32 %v1227, %v1229
    %v1231 = vrot.slane %v1223, %v1230
    %v1233 = vunpack.c.l.s4 1966171168
    %v1234 = vunpack.c.0.s8 %v1233
    %v1235 = vlaneseq
    %v1236 = vshrl.u32 %v1235, 7
    %v1237 = vsub.s32 %v1234, %v1236
    %v1238 = vrot.slane %v1224, %v1237
    %v1239 = vcombine.low %v1231, %v1238
    %v1240 = vcombine.low %v975, %v976
    %v1241 = vcombine.low %v977, %v978
    %v1242 = vcombine.low %v979, %v980
    %v1243 = vcombine.low %v981, %v982
    %v1245 = vunpack.c.l.s4 1966171168
    %v1246 = vunpack.c.0.s8 %v1245
    %v1247 = vlaneseq
    %v1248 = vshrl.u32 %v1247, 7
    %v1249 = vsub.s32 %v1246, %v1248
    %v1250 = vrot.slane %v1240, %v1249
    %v1252 = vunpack.c.l.s4 1966171168
    %v1253 = vunpack.c.0.s8 %v1252
    %v1254 = vlaneseq
    %v1255 = vshrl.u32 %v1254, 7
    %v1256 = vsub.s32 %v1253, %v1255
    %v1257 = vrot.slane %v1241, %v1256
    %v1259 = vunpack.c.l.s4 1966171168
    %v1260 = vunpack.c.0.s8 %v1259
    %v1261 = vlaneseq
    %v1262 = vshrl.u32 %v1261, 7
    %v1263 = vsub.s32 %v1260, %v1262
    %v1264 = vrot.slane %v1242, %v1263
    %v1266 = vunpack.c.l.s4 1966171168
    %v1267 = vunpack.c.0.s8 %v1266
    %v1268 = vlaneseq
    %v1269 = vshrl.u32 %v1268, 7
    %v1270 = vsub.s32 %v1267, %v1269
    %v1271 = vrot.slane %v1243, %v1270
    %v1272 = vcombine.low %v1250, %v1257
    %v1273 = vcombine.low %v1264, %v1271
    %v1275 = vunpack.c.l.s4 1966171168
    %v1276 = vunpack.c.0.s8 %v1275
    %v1277 = vlaneseq
    %v1278 = vshrl.u32 %v1277, 7
    %v1279 = vsub.s32 %v1276, %v1278
    %v1280 = vrot.slane %v1272, %v1279
    %v1282 = vunpack.c.l.s4 1966171168
    %v1283 = vunpack.c.0.s8 %v1282
    %v1284 = vlaneseq
    %v1285 = vshrl.u32 %v1284, 7
    %v1286 = vsub.s32 %v1283, %v1285
    %v1287 = vrot.slane %v1273, %v1286
    %v1288 = vcombine.low %v1280, %v1287
    %v1289 = vcombine.low %v983, %v984
    %v1290 = vcombine.low %v985, %v986
    %v1291 = vcombine.low %v987, %v988
    %v1292 = vcombine.low %v989, %v990
    %v1294 = vunpack.c.l.s4 1966171168
    %v1295 = vunpack.c.0.s8 %v1294
    %v1296 = vlaneseq
    %v1297 = vshrl.u32 %v1296, 7
    %v1298 = vsub.s32 %v1295, %v1297
    %v1299 = vrot.slane %v1289, %v1298
    %v1301 = vunpack.c.l.s4 1966171168
    %v1302 = vunpack.c.0.s8 %v1301
    %v1303 = vlaneseq
    %v1304 = vshrl.u32 %v1303, 7
    %v1305 = vsub.s32 %v1302, %v1304
    %v1306 = vrot.slane %v1290, %v1305
    %v1308 = vunpack.c.l.s4 1966171168
    %v1309 = vunpack.c.0.s8 %v1308
    %v1310 = vlaneseq
    %v1311 = vshrl.u32 %v1310, 7
    %v1312 = vsub.s32 %v1309, %v1311
    %v1313 = vrot.slane %v1291, %v1312
    %v1315 = vunpack.c.l.s4 1966171168
    %v1316 = vunpack.c.0.s8 %v1315
    %v1317 = vlaneseq
    %v1318 = vshrl.u32 %v1317, 7
    %v1319 = vsub.s32 %v1316, %v1318
    %v1320 = vrot.slane %v1292, %v1319
    %v1321 = vcombine.low %v1299, %v1306
    %v1322 = vcombine.low %v1313, %v1320
    %v1324 = vunpack.c.l.s4 1966171168
    %v1325 = vunpack.c.0.s8 %v1324
    %v1326 = vlaneseq
    %v1327 = vshrl.u32 %v1326, 7
    %v1328 = vsub.s32 %v1325, %v1327
    %v1329 = vrot.slane %v1321, %v1328
    %v1331 = vunpack.c.l.s4 1966171168
    %v1332 = vunpack.c.0.s8 %v1331
    %v1333 = vlaneseq
    %v1334 = vshrl.u32 %v1333, 7
    %v1335 = vsub.s32 %v1332, %v1334
    %v1336 = vrot.slane %v1322, %v1335
    %v1337 = vcombine.low %v1329, %v1336
    %v1338 = vcombine.low %v991, %v992
    %v1339 = vcombine.low %v993, %v994
    %v1341 = vunpack.c.l.s4 1966171168
    %v1342 = vunpack.c.0.s8 %v1341
    %v1343 = vlaneseq
    %v1344 = vshrl.u32 %v1343, 7
    %v1345 = vsub.s32 %v1342, %v1344
    %v1346 = vrot.slane %v1338, %v1345
    %v1348 = vunpack.c.l.s4 1966171168
    %v1349 = vunpack.c.0.s8 %v1348
    %v1350 = vlaneseq
    %v1351 = vshrl.u32 %v1350, 7
    %v1352 = vsub.s32 %v1349, %v1351
    %v1353 = vrot.slane %v1339, %v1352
    %v1354 = vcombine.low %v1346, %v1353
    %v1356 = vunpack.c.l.s4 1966171168
    %v1357 = vunpack.c.0.s8 %v1356
    %v1358 = vlaneseq
    %v1359 = vshrl.u32 %v1358, 7
    %v1360 = vsub.s32 %v1357, %v1359
    %v1361 = vrot.slane %v1354, %v1360
    %v1386 = vunpack.c.l.b16 %v912
    %v1387 = vunpack.c.l.b16 %v913
    %v1388 = vunpack.c.l.b16 %v914
    %v1389 = vunpack.c.l.b16 %v915
    %v1390 = vunpack.c.l.b16 %v916
    %v1391 = vunpack.c.l.b16 %v917
    %v1392 = vunpack.c.l.b16 %v918
    %v1393 = vunpack.c.l.b16 %v919
    %v1394 = vunpack.c.l.b16 %v920
    %v1395 = vunpack.c.l.b16 %v921
    %v1396 = vunpack.c.l.b16 %v922
    %v1397 = vunpack.c.l.b16 %v923
    %v1398 = vunpack.c.l.b16 %v924
    %v1399 = vunpack.c.l.b16 %v925
    %v1400 = vunpack.c.l.b16 %v926
    %v1401 = vunpack.c.l.b16 %v927
    %v1402 = vpack.c.b16 %v1387, %v1386
    %v1403 = vpack.c.b16 %v1389, %v1388
    %v1404 = vpack.c.b16 %v1391, %v1390
    %v1405 = vpack.c.b16 %v1393, %v1392
    %v1406 = vpack.c.b16 %v1395, %v1394
    %v1407 = vpack.c.b16 %v1397, %v1396
    %v1408 = vpack.c.b16 %v1399, %v1398
    %v1409 = vpack.c.b16 %v1401, %v1400
    %1418 = vmatprep.subr.bf16.mxu0 0
    %1419 = vmatpush1.bf16.msra.mxu0 %v1409
    %1420 = vmatprep.subr.bf16.mxu0 0
    %1421 = vmatpush1.bf16.msra.mxu0 %v1408
    %1422 = vmatprep.subr.bf16.mxu0 0
    %1423 = vmatpush1.bf16.msra.mxu0 %v1407
    %1424 = vmatprep.subr.bf16.mxu0 0
    %1425 = vmatpush1.bf16.msra.mxu0 %v1406
    %1426 = vmatprep.subr.bf16.mxu0 0
    %1427 = vmatpush1.bf16.msra.mxu0 %v1405
    %1428 = vmatprep.subr.bf16.mxu0 0
    %1429 = vmatpush1.bf16.msra.mxu0 %v1404
    %1430 = vmatprep.subr.bf16.mxu0 0
    %1431 = vmatpush1.bf16.msra.mxu0 %v1403
    %1432 = vmatprep.subr.bf16.mxu0 0
    %1433 = vmatpush1.bf16.msra.mxu0 %v1402
    %1434 = vmatprep.subr.bf16.mxu0 0
    %1435 = vmatpush2.bf16.msra.mxu0 0
    %1436 = vmatprep.subr.bf16.mxu0 0
    %1437 = vmatpush2.bf16.msra.mxu0 0
    %1438 = vmatprep.subr.bf16.mxu0 0
    %1439 = vmatpush2.bf16.msra.mxu0 0
    %1440 = vmatprep.subr.bf16.mxu0 0
    %1441 = vmatpush2.bf16.msra.mxu0 0
    %1442 = vmatprep.subr.bf16.mxu0 0
    %1443 = vmatpush2.bf16.msra.mxu0 0
    %1444 = vmatprep.subr.bf16.mxu0 0
    %1445 = vmatpush2.bf16.msra.mxu0 0
    %1446 = vmatprep.subr.bf16.mxu0 0
    %1447 = vmatpush2.bf16.msra.mxu0 0
    %1448 = vmatprep.subr.bf16.mxu0 0
    %1449 = vmatpush2.bf16.msra.mxu0 0
    %1450 = vmatprep.mubr.bf16.mxu0 0
    %1451 = vmatmul.mubr.bf16.gmra.mxu0 %v1043
    %v1452 = vpop.f32.mrf.mxu0
    %v1453 = vadd.f32 %v933, %v1452
    %v1454 = vpop.f32.mrf.mxu0
    %v1455 = vpop.f32.mrf.mxu0
    %v1456 = vadd.f32 %v933, %v1455
    %v1457 = vpop.f32.mrf.mxu0
    %1458 = vmatprep.mubr.bf16.mxu0 0
    %1459 = vmatmul.mubr.bf16.gmra.mxu0 %v1092
    %v1460 = vpop.f32.mrf.mxu0
    %v1461 = vadd.f32 %v933, %v1460
    %v1462 = vpop.f32.mrf.mxu0
    %v1463 = vpop.f32.mrf.mxu0
    %v1464 = vadd.f32 %v933, %v1463
    %v1465 = vpop.f32.mrf.mxu0
    %1466 = vmatprep.mubr.bf16.mxu0 0
    %1467 = vmatmul.mubr.bf16.gmra.mxu0 %v1141
    %v1468 = vpop.f32.mrf.mxu0
    %v1469 = vadd.f32 %v933, %v1468
    %v1470 = vpop.f32.mrf.mxu0
    %v1471 = vpop.f32.mrf.mxu0
    %v1472 = vadd.f32 %v933, %v1471
    %v1473 = vpop.f32.mrf.mxu0
    %1474 = vmatprep.mubr.bf16.mxu0 0
    %1475 = vmatmul.mubr.bf16.gmra.mxu0 %v1190
    %v1476 = vpop.f32.mrf.mxu0
    %v1477 = vadd.f32 %v933, %v1476
    %v1478 = vpop.f32.mrf.mxu0
    %v1479 = vpop.f32.mrf.mxu0
    %v1480 = vadd.f32 %v933, %v1479
    %v1481 = vpop.f32.mrf.mxu0
    %1482 = vmatprep.mubr.bf16.mxu0 0
    %1483 = vmatmul.mubr.bf16.gmra.mxu0 %v1239
    %v1484 = vpop.f32.mrf.mxu0
    %v1485 = vadd.f32 %v933, %v1484
    %v1486 = vpop.f32.mrf.mxu0
    %v1487 = vpop.f32.mrf.mxu0
    %v1488 = vadd.f32 %v933, %v1487
    %v1489 = vpop.f32.mrf.mxu0
    %1490 = vmatprep.mubr.bf16.mxu0 0
    %1491 = vmatmul.mubr.bf16.gmra.mxu0 %v1288
    %v1492 = vpop.f32.mrf.mxu0
    %v1493 = vadd.f32 %v933, %v1492
    %v1494 = vpop.f32.mrf.mxu0
    %v1495 = vpop.f32.mrf.mxu0
    %v1496 = vadd.f32 %v933, %v1495
    %v1497 = vpop.f32.mrf.mxu0
    %1498 = vmatprep.mubr.bf16.mxu0 0
    %1499 = vmatmul.mubr.bf16.gmra.mxu0 %v1337
    %v1500 = vpop.f32.mrf.mxu0
    %v1501 = vadd.f32 %v933, %v1500
    %v1502 = vpop.f32.mrf.mxu0
    %v1503 = vpop.f32.mrf.mxu0
    %v1504 = vadd.f32 %v933, %v1503
    %v1505 = vpop.f32.mrf.mxu0
    %1506 = vmatprep.mubr.bf16.mxu0 0
    %1507 = vmatmul.mubr.bf16.gmra.mxu0 %v1361
    %v1508 = vpop.f32.mrf.mxu0
    %v1509 = vadd.f32 %v933, %v1508
    %v1510 = vpop.f32.mrf.mxu0
    %v1511 = vpop.f32.mrf.mxu0
    %v1512 = vpop.f32.mrf.mxu0
    %1513 = vdwg.mxu0
    %v1514 = vmax.f32 %v1453, 0.0
    %v1515 = vmax.f32 %v1456, 0.0
    %v1516 = vmax.f32 %v1461, 0.0
    %v1517 = vmax.f32 %v1464, 0.0
    %v1518 = vmax.f32 %v1469, 0.0
    %v1519 = vmax.f32 %v1472, 0.0
    %v1520 = vmax.f32 %v1477, 0.0
    %v1521 = vmax.f32 %v1480, 0.0
    %v1522 = vmax.f32 %v1485, 0.0
    %v1523 = vmax.f32 %v1488, 0.0
    %v1524 = vmax.f32 %v1493, 0.0
    %v1525 = vmax.f32 %v1496, 0.0
    %v1526 = vmax.f32 %v1501, 0.0
    %v1527 = vmax.f32 %v1504, 0.0
    %v1528 = vmax.f32 %v1509, 0.0
    %v1544 = vcombine.high %v1514, %v1514
    %v1546 = vunpack.c.l.s4 1966171168
    %v1547 = vunpack.c.0.s8 %v1546
    %v1548 = vlaneseq
    %v1549 = vshrl.u32 %v1548, 7
    %v1550 = vsub.s32 %v1547, %v1549
    %v1551 = vrot.slane %v1514, %v1550
    %v1553 = vunpack.c.l.s4 1966171168
    %v1554 = vunpack.c.0.s8 %v1553
    %v1555 = vlaneseq
    %v1556 = vshrl.u32 %v1555, 7
    %v1557 = vsub.s32 %v1554, %v1556
    %v1558 = vrot.slane %v1544, %v1557
    %v1559 = vcombine.high %v1551, %v1551
    %v1560 = vcombine.high %v1558, %v1558
    %v1562 = vunpack.c.l.s4 1966171168
    %v1563 = vunpack.c.0.s8 %v1562
    %v1564 = vlaneseq
    %v1565 = vshrl.u32 %v1564, 7
    %v1566 = vsub.s32 %v1563, %v1565
    %v1567 = vrot.slane %v1551, %v1566
    %v1569 = vunpack.c.l.s4 1966171168
    %v1570 = vunpack.c.0.s8 %v1569
    %v1571 = vlaneseq
    %v1572 = vshrl.u32 %v1571, 7
    %v1573 = vsub.s32 %v1570, %v1572
    %v1574 = vrot.slane %v1558, %v1573
    %v1576 = vunpack.c.l.s4 1966171168
    %v1577 = vunpack.c.0.s8 %v1576
    %v1578 = vlaneseq
    %v1579 = vshrl.u32 %v1578, 7
    %v1580 = vsub.s32 %v1577, %v1579
    %v1581 = vrot.slane %v1559, %v1580
    %v1583 = vunpack.c.l.s4 1966171168
    %v1584 = vunpack.c.0.s8 %v1583
    %v1585 = vlaneseq
    %v1586 = vshrl.u32 %v1585, 7
    %v1587 = vsub.s32 %v1584, %v1586
    %v1588 = vrot.slane %v1560, %v1587
    %v1589 = vcombine.high %v1567, %v1567
    %v1590 = vcombine.high %v1574, %v1574
    %v1591 = vcombine.high %v1581, %v1581
    %v1592 = vcombine.high %v1588, %v1588
    %v1593 = vcombine.high %v1515, %v1515
    %v1595 = vunpack.c.l.s4 1966171168
    %v1596 = vunpack.c.0.s8 %v1595
    %v1597 = vlaneseq
    %v1598 = vshrl.u32 %v1597, 7
    %v1599 = vsub.s32 %v1596, %v1598
    %v1600 = vrot.slane %v1515, %v1599
    %v1602 = vunpack.c.l.s4 1966171168
    %v1603 = vunpack.c.0.s8 %v1602
    %v1604 = vlaneseq
    %v1605 = vshrl.u32 %v1604, 7
    %v1606 = vsub.s32 %v1603, %v1605
    %v1607 = vrot.slane %v1593, %v1606
    %v1608 = vcombine.high %v1600, %v1600
    %v1609 = vcombine.high %v1607, %v1607
    %v1611 = vunpack.c.l.s4 1966171168
    %v1612 = vunpack.c.0.s8 %v1611
    %v1613 = vlaneseq
    %v1614 = vshrl.u32 %v1613, 7
    %v1615 = vsub.s32 %v1612, %v1614
    %v1616 = vrot.slane %v1600, %v1615
    %v1618 = vunpack.c.l.s4 1966171168
    %v1619 = vunpack.c.0.s8 %v1618
    %v1620 = vlaneseq
    %v1621 = vshrl.u32 %v1620, 7
    %v1622 = vsub.s32 %v1619, %v1621
    %v1623 = vrot.slane %v1607, %v1622
    %v1625 = vunpack.c.l.s4 1966171168
    %v1626 = vunpack.c.0.s8 %v1625
    %v1627 = vlaneseq
    %v1628 = vshrl.u32 %v1627, 7
    %v1629 = vsub.s32 %v1626, %v1628
    %v1630 = vrot.slane %v1608, %v1629
    %v1632 = vunpack.c.l.s4 1966171168
    %v1633 = vunpack.c.0.s8 %v1632
    %v1634 = vlaneseq
    %v1635 = vshrl.u32 %v1634, 7
    %v1636 = vsub.s32 %v1633, %v1635
    %v1637 = vrot.slane %v1609, %v1636
    %v1638 = vcombine.high %v1616, %v1616
    %v1639 = vcombine.high %v1623, %v1623
    %v1640 = vcombine.high %v1630, %v1630
    %v1641 = vcombine.high %v1637, %v1637
    %v1642 = vcombine.high %v1516, %v1516
    %v1644 = vunpack.c.l.s4 1966171168
    %v1645 = vunpack.c.0.s8 %v1644
    %v1646 = vlaneseq
    %v1647 = vshrl.u32 %v1646, 7
    %v1648 = vsub.s32 %v1645, %v1647
    %v1649 = vrot.slane %v1516, %v1648
    %v1651 = vunpack.c.l.s4 1966171168
    %v1652 = vunpack.c.0.s8 %v1651
    %v1653 = vlaneseq
    %v1654 = vshrl.u32 %v1653, 7
    %v1655 = vsub.s32 %v1652, %v1654
    %v1656 = vrot.slane %v1642, %v1655
    %v1657 = vcombine.high %v1649, %v1649
    %v1658 = vcombine.high %v1656, %v1656
    %v1660 = vunpack.c.l.s4 1966171168
    %v1661 = vunpack.c.0.s8 %v1660
    %v1662 = vlaneseq
    %v1663 = vshrl.u32 %v1662, 7
    %v1664 = vsub.s32 %v1661, %v1663
    %v1665 = vrot.slane %v1649, %v1664
    %v1667 = vunpack.c.l.s4 1966171168
    %v1668 = vunpack.c.0.s8 %v1667
    %v1669 = vlaneseq
    %v1670 = vshrl.u32 %v1669, 7
    %v1671 = vsub.s32 %v1668, %v1670
    %v1672 = vrot.slane %v1656, %v1671
    %v1674 = vunpack.c.l.s4 1966171168
    %v1675 = vunpack.c.0.s8 %v1674
    %v1676 = vlaneseq
    %v1677 = vshrl.u32 %v1676, 7
    %v1678 = vsub.s32 %v1675, %v1677
    %v1679 = vrot.slane %v1657, %v1678
    %v1681 = vunpack.c.l.s4 1966171168
    %v1682 = vunpack.c.0.s8 %v1681
    %v1683 = vlaneseq
    %v1684 = vshrl.u32 %v1683, 7
    %v1685 = vsub.s32 %v1682, %v1684
    %v1686 = vrot.slane %v1658, %v1685
    %v1687 = vcombine.high %v1665, %v1665
    %v1688 = vcombine.high %v1672, %v1672
    %v1689 = vcombine.high %v1679, %v1679
    %v1690 = vcombine.high %v1686, %v1686
    %v1691 = vcombine.high %v1517, %v1517
    %v1693 = vunpack.c.l.s4 1966171168
    %v1694 = vunpack.c.0.s8 %v1693
    %v1695 = vlaneseq
    %v1696 = vshrl.u32 %v1695, 7
    %v1697 = vsub.s32 %v1694, %v1696
    %v1698 = vrot.slane %v1517, %v1697
    %v1700 = vunpack.c.l.s4 1966171168
    %v1701 = vunpack.c.0.s8 %v1700
    %v1702 = vlaneseq
    %v1703 = vshrl.u32 %v1702, 7
    %v1704 = vsub.s32 %v1701, %v1703
    %v1705 = vrot.slane %v1691, %v1704
    %v1706 = vcombine.high %v1698, %v1698
    %v1707 = vcombine.high %v1705, %v1705
    %v1709 = vunpack.c.l.s4 1966171168
    %v1710 = vunpack.c.0.s8 %v1709
    %v1711 = vlaneseq
    %v1712 = vshrl.u32 %v1711, 7
    %v1713 = vsub.s32 %v1710, %v1712
    %v1714 = vrot.slane %v1698, %v1713
    %v1716 = vunpack.c.l.s4 1966171168
    %v1717 = vunpack.c.0.s8 %v1716
    %v1718 = vlaneseq
    %v1719 = vshrl.u32 %v1718, 7
    %v1720 = vsub.s32 %v1717, %v1719
    %v1721 = vrot.slane %v1705, %v1720
    %v1723 = vunpack.c.l.s4 1966171168
    %v1724 = vunpack.c.0.s8 %v1723
    %v1725 = vlaneseq
    %v1726 = vshrl.u32 %v1725, 7
    %v1727 = vsub.s32 %v1724, %v1726
    %v1728 = vrot.slane %v1706, %v1727
    %v1730 = vunpack.c.l.s4 1966171168
    %v1731 = vunpack.c.0.s8 %v1730
    %v1732 = vlaneseq
    %v1733 = vshrl.u32 %v1732, 7
    %v1734 = vsub.s32 %v1731, %v1733
    %v1735 = vrot.slane %v1707, %v1734
    %v1736 = vcombine.high %v1714, %v1714
    %v1737 = vcombine.high %v1721, %v1721
    %v1738 = vcombine.high %v1728, %v1728
    %v1739 = vcombine.high %v1735, %v1735
    %v1740 = vcombine.high %v1518, %v1518
    %v1742 = vunpack.c.l.s4 1966171168
    %v1743 = vunpack.c.0.s8 %v1742
    %v1744 = vlaneseq
    %v1745 = vshrl.u32 %v1744, 7
    %v1746 = vsub.s32 %v1743, %v1745
    %v1747 = vrot.slane %v1518, %v1746
    %v1749 = vunpack.c.l.s4 1966171168
    %v1750 = vunpack.c.0.s8 %v1749
    %v1751 = vlaneseq
    %v1752 = vshrl.u32 %v1751, 7
    %v1753 = vsub.s32 %v1750, %v1752
    %v1754 = vrot.slane %v1740, %v1753
    %v1755 = vcombine.high %v1747, %v1747
    %v1756 = vcombine.high %v1754, %v1754
    %v1758 = vunpack.c.l.s4 1966171168
    %v1759 = vunpack.c.0.s8 %v1758
    %v1760 = vlaneseq
    %v1761 = vshrl.u32 %v1760, 7
    %v1762 = vsub.s32 %v1759, %v1761
    %v1763 = vrot.slane %v1747, %v1762
    %v1765 = vunpack.c.l.s4 1966171168
    %v1766 = vunpack.c.0.s8 %v1765
    %v1767 = vlaneseq
    %v1768 = vshrl.u32 %v1767, 7
    %v1769 = vsub.s32 %v1766, %v1768
    %v1770 = vrot.slane %v1754, %v1769
    %v1772 = vunpack.c.l.s4 1966171168
    %v1773 = vunpack.c.0.s8 %v1772
    %v1774 = vlaneseq
    %v1775 = vshrl.u32 %v1774, 7
    %v1776 = vsub.s32 %v1773, %v1775
    %v1777 = vrot.slane %v1755, %v1776
    %v1779 = vunpack.c.l.s4 1966171168
    %v1780 = vunpack.c.0.s8 %v1779
    %v1781 = vlaneseq
    %v1782 = vshrl.u32 %v1781, 7
    %v1783 = vsub.s32 %v1780, %v1782
    %v1784 = vrot.slane %v1756, %v1783
    %v1785 = vcombine.high %v1763, %v1763
    %v1786 = vcombine.high %v1770, %v1770
    %v1787 = vcombine.high %v1777, %v1777
    %v1788 = vcombine.high %v1784, %v1784
    %v1789 = vcombine.high %v1519, %v1519
    %v1791 = vunpack.c.l.s4 1966171168
    %v1792 = vunpack.c.0.s8 %v1791
    %v1793 = vlaneseq
    %v1794 = vshrl.u32 %v1793, 7
    %v1795 = vsub.s32 %v1792, %v1794
    %v1796 = vrot.slane %v1519, %v1795
    %v1798 = vunpack.c.l.s4 1966171168
    %v1799 = vunpack.c.0.s8 %v1798
    %v1800 = vlaneseq
    %v1801 = vshrl.u32 %v1800, 7
    %v1802 = vsub.s32 %v1799, %v1801
    %v1803 = vrot.slane %v1789, %v1802
    %v1804 = vcombine.high %v1796, %v1796
    %v1805 = vcombine.high %v1803, %v1803
    %v1807 = vunpack.c.l.s4 1966171168
    %v1808 = vunpack.c.0.s8 %v1807
    %v1809 = vlaneseq
    %v1810 = vshrl.u32 %v1809, 7
    %v1811 = vsub.s32 %v1808, %v1810
    %v1812 = vrot.slane %v1796, %v1811
    %v1814 = vunpack.c.l.s4 1966171168
    %v1815 = vunpack.c.0.s8 %v1814
    %v1816 = vlaneseq
    %v1817 = vshrl.u32 %v1816, 7
    %v1818 = vsub.s32 %v1815, %v1817
    %v1819 = vrot.slane %v1803, %v1818
    %v1821 = vunpack.c.l.s4 1966171168
    %v1822 = vunpack.c.0.s8 %v1821
    %v1823 = vlaneseq
    %v1824 = vshrl.u32 %v1823, 7
    %v1825 = vsub.s32 %v1822, %v1824
    %v1826 = vrot.slane %v1804, %v1825
    %v1828 = vunpack.c.l.s4 1966171168
    %v1829 = vunpack.c.0.s8 %v1828
    %v1830 = vlaneseq
    %v1831 = vshrl.u32 %v1830, 7
    %v1832 = vsub.s32 %v1829, %v1831
    %v1833 = vrot.slane %v1805, %v1832
    %v1834 = vcombine.high %v1812, %v1812
    %v1835 = vcombine.high %v1819, %v1819
    %v1836 = vcombine.high %v1826, %v1826
    %v1837 = vcombine.high %v1833, %v1833
    %v1838 = vcombine.high %v1520, %v1520
    %v1840 = vunpack.c.l.s4 1966171168
    %v1841 = vunpack.c.0.s8 %v1840
    %v1842 = vlaneseq
    %v1843 = vshrl.u32 %v1842, 7
    %v1844 = vsub.s32 %v1841, %v1843
    %v1845 = vrot.slane %v1520, %v1844
    %v1847 = vunpack.c.l.s4 1966171168
    %v1848 = vunpack.c.0.s8 %v1847
    %v1849 = vlaneseq
    %v1850 = vshrl.u32 %v1849, 7
    %v1851 = vsub.s32 %v1848, %v1850
    %v1852 = vrot.slane %v1838, %v1851
    %v1853 = vcombine.high %v1845, %v1845
    %v1854 = vcombine.high %v1852, %v1852
    %v1856 = vunpack.c.l.s4 1966171168
    %v1857 = vunpack.c.0.s8 %v1856
    %v1858 = vlaneseq
    %v1859 = vshrl.u32 %v1858, 7
    %v1860 = vsub.s32 %v1857, %v1859
    %v1861 = vrot.slane %v1845, %v1860
    %v1863 = vunpack.c.l.s4 1966171168
    %v1864 = vunpack.c.0.s8 %v1863
    %v1865 = vlaneseq
    %v1866 = vshrl.u32 %v1865, 7
    %v1867 = vsub.s32 %v1864, %v1866
    %v1868 = vrot.slane %v1852, %v1867
    %v1870 = vunpack.c.l.s4 1966171168
    %v1871 = vunpack.c.0.s8 %v1870
    %v1872 = vlaneseq
    %v1873 = vshrl.u32 %v1872, 7
    %v1874 = vsub.s32 %v1871, %v1873
    %v1875 = vrot.slane %v1853, %v1874
    %v1877 = vunpack.c.l.s4 1966171168
    %v1878 = vunpack.c.0.s8 %v1877
    %v1879 = vlaneseq
    %v1880 = vshrl.u32 %v1879, 7
    %v1881 = vsub.s32 %v1878, %v1880
    %v1882 = vrot.slane %v1854, %v1881
    %v1883 = vcombine.high %v1861, %v1861
    %v1884 = vcombine.high %v1868, %v1868
    %v1885 = vcombine.high %v1875, %v1875
    %v1886 = vcombine.high %v1882, %v1882
    %v1887 = vcombine.high %v1521, %v1521
    %v1889 = vunpack.c.l.s4 1966171168
    %v1890 = vunpack.c.0.s8 %v1889
    %v1891 = vlaneseq
    %v1892 = vshrl.u32 %v1891, 7
    %v1893 = vsub.s32 %v1890, %v1892
    %v1894 = vrot.slane %v1521, %v1893
    %v1896 = vunpack.c.l.s4 1966171168
    %v1897 = vunpack.c.0.s8 %v1896
    %v1898 = vlaneseq
    %v1899 = vshrl.u32 %v1898, 7
    %v1900 = vsub.s32 %v1897, %v1899
    %v1901 = vrot.slane %v1887, %v1900
    %v1902 = vcombine.high %v1894, %v1894
    %v1903 = vcombine.high %v1901, %v1901
    %v1905 = vunpack.c.l.s4 1966171168
    %v1906 = vunpack.c.0.s8 %v1905
    %v1907 = vlaneseq
    %v1908 = vshrl.u32 %v1907, 7
    %v1909 = vsub.s32 %v1906, %v1908
    %v1910 = vrot.slane %v1894, %v1909
    %v1912 = vunpack.c.l.s4 1966171168
    %v1913 = vunpack.c.0.s8 %v1912
    %v1914 = vlaneseq
    %v1915 = vshrl.u32 %v1914, 7
    %v1916 = vsub.s32 %v1913, %v1915
    %v1917 = vrot.slane %v1901, %v1916
    %v1919 = vunpack.c.l.s4 1966171168
    %v1920 = vunpack.c.0.s8 %v1919
    %v1921 = vlaneseq
    %v1922 = vshrl.u32 %v1921, 7
    %v1923 = vsub.s32 %v1920, %v1922
    %v1924 = vrot.slane %v1902, %v1923
    %v1926 = vunpack.c.l.s4 1966171168
    %v1927 = vunpack.c.0.s8 %v1926
    %v1928 = vlaneseq
    %v1929 = vshrl.u32 %v1928, 7
    %v1930 = vsub.s32 %v1927, %v1929
    %v1931 = vrot.slane %v1903, %v1930
    %v1932 = vcombine.high %v1910, %v1910
    %v1933 = vcombine.high %v1917, %v1917
    %v1934 = vcombine.high %v1924, %v1924
    %v1935 = vcombine.high %v1931, %v1931
    %v1936 = vcombine.high %v1522, %v1522
    %v1938 = vunpack.c.l.s4 1966171168
    %v1939 = vunpack.c.0.s8 %v1938
    %v1940 = vlaneseq
    %v1941 = vshrl.u32 %v1940, 7
    %v1942 = vsub.s32 %v1939, %v1941
    %v1943 = vrot.slane %v1522, %v1942
    %v1945 = vunpack.c.l.s4 1966171168
    %v1946 = vunpack.c.0.s8 %v1945
    %v1947 = vlaneseq
    %v1948 = vshrl.u32 %v1947, 7
    %v1949 = vsub.s32 %v1946, %v1948
    %v1950 = vrot.slane %v1936, %v1949
    %v1951 = vcombine.high %v1943, %v1943
    %v1952 = vcombine.high %v1950, %v1950
    %v1954 = vunpack.c.l.s4 1966171168
    %v1955 = vunpack.c.0.s8 %v1954
    %v1956 = vlaneseq
    %v1957 = vshrl.u32 %v1956, 7
    %v1958 = vsub.s32 %v1955, %v1957
    %v1959 = vrot.slane %v1943, %v1958
    %v1961 = vunpack.c.l.s4 1966171168
    %v1962 = vunpack.c.0.s8 %v1961
    %v1963 = vlaneseq
    %v1964 = vshrl.u32 %v1963, 7
    %v1965 = vsub.s32 %v1962, %v1964
    %v1966 = vrot.slane %v1950, %v1965
    %v1968 = vunpack.c.l.s4 1966171168
    %v1969 = vunpack.c.0.s8 %v1968
    %v1970 = vlaneseq
    %v1971 = vshrl.u32 %v1970, 7
    %v1972 = vsub.s32 %v1969, %v1971
    %v1973 = vrot.slane %v1951, %v1972
    %v1975 = vunpack.c.l.s4 1966171168
    %v1976 = vunpack.c.0.s8 %v1975
    %v1977 = vlaneseq
    %v1978 = vshrl.u32 %v1977, 7
    %v1979 = vsub.s32 %v1976, %v1978
    %v1980 = vrot.slane %v1952, %v1979
    %v1981 = vcombine.high %v1959, %v1959
    %v1982 = vcombine.high %v1966, %v1966
    %v1983 = vcombine.high %v1973, %v1973
    %v1984 = vcombine.high %v1980, %v1980
    %v1985 = vcombine.high %v1523, %v1523
    %v1987 = vunpack.c.l.s4 1966171168
    %v1988 = vunpack.c.0.s8 %v1987
    %v1989 = vlaneseq
    %v1990 = vshrl.u32 %v1989, 7
    %v1991 = vsub.s32 %v1988, %v1990
    %v1992 = vrot.slane %v1523, %v1991
    %v1994 = vunpack.c.l.s4 1966171168
    %v1995 = vunpack.c.0.s8 %v1994
    %v1996 = vlaneseq
    %v1997 = vshrl.u32 %v1996, 7
    %v1998 = vsub.s32 %v1995, %v1997
    %v1999 = vrot.slane %v1985, %v1998
    %v2000 = vcombine.high %v1992, %v1992
    %v2001 = vcombine.high %v1999, %v1999
    %v2003 = vunpack.c.l.s4 1966171168
    %v2004 = vunpack.c.0.s8 %v2003
    %v2005 = vlaneseq
    %v2006 = vshrl.u32 %v2005, 7
    %v2007 = vsub.s32 %v2004, %v2006
    %v2008 = vrot.slane %v1992, %v2007
    %v2010 = vunpack.c.l.s4 1966171168
    %v2011 = vunpack.c.0.s8 %v2010
    %v2012 = vlaneseq
    %v2013 = vshrl.u32 %v2012, 7
    %v2014 = vsub.s32 %v2011, %v2013
    %v2015 = vrot.slane %v1999, %v2014
    %v2017 = vunpack.c.l.s4 1966171168
    %v2018 = vunpack.c.0.s8 %v2017
    %v2019 = vlaneseq
    %v2020 = vshrl.u32 %v2019, 7
    %v2021 = vsub.s32 %v2018, %v2020
    %v2022 = vrot.slane %v2000, %v2021
    %v2024 = vunpack.c.l.s4 1966171168
    %v2025 = vunpack.c.0.s8 %v2024
    %v2026 = vlaneseq
    %v2027 = vshrl.u32 %v2026, 7
    %v2028 = vsub.s32 %v2025, %v2027
    %v2029 = vrot.slane %v2001, %v2028
    %v2030 = vcombine.high %v2008, %v2008
    %v2031 = vcombine.high %v2015, %v2015
    %v2032 = vcombine.high %v2022, %v2022
    %v2033 = vcombine.high %v2029, %v2029
    %v2034 = vcombine.high %v1524, %v1524
    %v2036 = vunpack.c.l.s4 1966171168
    %v2037 = vunpack.c.0.s8 %v2036
    %v2038 = vlaneseq
    %v2039 = vshrl.u32 %v2038, 7
    %v2040 = vsub.s32 %v2037, %v2039
    %v2041 = vrot.slane %v1524, %v2040
    %v2043 = vunpack.c.l.s4 1966171168
    %v2044 = vunpack.c.0.s8 %v2043
    %v2045 = vlaneseq
    %v2046 = vshrl.u32 %v2045, 7
    %v2047 = vsub.s32 %v2044, %v2046
    %v2048 = vrot.slane %v2034, %v2047
    %v2049 = vcombine.high %v2041, %v2041
    %v2050 = vcombine.high %v2048, %v2048
    %v2052 = vunpack.c.l.s4 1966171168
    %v2053 = vunpack.c.0.s8 %v2052
    %v2054 = vlaneseq
    %v2055 = vshrl.u32 %v2054, 7
    %v2056 = vsub.s32 %v2053, %v2055
    %v2057 = vrot.slane %v2041, %v2056
    %v2059 = vunpack.c.l.s4 1966171168
    %v2060 = vunpack.c.0.s8 %v2059
    %v2061 = vlaneseq
    %v2062 = vshrl.u32 %v2061, 7
    %v2063 = vsub.s32 %v2060, %v2062
    %v2064 = vrot.slane %v2048, %v2063
    %v2066 = vunpack.c.l.s4 1966171168
    %v2067 = vunpack.c.0.s8 %v2066
    %v2068 = vlaneseq
    %v2069 = vshrl.u32 %v2068, 7
    %v2070 = vsub.s32 %v2067, %v2069
    %v2071 = vrot.slane %v2049, %v2070
    %v2073 = vunpack.c.l.s4 1966171168
    %v2074 = vunpack.c.0.s8 %v2073
    %v2075 = vlaneseq
    %v2076 = vshrl.u32 %v2075, 7
    %v2077 = vsub.s32 %v2074, %v2076
    %v2078 = vrot.slane %v2050, %v2077
    %v2079 = vcombine.high %v2057, %v2057
    %v2080 = vcombine.high %v2064, %v2064
    %v2081 = vcombine.high %v2071, %v2071
    %v2082 = vcombine.high %v2078, %v2078
    %v2083 = vcombine.high %v1525, %v1525
    %v2085 = vunpack.c.l.s4 1966171168
    %v2086 = vunpack.c.0.s8 %v2085
    %v2087 = vlaneseq
    %v2088 = vshrl.u32 %v2087, 7
    %v2089 = vsub.s32 %v2086, %v2088
    %v2090 = vrot.slane %v1525, %v2089
    %v2092 = vunpack.c.l.s4 1966171168
    %v2093 = vunpack.c.0.s8 %v2092
    %v2094 = vlaneseq
    %v2095 = vshrl.u32 %v2094, 7
    %v2096 = vsub.s32 %v2093, %v2095
    %v2097 = vrot.slane %v2083, %v2096
    %v2098 = vcombine.high %v2090, %v2090
    %v2099 = vcombine.high %v2097, %v2097
    %v2101 = vunpack.c.l.s4 1966171168
    %v2102 = vunpack.c.0.s8 %v2101
    %v2103 = vlaneseq
    %v2104 = vshrl.u32 %v2103, 7
    %v2105 = vsub.s32 %v2102, %v2104
    %v2106 = vrot.slane %v2090, %v2105
    %v2108 = vunpack.c.l.s4 1966171168
    %v2109 = vunpack.c.0.s8 %v2108
    %v2110 = vlaneseq
    %v2111 = vshrl.u32 %v2110, 7
    %v2112 = vsub.s32 %v2109, %v2111
    %v2113 = vrot.slane %v2097, %v2112
    %v2115 = vunpack.c.l.s4 1966171168
    %v2116 = vunpack.c.0.s8 %v2115
    %v2117 = vlaneseq
    %v2118 = vshrl.u32 %v2117, 7
    %v2119 = vsub.s32 %v2116, %v2118
    %v2120 = vrot.slane %v2098, %v2119
    %v2122 = vunpack.c.l.s4 1966171168
    %v2123 = vunpack.c.0.s8 %v2122
    %v2124 = vlaneseq
    %v2125 = vshrl.u32 %v2124, 7
    %v2126 = vsub.s32 %v2123, %v2125
    %v2127 = vrot.slane %v2099, %v2126
    %v2128 = vcombine.high %v2106, %v2106
    %v2129 = vcombine.high %v2113, %v2113
    %v2130 = vcombine.high %v2120, %v2120
    %v2131 = vcombine.high %v2127, %v2127
    %v2132 = vcombine.high %v1526, %v1526
    %v2134 = vunpack.c.l.s4 1966171168
    %v2135 = vunpack.c.0.s8 %v2134
    %v2136 = vlaneseq
    %v2137 = vshrl.u32 %v2136, 7
    %v2138 = vsub.s32 %v2135, %v2137
    %v2139 = vrot.slane %v1526, %v2138
    %v2141 = vunpack.c.l.s4 1966171168
    %v2142 = vunpack.c.0.s8 %v2141
    %v2143 = vlaneseq
    %v2144 = vshrl.u32 %v2143, 7
    %v2145 = vsub.s32 %v2142, %v2144
    %v2146 = vrot.slane %v2132, %v2145
    %v2147 = vcombine.high %v2139, %v2139
    %v2148 = vcombine.high %v2146, %v2146
    %v2150 = vunpack.c.l.s4 1966171168
    %v2151 = vunpack.c.0.s8 %v2150
    %v2152 = vlaneseq
    %v2153 = vshrl.u32 %v2152, 7
    %v2154 = vsub.s32 %v2151, %v2153
    %v2155 = vrot.slane %v2139, %v2154
    %v2157 = vunpack.c.l.s4 1966171168
    %v2158 = vunpack.c.0.s8 %v2157
    %v2159 = vlaneseq
    %v2160 = vshrl.u32 %v2159, 7
    %v2161 = vsub.s32 %v2158, %v2160
    %v2162 = vrot.slane %v2146, %v2161
    %v2164 = vunpack.c.l.s4 1966171168
    %v2165 = vunpack.c.0.s8 %v2164
    %v2166 = vlaneseq
    %v2167 = vshrl.u32 %v2166, 7
    %v2168 = vsub.s32 %v2165, %v2167
    %v2169 = vrot.slane %v2147, %v2168
    %v2171 = vunpack.c.l.s4 1966171168
    %v2172 = vunpack.c.0.s8 %v2171
    %v2173 = vlaneseq
    %v2174 = vshrl.u32 %v2173, 7
    %v2175 = vsub.s32 %v2172, %v2174
    %v2176 = vrot.slane %v2148, %v2175
    %v2177 = vcombine.high %v2155, %v2155
    %v2178 = vcombine.high %v2162, %v2162
    %v2179 = vcombine.high %v2169, %v2169
    %v2180 = vcombine.high %v2176, %v2176
    %v2181 = vcombine.high %v1527, %v1527
    %v2183 = vunpack.c.l.s4 1966171168
    %v2184 = vunpack.c.0.s8 %v2183
    %v2185 = vlaneseq
    %v2186 = vshrl.u32 %v2185, 7
    %v2187 = vsub.s32 %v2184, %v2186
    %v2188 = vrot.slane %v1527, %v2187
    %v2190 = vunpack.c.l.s4 1966171168
    %v2191 = vunpack.c.0.s8 %v2190
    %v2192 = vlaneseq
    %v2193 = vshrl.u32 %v2192, 7
    %v2194 = vsub.s32 %v2191, %v2193
    %v2195 = vrot.slane %v2181, %v2194
    %v2196 = vcombine.high %v2188, %v2188
    %v2197 = vcombine.high %v2195, %v2195
    %v2199 = vunpack.c.l.s4 1966171168
    %v2200 = vunpack.c.0.s8 %v2199
    %v2201 = vlaneseq
    %v2202 = vshrl.u32 %v2201, 7
    %v2203 = vsub.s32 %v2200, %v2202
    %v2204 = vrot.slane %v2188, %v2203
    %v2206 = vunpack.c.l.s4 1966171168
    %v2207 = vunpack.c.0.s8 %v2206
    %v2208 = vlaneseq
    %v2209 = vshrl.u32 %v2208, 7
    %v2210 = vsub.s32 %v2207, %v2209
    %v2211 = vrot.slane %v2195, %v2210
    %v2213 = vunpack.c.l.s4 1966171168
    %v2214 = vunpack.c.0.s8 %v2213
    %v2215 = vlaneseq
    %v2216 = vshrl.u32 %v2215, 7
    %v2217 = vsub.s32 %v2214, %v2216
    %v2218 = vrot.slane %v2196, %v2217
    %v2220 = vunpack.c.l.s4 1966171168
    %v2221 = vunpack.c.0.s8 %v2220
    %v2222 = vlaneseq
    %v2223 = vshrl.u32 %v2222, 7
    %v2224 = vsub.s32 %v2221, %v2223
    %v2225 = vrot.slane %v2197, %v2224
    %v2226 = vcombine.high %v2204, %v2204
    %v2227 = vcombine.high %v2211, %v2211
    %v2228 = vcombine.high %v2218, %v2218
    %v2229 = vcombine.high %v2225, %v2225
    %v2230 = vcombine.high %v1528, %v1528
    %v2232 = vunpack.c.l.s4 1966171168
    %v2233 = vunpack.c.0.s8 %v2232
    %v2234 = vlaneseq
    %v2235 = vshrl.u32 %v2234, 7
    %v2236 = vsub.s32 %v2233, %v2235
    %v2237 = vrot.slane %v1528, %v2236
    %v2239 = vunpack.c.l.s4 1966171168
    %v2240 = vunpack.c.0.s8 %v2239
    %v2241 = vlaneseq
    %v2242 = vshrl.u32 %v2241, 7
    %v2243 = vsub.s32 %v2240, %v2242
    %v2244 = vrot.slane %v2230, %v2243
    %v2245 = vcombine.high %v2237, %v2237
    %v2246 = vcombine.high %v2244, %v2244
    %v2248 = vunpack.c.l.s4 1966171168
    %v2249 = vunpack.c.0.s8 %v2248
    %v2250 = vlaneseq
    %v2251 = vshrl.u32 %v2250, 7
    %v2252 = vsub.s32 %v2249, %v2251
    %v2253 = vrot.slane %v2237, %v2252
    %v2255 = vunpack.c.l.s4 1966171168
    %v2256 = vunpack.c.0.s8 %v2255
    %v2257 = vlaneseq
    %v2258 = vshrl.u32 %v2257, 7
    %v2259 = vsub.s32 %v2256, %v2258
    %v2260 = vrot.slane %v2244, %v2259
    %v2262 = vunpack.c.l.s4 1966171168
    %v2263 = vunpack.c.0.s8 %v2262
    %v2264 = vlaneseq
    %v2265 = vshrl.u32 %v2264, 7
    %v2266 = vsub.s32 %v2263, %v2265
    %v2267 = vrot.slane %v2245, %v2266
    %v2269 = vunpack.c.l.s4 1966171168
    %v2270 = vunpack.c.0.s8 %v2269
    %v2271 = vlaneseq
    %v2272 = vshrl.u32 %v2271, 7
    %v2273 = vsub.s32 %v2270, %v2272
    %v2274 = vrot.slane %v2246, %v2273
    %v2275 = vcombine.high %v2253, %v2253
    %v2276 = vcombine.high %v2260, %v2260
    %v2277 = vcombine.high %v2267, %v2267
    %v2278 = vcombine.high %v2274, %v2274
    %v2279 = vcombine.low %v1567, %v1581
    %v2280 = vcombine.low %v1589, %v1591
    %v2281 = vcombine.low %v1574, %v1588
    %v2282 = vcombine.low %v1590, %v1592
    %v2284 = vunpack.c.l.s4 1966171168
    %v2285 = vunpack.c.0.s8 %v2284
    %v2286 = vlaneseq
    %v2287 = vshrl.u32 %v2286, 7
    %v2288 = vsub.s32 %v2285, %v2287
    %v2289 = vrot.slane %v2279, %v2288
    %v2291 = vunpack.c.l.s4 1966171168
    %v2292 = vunpack.c.0.s8 %v2291
    %v2293 = vlaneseq
    %v2294 = vshrl.u32 %v2293, 7
    %v2295 = vsub.s32 %v2292, %v2294
    %v2296 = vrot.slane %v2280, %v2295
    %v2298 = vunpack.c.l.s4 1966171168
    %v2299 = vunpack.c.0.s8 %v2298
    %v2300 = vlaneseq
    %v2301 = vshrl.u32 %v2300, 7
    %v2302 = vsub.s32 %v2299, %v2301
    %v2303 = vrot.slane %v2281, %v2302
    %v2305 = vunpack.c.l.s4 1966171168
    %v2306 = vunpack.c.0.s8 %v2305
    %v2307 = vlaneseq
    %v2308 = vshrl.u32 %v2307, 7
    %v2309 = vsub.s32 %v2306, %v2308
    %v2310 = vrot.slane %v2282, %v2309
    %v2311 = vcombine.low %v2289, %v2296
    %v2312 = vcombine.low %v2303, %v2310
    %v2314 = vunpack.c.l.s4 1966171168
    %v2315 = vunpack.c.0.s8 %v2314
    %v2316 = vlaneseq
    %v2317 = vshrl.u32 %v2316, 7
    %v2318 = vsub.s32 %v2315, %v2317
    %v2319 = vrot.slane %v2311, %v2318
    %v2321 = vunpack.c.l.s4 1966171168
    %v2322 = vunpack.c.0.s8 %v2321
    %v2323 = vlaneseq
    %v2324 = vshrl.u32 %v2323, 7
    %v2325 = vsub.s32 %v2322, %v2324
    %v2326 = vrot.slane %v2312, %v2325
    %v2327 = vcombine.low %v2319, %v2326
    %v2328 = vcombine.low %v1616, %v1630
    %v2329 = vcombine.low %v1638, %v1640
    %v2330 = vcombine.low %v1623, %v1637
    %v2332 = vunpack.c.l.s4 1966171168
    %v2333 = vunpack.c.0.s8 %v2332
    %v2334 = vlaneseq
    %v2335 = vshrl.u32 %v2334, 7
    %v2336 = vsub.s32 %v2333, %v2335
    %v2337 = vrot.slane %v2328, %v2336
    %v2339 = vunpack.c.l.s4 1966171168
    %v2340 = vunpack.c.0.s8 %v2339
    %v2341 = vlaneseq
    %v2342 = vshrl.u32 %v2341, 7
    %v2343 = vsub.s32 %v2340, %v2342
    %v2344 = vrot.slane %v2329, %v2343
    %v2346 = vunpack.c.l.s4 1966171168
    %v2347 = vunpack.c.0.s8 %v2346
    %v2348 = vlaneseq
    %v2349 = vshrl.u32 %v2348, 7
    %v2350 = vsub.s32 %v2347, %v2349
    %v2351 = vrot.slane %v2330, %v2350
    %v2353 = vunpack.c.l.s4 1966171168
    %v2354 = vunpack.c.0.s8 %v2353
    %v2355 = vlaneseq
    %v2356 = vshrl.u32 %v2355, 7
    %v2357 = vsub.s32 %v2354, %v2356
    %v2358 = vrot.slane %v1639, %v2357
    %v2359 = vcombine.low %v2337, %v2344
    %v2360 = vcombine.low %v2351, %v2358
    %v2362 = vunpack.c.l.s4 1966171168
    %v2363 = vunpack.c.0.s8 %v2362
    %v2364 = vlaneseq
    %v2365 = vshrl.u32 %v2364, 7
    %v2366 = vsub.s32 %v2363, %v2365
    %v2367 = vrot.slane %v2359, %v2366
    %v2369 = vunpack.c.l.s4 1966171168
    %v2370 = vunpack.c.0.s8 %v2369
    %v2371 = vlaneseq
    %v2372 = vshrl.u32 %v2371, 7
    %v2373 = vsub.s32 %v2370, %v2372
    %v2374 = vrot.slane %v2360, %v2373
    %v2375 = vcombine.low %v2367, %v2374
    %v2376 = vcombine.low %v1641, %v1665
    %v2377 = vcombine.low %v1679, %v1687
    %v2378 = vcombine.low %v1689, %v1672
    %v2379 = vcombine.low %v1686, %v1688
    %v2381 = vunpack.c.l.s4 1966171168
    %v2382 = vunpack.c.0.s8 %v2381
    %v2383 = vlaneseq
    %v2384 = vshrl.u32 %v2383, 7
    %v2385 = vsub.s32 %v2382, %v2384
    %v2386 = vrot.slane %v2376, %v2385
    %v2388 = vunpack.c.l.s4 1966171168
    %v2389 = vunpack.c.0.s8 %v2388
    %v2390 = vlaneseq
    %v2391 = vshrl.u32 %v2390, 7
    %v2392 = vsub.s32 %v2389, %v2391
    %v2393 = vrot.slane %v2377, %v2392
    %v2395 = vunpack.c.l.s4 1966171168
    %v2396 = vunpack.c.0.s8 %v2395
    %v2397 = vlaneseq
    %v2398 = vshrl.u32 %v2397, 7
    %v2399 = vsub.s32 %v2396, %v2398
    %v2400 = vrot.slane %v2378, %v2399
    %v2402 = vunpack.c.l.s4 1966171168
    %v2403 = vunpack.c.0.s8 %v2402
    %v2404 = vlaneseq
    %v2405 = vshrl.u32 %v2404, 7
    %v2406 = vsub.s32 %v2403, %v2405
    %v2407 = vrot.slane %v2379, %v2406
    %v2408 = vcombine.low %v2386, %v2393
    %v2409 = vcombine.low %v2400, %v2407
    %v2411 = vunpack.c.l.s4 1966171168
    %v2412 = vunpack.c.0.s8 %v2411
    %v2413 = vlaneseq
    %v2414 = vshrl.u32 %v2413, 7
    %v2415 = vsub.s32 %v2412, %v2414
    %v2416 = vrot.slane %v2408, %v2415
    %v2418 = vunpack.c.l.s4 1966171168
    %v2419 = vunpack.c.0.s8 %v2418
    %v2420 = vlaneseq
    %v2421 = vshrl.u32 %v2420, 7
    %v2422 = vsub.s32 %v2419, %v2421
    %v2423 = vrot.slane %v2409, %v2422
    %v2424 = vcombine.low %v2416, %v2423
    %v2425 = vcombine.low %v1690, %v1714
    %v2426 = vcombine.low %v1728, %v1736
    %v2427 = vcombine.low %v1738, %v1721
    %v2429 = vunpack.c.l.s4 1966171168
    %v2430 = vunpack.c.0.s8 %v2429
    %v2431 = vlaneseq
    %v2432 = vshrl.u32 %v2431, 7
    %v2433 = vsub.s32 %v2430, %v2432
    %v2434 = vrot.slane %v2425, %v2433
    %v2436 = vunpack.c.l.s4 1966171168
    %v2437 = vunpack.c.0.s8 %v2436
    %v2438 = vlaneseq
    %v2439 = vshrl.u32 %v2438, 7
    %v2440 = vsub.s32 %v2437, %v2439
    %v2441 = vrot.slane %v2426, %v2440
    %v2443 = vunpack.c.l.s4 1966171168
    %v2444 = vunpack.c.0.s8 %v2443
    %v2445 = vlaneseq
    %v2446 = vshrl.u32 %v2445, 7
    %v2447 = vsub.s32 %v2444, %v2446
    %v2448 = vrot.slane %v2427, %v2447
    %v2450 = vunpack.c.l.s4 1966171168
    %v2451 = vunpack.c.0.s8 %v2450
    %v2452 = vlaneseq
    %v2453 = vshrl.u32 %v2452, 7
    %v2454 = vsub.s32 %v2451, %v2453
    %v2455 = vrot.slane %v1735, %v2454
    %v2456 = vcombine.low %v2434, %v2441
    %v2457 = vcombine.low %v2448, %v2455
    %v2459 = vunpack.c.l.s4 1966171168
    %v2460 = vunpack.c.0.s8 %v2459
    %v2461 = vlaneseq
    %v2462 = vshrl.u32 %v2461, 7
    %v2463 = vsub.s32 %v2460, %v2462
    %v2464 = vrot.slane %v2456, %v2463
    %v2466 = vunpack.c.l.s4 1966171168
    %v2467 = vunpack.c.0.s8 %v2466
    %v2468 = vlaneseq
    %v2469 = vshrl.u32 %v2468, 7
    %v2470 = vsub.s32 %v2467, %v2469
    %v2471 = vrot.slane %v2457, %v2470
    %v2472 = vcombine.low %v2464, %v2471
    %v2473 = vcombine.low %v1737, %v1739
    %v2474 = vcombine.low %v1763, %v1777
    %v2475 = vcombine.low %v1785, %v1787
    %v2476 = vcombine.low %v1770, %v1784
    %v2478 = vunpack.c.l.s4 1966171168
    %v2479 = vunpack.c.0.s8 %v2478
    %v2480 = vlaneseq
    %v2481 = vshrl.u32 %v2480, 7
    %v2482 = vsub.s32 %v2479, %v2481
    %v2483 = vrot.slane %v2473, %v2482
    %v2485 = vunpack.c.l.s4 1966171168
    %v2486 = vunpack.c.0.s8 %v2485
    %v2487 = vlaneseq
    %v2488 = vshrl.u32 %v2487, 7
    %v2489 = vsub.s32 %v2486, %v2488
    %v2490 = vrot.slane %v2474, %v2489
    %v2492 = vunpack.c.l.s4 1966171168
    %v2493 = vunpack.c.0.s8 %v2492
    %v2494 = vlaneseq
    %v2495 = vshrl.u32 %v2494, 7
    %v2496 = vsub.s32 %v2493, %v2495
    %v2497 = vrot.slane %v2475, %v2496
    %v2499 = vunpack.c.l.s4 1966171168
    %v2500 = vunpack.c.0.s8 %v2499
    %v2501 = vlaneseq
    %v2502 = vshrl.u32 %v2501, 7
    %v2503 = vsub.s32 %v2500, %v2502
    %v2504 = vrot.slane %v2476, %v2503
    %v2505 = vcombine.low %v2483, %v2490
    %v2506 = vcombine.low %v2497, %v2504
    %v2508 = vunpack.c.l.s4 1966171168
    %v2509 = vunpack.c.0.s8 %v2508
    %v2510 = vlaneseq
    %v2511 = vshrl.u32 %v2510, 7
    %v2512 = vsub.s32 %v2509, %v2511
    %v2513 = vrot.slane %v2505, %v2512
    %v2515 = vunpack.c.l.s4 1966171168
    %v2516 = vunpack.c.0.s8 %v2515
    %v2517 = vlaneseq
    %v2518 = vshrl.u32 %v2517, 7
    %v2519 = vsub.s32 %v2516, %v2518
    %v2520 = vrot.slane %v2506, %v2519
    %v2521 = vcombine.low %v2513, %v2520
    %v2522 = vcombine.low %v1786, %v1788
    %v2523 = vcombine.low %v1812, %v1826
    %v2524 = vcombine.low %v1834, %v1836
    %v2526 = vunpack.c.l.s4 1966171168
    %v2527 = vunpack.c.0.s8 %v2526
    %v2528 = vlaneseq
    %v2529 = vshrl.u32 %v2528, 7
    %v2530 = vsub.s32 %v2527, %v2529
    %v2531 = vrot.slane %v2522, %v2530
    %v2533 = vunpack.c.l.s4 1966171168
    %v2534 = vunpack.c.0.s8 %v2533
    %v2535 = vlaneseq
    %v2536 = vshrl.u32 %v2535, 7
    %v2537 = vsub.s32 %v2534, %v2536
    %v2538 = vrot.slane %v2523, %v2537
    %v2540 = vunpack.c.l.s4 1966171168
    %v2541 = vunpack.c.0.s8 %v2540
    %v2542 = vlaneseq
    %v2543 = vshrl.u32 %v2542, 7
    %v2544 = vsub.s32 %v2541, %v2543
    %v2545 = vrot.slane %v2524, %v2544
    %v2547 = vunpack.c.l.s4 1966171168
    %v2548 = vunpack.c.0.s8 %v2547
    %v2549 = vlaneseq
    %v2550 = vshrl.u32 %v2549, 7
    %v2551 = vsub.s32 %v2548, %v2550
    %v2552 = vrot.slane %v1819, %v2551
    %v2553 = vcombine.low %v2531, %v2538
    %v2554 = vcombine.low %v2545, %v2552
    %v2556 = vunpack.c.l.s4 1966171168
    %v2557 = vunpack.c.0.s8 %v2556
    %v2558 = vlaneseq
    %v2559 = vshrl.u32 %v2558, 7
    %v2560 = vsub.s32 %v2557, %v2559
    %v2561 = vrot.slane %v2553, %v2560
    %v2563 = vunpack.c.l.s4 1966171168
    %v2564 = vunpack.c.0.s8 %v2563
    %v2565 = vlaneseq
    %v2566 = vshrl.u32 %v2565, 7
    %v2567 = vsub.s32 %v2564, %v2566
    %v2568 = vrot.slane %v2554, %v2567
    %v2569 = vcombine.low %v2561, %v2568
    %v2570 = vcombine.low %v1833, %v1835
    %v2571 = vcombine.low %v1837, %v1861
    %v2572 = vcombine.low %v1875, %v1883
    %v2573 = vcombine.low %v1885, %v1868
    %v2575 = vunpack.c.l.s4 1966171168
    %v2576 = vunpack.c.0.s8 %v2575
    %v2577 = vlaneseq
    %v2578 = vshrl.u32 %v2577, 7
    %v2579 = vsub.s32 %v2576, %v2578
    %v2580 = vrot.slane %v2570, %v2579
    %v2582 = vunpack.c.l.s4 1966171168
    %v2583 = vunpack.c.0.s8 %v2582
    %v2584 = vlaneseq
    %v2585 = vshrl.u32 %v2584, 7
    %v2586 = vsub.s32 %v2583, %v2585
    %v2587 = vrot.slane %v2571, %v2586
    %v2589 = vunpack.c.l.s4 1966171168
    %v2590 = vunpack.c.0.s8 %v2589
    %v2591 = vlaneseq
    %v2592 = vshrl.u32 %v2591, 7
    %v2593 = vsub.s32 %v2590, %v2592
    %v2594 = vrot.slane %v2572, %v2593
    %v2596 = vunpack.c.l.s4 1966171168
    %v2597 = vunpack.c.0.s8 %v2596
    %v2598 = vlaneseq
    %v2599 = vshrl.u32 %v2598, 7
    %v2600 = vsub.s32 %v2597, %v2599
    %v2601 = vrot.slane %v2573, %v2600
    %v2602 = vcombine.low %v2580, %v2587
    %v2603 = vcombine.low %v2594, %v2601
    %v2605 = vunpack.c.l.s4 1966171168
    %v2606 = vunpack.c.0.s8 %v2605
    %v2607 = vlaneseq
    %v2608 = vshrl.u32 %v2607, 7
    %v2609 = vsub.s32 %v2606, %v2608
    %v2610 = vrot.slane %v2602, %v2609
    %v2612 = vunpack.c.l.s4 1966171168
    %v2613 = vunpack.c.0.s8 %v2612
    %v2614 = vlaneseq
    %v2615 = vshrl.u32 %v2614, 7
    %v2616 = vsub.s32 %v2613, %v2615
    %v2617 = vrot.slane %v2603, %v2616
    %v2618 = vcombine.low %v2610, %v2617
    %v2619 = vcombine.low %v1882, %v1884
    %v2620 = vcombine.low %v1886, %v1910
    %v2621 = vcombine.low %v1924, %v1932
    %v2623 = vunpack.c.l.s4 1966171168
    %v2624 = vunpack.c.0.s8 %v2623
    %v2625 = vlaneseq
    %v2626 = vshrl.u32 %v2625, 7
    %v2627 = vsub.s32 %v2624, %v2626
    %v2628 = vrot.slane %v2619, %v2627
    %v2630 = vunpack.c.l.s4 1966171168
    %v2631 = vunpack.c.0.s8 %v2630
    %v2632 = vlaneseq
    %v2633 = vshrl.u32 %v2632, 7
    %v2634 = vsub.s32 %v2631, %v2633
    %v2635 = vrot.slane %v2620, %v2634
    %v2637 = vunpack.c.l.s4 1966171168
    %v2638 = vunpack.c.0.s8 %v2637
    %v2639 = vlaneseq
    %v2640 = vshrl.u32 %v2639, 7
    %v2641 = vsub.s32 %v2638, %v2640
    %v2642 = vrot.slane %v2621, %v2641
    %v2644 = vunpack.c.l.s4 1966171168
    %v2645 = vunpack.c.0.s8 %v2644
    %v2646 = vlaneseq
    %v2647 = vshrl.u32 %v2646, 7
    %v2648 = vsub.s32 %v2645, %v2647
    %v2649 = vrot.slane %v1934, %v2648
    %v2650 = vcombine.low %v2628, %v2635
    %v2651 = vcombine.low %v2642, %v2649
    %v2653 = vunpack.c.l.s4 1966171168
    %v2654 = vunpack.c.0.s8 %v2653
    %v2655 = vlaneseq
    %v2656 = vshrl.u32 %v2655, 7
    %v2657 = vsub.s32 %v2654, %v2656
    %v2658 = vrot.slane %v2650, %v2657
    %v2660 = vunpack.c.l.s4 1966171168
    %v2661 = vunpack.c.0.s8 %v2660
    %v2662 = vlaneseq
    %v2663 = vshrl.u32 %v2662, 7
    %v2664 = vsub.s32 %v2661, %v2663
    %v2665 = vrot.slane %v2651, %v2664
    %v2666 = vcombine.low %v2658, %v2665
    %v2667 = vcombine.low %v1917, %v1931
    %v2668 = vcombine.low %v1933, %v1935
    %v2669 = vcombine.low %v1959, %v1973
    %v2670 = vcombine.low %v1981, %v1983
    %v2672 = vunpack.c.l.s4 1966171168
    %v2673 = vunpack.c.0.s8 %v2672
    %v2674 = vlaneseq
    %v2675 = vshrl.u32 %v2674, 7
    %v2676 = vsub.s32 %v2673, %v2675
    %v2677 = vrot.slane %v2667, %v2676
    %v2679 = vunpack.c.l.s4 1966171168
    %v2680 = vunpack.c.0.s8 %v2679
    %v2681 = vlaneseq
    %v2682 = vshrl.u32 %v2681, 7
    %v2683 = vsub.s32 %v2680, %v2682
    %v2684 = vrot.slane %v2668, %v2683
    %v2686 = vunpack.c.l.s4 1966171168
    %v2687 = vunpack.c.0.s8 %v2686
    %v2688 = vlaneseq
    %v2689 = vshrl.u32 %v2688, 7
    %v2690 = vsub.s32 %v2687, %v2689
    %v2691 = vrot.slane %v2669, %v2690
    %v2693 = vunpack.c.l.s4 1966171168
    %v2694 = vunpack.c.0.s8 %v2693
    %v2695 = vlaneseq
    %v2696 = vshrl.u32 %v2695, 7
    %v2697 = vsub.s32 %v2694, %v2696
    %v2698 = vrot.slane %v2670, %v2697
    %v2699 = vcombine.low %v2677, %v2684
    %v2700 = vcombine.low %v2691, %v2698
    %v2702 = vunpack.c.l.s4 1966171168
    %v2703 = vunpack.c.0.s8 %v2702
    %v2704 = vlaneseq
    %v2705 = vshrl.u32 %v2704, 7
    %v2706 = vsub.s32 %v2703, %v2705
    %v2707 = vrot.slane %v2699, %v2706
    %v2709 = vunpack.c.l.s4 1966171168
    %v2710 = vunpack.c.0.s8 %v2709
    %v2711 = vlaneseq
    %v2712 = vshrl.u32 %v2711, 7
    %v2713 = vsub.s32 %v2710, %v2712
    %v2714 = vrot.slane %v2700, %v2713
    %v2715 = vcombine.low %v2707, %v2714
    %v2716 = vcombine.low %v1966, %v1980
    %v2717 = vcombine.low %v1982, %v1984
    %v2718 = vcombine.low %v2008, %v2022
    %v2720 = vunpack.c.l.s4 1966171168
    %v2721 = vunpack.c.0.s8 %v2720
    %v2722 = vlaneseq
    %v2723 = vshrl.u32 %v2722, 7
    %v2724 = vsub.s32 %v2721, %v2723
    %v2725 = vrot.slane %v2716, %v2724
    %v2727 = vunpack.c.l.s4 1966171168
    %v2728 = vunpack.c.0.s8 %v2727
    %v2729 = vlaneseq
    %v2730 = vshrl.u32 %v2729, 7
    %v2731 = vsub.s32 %v2728, %v2730
    %v2732 = vrot.slane %v2717, %v2731
    %v2734 = vunpack.c.l.s4 1966171168
    %v2735 = vunpack.c.0.s8 %v2734
    %v2736 = vlaneseq
    %v2737 = vshrl.u32 %v2736, 7
    %v2738 = vsub.s32 %v2735, %v2737
    %v2739 = vrot.slane %v2718, %v2738
    %v2741 = vunpack.c.l.s4 1966171168
    %v2742 = vunpack.c.0.s8 %v2741
    %v2743 = vlaneseq
    %v2744 = vshrl.u32 %v2743, 7
    %v2745 = vsub.s32 %v2742, %v2744
    %v2746 = vrot.slane %v2030, %v2745
    %v2747 = vcombine.low %v2725, %v2732
    %v2748 = vcombine.low %v2739, %v2746
    %v2750 = vunpack.c.l.s4 1966171168
    %v2751 = vunpack.c.0.s8 %v2750
    %v2752 = vlaneseq
    %v2753 = vshrl.u32 %v2752, 7
    %v2754 = vsub.s32 %v2751, %v2753
    %v2755 = vrot.slane %v2747, %v2754
    %v2757 = vunpack.c.l.s4 1966171168
    %v2758 = vunpack.c.0.s8 %v2757
    %v2759 = vlaneseq
    %v2760 = vshrl.u32 %v2759, 7
    %v2761 = vsub.s32 %v2758, %v2760
    %v2762 = vrot.slane %v2748, %v2761
    %v2763 = vcombine.low %v2755, %v2762
    %v2764 = vcombine.low %v2032, %v2015
    %v2765 = vcombine.low %v2029, %v2031
    %v2766 = vcombine.low %v2033, %v2057
    %v2767 = vcombine.low %v2071, %v2079
    %v2769 = vunpack.c.l.s4 1966171168
    %v2770 = vunpack.c.0.s8 %v2769
    %v2771 = vlaneseq
    %v2772 = vshrl.u32 %v2771, 7
    %v2773 = vsub.s32 %v2770, %v2772
    %v2774 = vrot.slane %v2764, %v2773
    %v2776 = vunpack.c.l.s4 1966171168
    %v2777 = vunpack.c.0.s8 %v2776
    %v2778 = vlaneseq
    %v2779 = vshrl.u32 %v2778, 7
    %v2780 = vsub.s32 %v2777, %v2779
    %v2781 = vrot.slane %v2765, %v2780
    %v2783 = vunpack.c.l.s4 1966171168
    %v2784 = vunpack.c.0.s8 %v2783
    %v2785 = vlaneseq
    %v2786 = vshrl.u32 %v2785, 7
    %v2787 = vsub.s32 %v2784, %v2786
    %v2788 = vrot.slane %v2766, %v2787
    %v2790 = vunpack.c.l.s4 1966171168
    %v2791 = vunpack.c.0.s8 %v2790
    %v2792 = vlaneseq
    %v2793 = vshrl.u32 %v2792, 7
    %v2794 = vsub.s32 %v2791, %v2793
    %v2795 = vrot.slane %v2767, %v2794
    %v2796 = vcombine.low %v2774, %v2781
    %v2797 = vcombine.low %v2788, %v2795
    %v2799 = vunpack.c.l.s4 1966171168
    %v2800 = vunpack.c.0.s8 %v2799
    %v2801 = vlaneseq
    %v2802 = vshrl.u32 %v2801, 7
    %v2803 = vsub.s32 %v2800, %v2802
    %v2804 = vrot.slane %v2796, %v2803
    %v2806 = vunpack.c.l.s4 1966171168
    %v2807 = vunpack.c.0.s8 %v2806
    %v2808 = vlaneseq
    %v2809 = vshrl.u32 %v2808, 7
    %v2810 = vsub.s32 %v2807, %v2809
    %v2811 = vrot.slane %v2797, %v2810
    %v2812 = vcombine.low %v2804, %v2811
    %v2813 = vcombine.low %v2081, %v2064
    %v2814 = vcombine.low %v2078, %v2080
    %v2815 = vcombine.low %v2082, %v2106
    %v2817 = vunpack.c.l.s4 1966171168
    %v2818 = vunpack.c.0.s8 %v2817
    %v2819 = vlaneseq
    %v2820 = vshrl.u32 %v2819, 7
    %v2821 = vsub.s32 %v2818, %v2820
    %v2822 = vrot.slane %v2813, %v2821
    %v2824 = vunpack.c.l.s4 1966171168
    %v2825 = vunpack.c.0.s8 %v2824
    %v2826 = vlaneseq
    %v2827 = vshrl.u32 %v2826, 7
    %v2828 = vsub.s32 %v2825, %v2827
    %v2829 = vrot.slane %v2814, %v2828
    %v2831 = vunpack.c.l.s4 1966171168
    %v2832 = vunpack.c.0.s8 %v2831
    %v2833 = vlaneseq
    %v2834 = vshrl.u32 %v2833, 7
    %v2835 = vsub.s32 %v2832, %v2834
    %v2836 = vrot.slane %v2815, %v2835
    %v2838 = vunpack.c.l.s4 1966171168
    %v2839 = vunpack.c.0.s8 %v2838
    %v2840 = vlaneseq
    %v2841 = vshrl.u32 %v2840, 7
    %v2842 = vsub.s32 %v2839, %v2841
    %v2843 = vrot.slane %v2120, %v2842
    %v2844 = vcombine.low %v2822, %v2829
    %v2845 = vcombine.low %v2836, %v2843
    %v2847 = vunpack.c.l.s4 1966171168
    %v2848 = vunpack.c.0.s8 %v2847
    %v2849 = vlaneseq
    %v2850 = vshrl.u32 %v2849, 7
    %v2851 = vsub.s32 %v2848, %v2850
    %v2852 = vrot.slane %v2844, %v2851
    %v2854 = vunpack.c.l.s4 1966171168
    %v2855 = vunpack.c.0.s8 %v2854
    %v2856 = vlaneseq
    %v2857 = vshrl.u32 %v2856, 7
    %v2858 = vsub.s32 %v2855, %v2857
    %v2859 = vrot.slane %v2845, %v2858
    %v2860 = vcombine.low %v2852, %v2859
    %v2861 = vcombine.low %v2128, %v2130
    %v2862 = vcombine.low %v2113, %v2127
    %v2863 = vcombine.low %v2129, %v2131
    %v2864 = vcombine.low %v2155, %v2169
    %v2866 = vunpack.c.l.s4 1966171168
    %v2867 = vunpack.c.0.s8 %v2866
    %v2868 = vlaneseq
    %v2869 = vshrl.u32 %v2868, 7
    %v2870 = vsub.s32 %v2867, %v2869
    %v2871 = vrot.slane %v2861, %v2870
    %v2873 = vunpack.c.l.s4 1966171168
    %v2874 = vunpack.c.0.s8 %v2873
    %v2875 = vlaneseq
    %v2876 = vshrl.u32 %v2875, 7
    %v2877 = vsub.s32 %v2874, %v2876
    %v2878 = vrot.slane %v2862, %v2877
    %v2880 = vunpack.c.l.s4 1966171168
    %v2881 = vunpack.c.0.s8 %v2880
    %v2882 = vlaneseq
    %v2883 = vshrl.u32 %v2882, 7
    %v2884 = vsub.s32 %v2881, %v2883
    %v2885 = vrot.slane %v2863, %v2884
    %v2887 = vunpack.c.l.s4 1966171168
    %v2888 = vunpack.c.0.s8 %v2887
    %v2889 = vlaneseq
    %v2890 = vshrl.u32 %v2889, 7
    %v2891 = vsub.s32 %v2888, %v2890
    %v2892 = vrot.slane %v2864, %v2891
    %v2893 = vcombine.low %v2871, %v2878
    %v2894 = vcombine.low %v2885, %v2892
    %v2896 = vunpack.c.l.s4 1966171168
    %v2897 = vunpack.c.0.s8 %v2896
    %v2898 = vlaneseq
    %v2899 = vshrl.u32 %v2898, 7
    %v2900 = vsub.s32 %v2897, %v2899
    %v2901 = vrot.slane %v2893, %v2900
    %v2903 = vunpack.c.l.s4 1966171168
    %v2904 = vunpack.c.0.s8 %v2903
    %v2905 = vlaneseq
    %v2906 = vshrl.u32 %v2905, 7
    %v2907 = vsub.s32 %v2904, %v2906
    %v2908 = vrot.slane %v2894, %v2907
    %v2909 = vcombine.low %v2901, %v2908
    %v2910 = vcombine.low %v2177, %v2179
    %v2911 = vcombine.low %v2162, %v2176
    %v2912 = vcombine.low %v2178, %v2180
    %v2914 = vunpack.c.l.s4 1966171168
    %v2915 = vunpack.c.0.s8 %v2914
    %v2916 = vlaneseq
    %v2917 = vshrl.u32 %v2916, 7
    %v2918 = vsub.s32 %v2915, %v2917
    %v2919 = vrot.slane %v2910, %v2918
    %v2921 = vunpack.c.l.s4 1966171168
    %v2922 = vunpack.c.0.s8 %v2921
    %v2923 = vlaneseq
    %v2924 = vshrl.u32 %v2923, 7
    %v2925 = vsub.s32 %v2922, %v2924
    %v2926 = vrot.slane %v2911, %v2925
    %v2928 = vunpack.c.l.s4 1966171168
    %v2929 = vunpack.c.0.s8 %v2928
    %v2930 = vlaneseq
    %v2931 = vshrl.u32 %v2930, 7
    %v2932 = vsub.s32 %v2929, %v2931
    %v2933 = vrot.slane %v2912, %v2932
    %v2935 = vunpack.c.l.s4 1966171168
    %v2936 = vunpack.c.0.s8 %v2935
    %v2937 = vlaneseq
    %v2938 = vshrl.u32 %v2937, 7
    %v2939 = vsub.s32 %v2936, %v2938
    %v2940 = vrot.slane %v2204, %v2939
    %v2941 = vcombine.low %v2919, %v2926
    %v2942 = vcombine.low %v2933, %v2940
    %v2944 = vunpack.c.l.s4 1966171168
    %v2945 = vunpack.c.0.s8 %v2944
    %v2946 = vlaneseq
    %v2947 = vshrl.u32 %v2946, 7
    %v2948 = vsub.s32 %v2945, %v2947
    %v2949 = vrot.slane %v2941, %v2948
    %v2951 = vunpack.c.l.s4 1966171168
    %v2952 = vunpack.c.0.s8 %v2951
    %v2953 = vlaneseq
    %v2954 = vshrl.u32 %v2953, 7
    %v2955 = vsub.s32 %v2952, %v2954
    %v2956 = vrot.slane %v2942, %v2955
    %v2957 = vcombine.low %v2949, %v2956
    %v2958 = vcombine.low %v2218, %v2226
    %v2959 = vcombine.low %v2228, %v2211
    %v2960 = vcombine.low %v2225, %v2227
    %v2961 = vcombine.low %v2229, %v2253
    %v2963 = vunpack.c.l.s4 1966171168
    %v2964 = vunpack.c.0.s8 %v2963
    %v2965 = vlaneseq
    %v2966 = vshrl.u32 %v2965, 7
    %v2967 = vsub.s32 %v2964, %v2966
    %v2968 = vrot.slane %v2958, %v2967
    %v2970 = vunpack.c.l.s4 1966171168
    %v2971 = vunpack.c.0.s8 %v2970
    %v2972 = vlaneseq
    %v2973 = vshrl.u32 %v2972, 7
    %v2974 = vsub.s32 %v2971, %v2973
    %v2975 = vrot.slane %v2959, %v2974
    %v2977 = vunpack.c.l.s4 1966171168
    %v2978 = vunpack.c.0.s8 %v2977
    %v2979 = vlaneseq
    %v2980 = vshrl.u32 %v2979, 7
    %v2981 = vsub.s32 %v2978, %v2980
    %v2982 = vrot.slane %v2960, %v2981
    %v2984 = vunpack.c.l.s4 1966171168
    %v2985 = vunpack.c.0.s8 %v2984
    %v2986 = vlaneseq
    %v2987 = vshrl.u32 %v2986, 7
    %v2988 = vsub.s32 %v2985, %v2987
    %v2989 = vrot.slane %v2961, %v2988
    %v2990 = vcombine.low %v2968, %v2975
    %v2991 = vcombine.low %v2982, %v2989
    %v2993 = vunpack.c.l.s4 1966171168
    %v2994 = vunpack.c.0.s8 %v2993
    %v2995 = vlaneseq
    %v2996 = vshrl.u32 %v2995, 7
    %v2997 = vsub.s32 %v2994, %v2996
    %v2998 = vrot.slane %v2990, %v2997
    %v3000 = vunpack.c.l.s4 1966171168
    %v3001 = vunpack.c.0.s8 %v3000
    %v3002 = vlaneseq
    %v3003 = vshrl.u32 %v3002, 7
    %v3004 = vsub.s32 %v3001, %v3003
    %v3005 = vrot.slane %v2991, %v3004
    %v3006 = vcombine.low %v2998, %v3005
    %v3007 = vcombine.low %v2267, %v2275
    %v3008 = vcombine.low %v2277, %v2260
    %v3009 = vcombine.low %v2274, %v2276
    %v3011 = vunpack.c.l.s4 1966171168
    %v3012 = vunpack.c.0.s8 %v3011
    %v3013 = vlaneseq
    %v3014 = vshrl.u32 %v3013, 7
    %v3015 = vsub.s32 %v3012, %v3014
    %v3016 = vrot.slane %v3007, %v3015
    %v3018 = vunpack.c.l.s4 1966171168
    %v3019 = vunpack.c.0.s8 %v3018
    %v3020 = vlaneseq
    %v3021 = vshrl.u32 %v3020, 7
    %v3022 = vsub.s32 %v3019, %v3021
    %v3023 = vrot.slane %v3008, %v3022
    %v3025 = vunpack.c.l.s4 1966171168
    %v3026 = vunpack.c.0.s8 %v3025
    %v3027 = vlaneseq
    %v3028 = vshrl.u32 %v3027, 7
    %v3029 = vsub.s32 %v3026, %v3028
    %v3030 = vrot.slane %v3009, %v3029
    %v3032 = vunpack.c.l.s4 1966171168
    %v3033 = vunpack.c.0.s8 %v3032
    %v3034 = vlaneseq
    %v3035 = vshrl.u32 %v3034, 7
    %v3036 = vsub.s32 %v3033, %v3035
    %v3037 = vrot.slane %v2278, %v3036
    %v3038 = vcombine.low %v3016, %v3023
    %v3039 = vcombine.low %v3030, %v3037
    %v3041 = vunpack.c.l.s4 1966171168
    %v3042 = vunpack.c.0.s8 %v3041
    %v3043 = vlaneseq
    %v3044 = vshrl.u32 %v3043, 7
    %v3045 = vsub.s32 %v3042, %v3044
    %v3046 = vrot.slane %v3038, %v3045
    %v3048 = vunpack.c.l.s4 1966171168
    %v3049 = vunpack.c.0.s8 %v3048
    %v3050 = vlaneseq
    %v3051 = vshrl.u32 %v3050, 7
    %v3052 = vsub.s32 %v3049, %v3051
    %v3053 = vrot.slane %v3039, %v3052
    %v3054 = vcombine.low %v3046, %v3053
    %vm3071 = vcmask 1046528
    %v3072 = vsel %vm3071, %v2375, -inf
    %v3073 = vmax.f32 %v2327, %v3072
    %v3074 = vrot.slane %v3073, 4
    %v3075 = vmax.f32 %v3073, %v3074
    %v3076 = vrot.slane %v3075, 2
    %v3077 = vmax.f32 %v3075, %v3076
    %v3078 = vrot.slane %v3077, 1
    %v3079 = vmax.f32 %v3077, %v3078
    %v3080 = vsel %vm3071, %v2472, -inf
    %v3081 = vmax.f32 %v2424, %v3080
    %v3082 = vrot.slane %v3081, 4
    %v3083 = vmax.f32 %v3081, %v3082
    %v3084 = vrot.slane %v3083, 2
    %v3085 = vmax.f32 %v3083, %v3084
    %v3086 = vrot.slane %v3085, 1
    %v3087 = vmax.f32 %v3085, %v3086
    %v3088 = vsel %vm3071, %v2569, -inf
    %v3089 = vmax.f32 %v2521, %v3088
    %v3090 = vrot.slane %v3089, 4
    %v3091 = vmax.f32 %v3089, %v3090
    %v3092 = vrot.slane %v3091, 2
    %v3093 = vmax.f32 %v3091, %v3092
    %v3094 = vrot.slane %v3093, 1
    %v3095 = vmax.f32 %v3093, %v3094
    %v3096 = vsel %vm3071, %v2666, -inf
    %v3097 = vmax.f32 %v2618, %v3096
    %v3098 = vrot.slane %v3097, 4
    %v3099 = vmax.f32 %v3097, %v3098
    %v3100 = vrot.slane %v3099, 2
    %v3101 = vmax.f32 %v3099, %v3100
    %v3102 = vrot.slane %v3101, 1
    %v3103 = vmax.f32 %v3101, %v3102
    %v3104 = vsel %vm3071, %v2763, -inf
    %v3105 = vmax.f32 %v2715, %v3104
    %v3106 = vrot.slane %v3105, 4
    %v3107 = vmax.f32 %v3105, %v3106
    %v3108 = vrot.slane %v3107, 2
    %v3109 = vmax.f32 %v3107, %v3108
    %v3110 = vrot.slane %v3109, 1
    %v3111 = vmax.f32 %v3109, %v3110
    %v3112 = vsel %vm3071, %v2860, -inf
    %v3113 = vmax.f32 %v2812, %v3112
    %v3114 = vrot.slane %v3113, 4
    %v3115 = vmax.f32 %v3113, %v3114
    %v3116 = vrot.slane %v3115, 2
    %v3117 = vmax.f32 %v3115, %v3116
    %v3118 = vrot.slane %v3117, 1
    %v3119 = vmax.f32 %v3117, %v3118
    %v3120 = vsel %vm3071, %v2957, -inf
    %v3121 = vmax.f32 %v2909, %v3120
    %v3122 = vrot.slane %v3121, 4
    %v3123 = vmax.f32 %v3121, %v3122
    %v3124 = vrot.slane %v3123, 2
    %v3125 = vmax.f32 %v3123, %v3124
    %v3126 = vrot.slane %v3125, 1
    %v3127 = vmax.f32 %v3125, %v3126
    %v3128 = vsel %vm3071, %v3054, -inf
    %v3129 = vmax.f32 %v3006, %v3128
    %v3130 = vrot.slane %v3129, 4
    %v3131 = vmax.f32 %v3129, %v3130
    %v3132 = vrot.slane %v3131, 2
    %v3133 = vmax.f32 %v3131, %v3132
    %v3134 = vrot.slane %v3133, 1
    %v3135 = vmax.f32 %v3133, %v3134
    %v3136 = vld [vmem:[%s2] sm:$0xff]
    %v3137 = vld [vmem:[%s2 + $0x8] sm:$0x77]
    %v3138 = vld [vmem:[%s2 + $0x10] sm:$0xff]
    %v3139 = vld [vmem:[%s2 + $0x18] sm:$0x77]
    %v3140 = vld [vmem:[%s2 + $0x20] sm:$0xff]
    %v3141 = vld [vmem:[%s2 + $0x28] sm:$0x77]
    %v3142 = vld [vmem:[%s2 + $0x30] sm:$0xff]
    %v3143 = vld [vmem:[%s2 + $0x38] sm:$0x77]
    %v3144 = vld [vmem:[%s2 + $0x40] sm:$0xff]
    %v3145 = vld [vmem:[%s2 + $0x48] sm:$0x77]
    %v3146 = vld [vmem:[%s2 + $0x50] sm:$0xff]
    %v3147 = vld [vmem:[%s2 + $0x58] sm:$0x77]
    %v3148 = vld [vmem:[%s2 + $0x60] sm:$0xff]
    %v3149 = vld [vmem:[%s2 + $0x68] sm:$0x77]
    %v3150 = vld [vmem:[%s2 + $0x70] sm:$0xff]
    %v3151 = vld [vmem:[%s2 + $0x78] sm:$0x77]
    %v3169 = vunpack.c.l.s4 1966171168
    %v3170 = vunpack.c.0.s8 %v3169
    %v3171 = vlaneseq
    %v3172 = vshrl.u32 %v3171, 7
    %v3173 = vsub.s32 %v3170, %v3172
    %v3174 = vrot.slane %v3136, %v3173
    %v3175 = vcombine.high %v3174, %v3174
    %v3177 = vunpack.c.l.s4 1966171168
    %v3178 = vunpack.c.0.s8 %v3177
    %v3179 = vlaneseq
    %v3180 = vshrl.u32 %v3179, 7
    %v3181 = vsub.s32 %v3178, %v3180
    %v3182 = vrot.slane %v3174, %v3181
    %v3184 = vunpack.c.l.s4 1966171168
    %v3185 = vunpack.c.0.s8 %v3184
    %v3186 = vlaneseq
    %v3187 = vshrl.u32 %v3186, 7
    %v3188 = vsub.s32 %v3185, %v3187
    %v3189 = vrot.slane %v3175, %v3188
    %v3190 = vcombine.high %v3182, %v3182
    %v3191 = vcombine.high %v3189, %v3189
    %v3193 = vunpack.c.l.s4 1966171168
    %v3194 = vunpack.c.0.s8 %v3193
    %v3195 = vlaneseq
    %v3196 = vshrl.u32 %v3195, 7
    %v3197 = vsub.s32 %v3194, %v3196
    %v3198 = vrot.slane %v3137, %v3197
    %v3199 = vcombine.high %v3198, %v3198
    %v3201 = vunpack.c.l.s4 1966171168
    %v3202 = vunpack.c.0.s8 %v3201
    %v3203 = vlaneseq
    %v3204 = vshrl.u32 %v3203, 7
    %v3205 = vsub.s32 %v3202, %v3204
    %v3206 = vrot.slane %v3198, %v3205
    %v3208 = vunpack.c.l.s4 1966171168
    %v3209 = vunpack.c.0.s8 %v3208
    %v3210 = vlaneseq
    %v3211 = vshrl.u32 %v3210, 7
    %v3212 = vsub.s32 %v3209, %v3211
    %v3213 = vrot.slane %v3199, %v3212
    %v3214 = vcombine.high %v3206, %v3206
    %v3216 = vunpack.c.l.s4 1966171168
    %v3217 = vunpack.c.0.s8 %v3216
    %v3218 = vlaneseq
    %v3219 = vshrl.u32 %v3218, 7
    %v3220 = vsub.s32 %v3217, %v3219
    %v3221 = vrot.slane %v3138, %v3220
    %v3222 = vcombine.high %v3221, %v3221
    %v3224 = vunpack.c.l.s4 1966171168
    %v3225 = vunpack.c.0.s8 %v3224
    %v3226 = vlaneseq
    %v3227 = vshrl.u32 %v3226, 7
    %v3228 = vsub.s32 %v3225, %v3227
    %v3229 = vrot.slane %v3221, %v3228
    %v3231 = vunpack.c.l.s4 1966171168
    %v3232 = vunpack.c.0.s8 %v3231
    %v3233 = vlaneseq
    %v3234 = vshrl.u32 %v3233, 7
    %v3235 = vsub.s32 %v3232, %v3234
    %v3236 = vrot.slane %v3222, %v3235
    %v3237 = vcombine.high %v3229, %v3229
    %v3238 = vcombine.high %v3236, %v3236
    %v3240 = vunpack.c.l.s4 1966171168
    %v3241 = vunpack.c.0.s8 %v3240
    %v3242 = vlaneseq
    %v3243 = vshrl.u32 %v3242, 7
    %v3244 = vsub.s32 %v3241, %v3243
    %v3245 = vrot.slane %v3139, %v3244
    %v3246 = vcombine.high %v3245, %v3245
    %v3248 = vunpack.c.l.s4 1966171168
    %v3249 = vunpack.c.0.s8 %v3248
    %v3250 = vlaneseq
    %v3251 = vshrl.u32 %v3250, 7
    %v3252 = vsub.s32 %v3249, %v3251
    %v3253 = vrot.slane %v3245, %v3252
    %v3255 = vunpack.c.l.s4 1966171168
    %v3256 = vunpack.c.0.s8 %v3255
    %v3257 = vlaneseq
    %v3258 = vshrl.u32 %v3257, 7
    %v3259 = vsub.s32 %v3256, %v3258
    %v3260 = vrot.slane %v3246, %v3259
    %v3261 = vcombine.high %v3253, %v3253
    %v3263 = vunpack.c.l.s4 1966171168
    %v3264 = vunpack.c.0.s8 %v3263
    %v3265 = vlaneseq
    %v3266 = vshrl.u32 %v3265, 7
    %v3267 = vsub.s32 %v3264, %v3266
    %v3268 = vrot.slane %v3140, %v3267
    %v3269 = vcombine.high %v3268, %v3268
    %v3271 = vunpack.c.l.s4 1966171168
    %v3272 = vunpack.c.0.s8 %v3271
    %v3273 = vlaneseq
    %v3274 = vshrl.u32 %v3273, 7
    %v3275 = vsub.s32 %v3272, %v3274
    %v3276 = vrot.slane %v3268, %v3275
    %v3278 = vunpack.c.l.s4 1966171168
    %v3279 = vunpack.c.0.s8 %v3278
    %v3280 = vlaneseq
    %v3281 = vshrl.u32 %v3280, 7
    %v3282 = vsub.s32 %v3279, %v3281
    %v3283 = vrot.slane %v3269, %v3282
    %v3284 = vcombine.high %v3276, %v3276
    %v3285 = vcombine.high %v3283, %v3283
    %v3287 = vunpack.c.l.s4 1966171168
    %v3288 = vunpack.c.0.s8 %v3287
    %v3289 = vlaneseq
    %v3290 = vshrl.u32 %v3289, 7
    %v3291 = vsub.s32 %v3288, %v3290
    %v3292 = vrot.slane %v3141, %v3291
    %v3293 = vcombine.high %v3292, %v3292
    %v3295 = vunpack.c.l.s4 1966171168
    %v3296 = vunpack.c.0.s8 %v3295
    %v3297 = vlaneseq
    %v3298 = vshrl.u32 %v3297, 7
    %v3299 = vsub.s32 %v3296, %v3298
    %v3300 = vrot.slane %v3292, %v3299
    %v3302 = vunpack.c.l.s4 1966171168
    %v3303 = vunpack.c.0.s8 %v3302
    %v3304 = vlaneseq
    %v3305 = vshrl.u32 %v3304, 7
    %v3306 = vsub.s32 %v3303, %v3305
    %v3307 = vrot.slane %v3293, %v3306
    %v3308 = vcombine.high %v3300, %v3300
    %v3310 = vunpack.c.l.s4 1966171168
    %v3311 = vunpack.c.0.s8 %v3310
    %v3312 = vlaneseq
    %v3313 = vshrl.u32 %v3312, 7
    %v3314 = vsub.s32 %v3311, %v3313
    %v3315 = vrot.slane %v3142, %v3314
    %v3316 = vcombine.high %v3315, %v3315
    %v3318 = vunpack.c.l.s4 1966171168
    %v3319 = vunpack.c.0.s8 %v3318
    %v3320 = vlaneseq
    %v3321 = vshrl.u32 %v3320, 7
    %v3322 = vsub.s32 %v3319, %v3321
    %v3323 = vrot.slane %v3315, %v3322
    %v3325 = vunpack.c.l.s4 1966171168
    %v3326 = vunpack.c.0.s8 %v3325
    %v3327 = vlaneseq
    %v3328 = vshrl.u32 %v3327, 7
    %v3329 = vsub.s32 %v3326, %v3328
    %v3330 = vrot.slane %v3316, %v3329
    %v3331 = vcombine.high %v3323, %v3323
    %v3332 = vcombine.high %v3330, %v3330
    %v3334 = vunpack.c.l.s4 1966171168
    %v3335 = vunpack.c.0.s8 %v3334
    %v3336 = vlaneseq
    %v3337 = vshrl.u32 %v3336, 7
    %v3338 = vsub.s32 %v3335, %v3337
    %v3339 = vrot.slane %v3143, %v3338
    %v3340 = vcombine.high %v3339, %v3339
    %v3342 = vunpack.c.l.s4 1966171168
    %v3343 = vunpack.c.0.s8 %v3342
    %v3344 = vlaneseq
    %v3345 = vshrl.u32 %v3344, 7
    %v3346 = vsub.s32 %v3343, %v3345
    %v3347 = vrot.slane %v3339, %v3346
    %v3349 = vunpack.c.l.s4 1966171168
    %v3350 = vunpack.c.0.s8 %v3349
    %v3351 = vlaneseq
    %v3352 = vshrl.u32 %v3351, 7
    %v3353 = vsub.s32 %v3350, %v3352
    %v3354 = vrot.slane %v3340, %v3353
    %v3355 = vcombine.high %v3347, %v3347
    %v3357 = vunpack.c.l.s4 1966171168
    %v3358 = vunpack.c.0.s8 %v3357
    %v3359 = vlaneseq
    %v3360 = vshrl.u32 %v3359, 7
    %v3361 = vsub.s32 %v3358, %v3360
    %v3362 = vrot.slane %v3144, %v3361
    %v3363 = vcombine.high %v3362, %v3362
    %v3365 = vunpack.c.l.s4 1966171168
    %v3366 = vunpack.c.0.s8 %v3365
    %v3367 = vlaneseq
    %v3368 = vshrl.u32 %v3367, 7
    %v3369 = vsub.s32 %v3366, %v3368
    %v3370 = vrot.slane %v3362, %v3369
    %v3372 = vunpack.c.l.s4 1966171168
    %v3373 = vunpack.c.0.s8 %v3372
    %v3374 = vlaneseq
    %v3375 = vshrl.u32 %v3374, 7
    %v3376 = vsub.s32 %v3373, %v3375
    %v3377 = vrot.slane %v3363, %v3376
    %v3378 = vcombine.high %v3370, %v3370
    %v3379 = vcombine.high %v3377, %v3377
    %v3381 = vunpack.c.l.s4 1966171168
    %v3382 = vunpack.c.0.s8 %v3381
    %v3383 = vlaneseq
    %v3384 = vshrl.u32 %v3383, 7
    %v3385 = vsub.s32 %v3382, %v3384
    %v3386 = vrot.slane %v3145, %v3385
    %v3387 = vcombine.high %v3386, %v3386
    %v3389 = vunpack.c.l.s4 1966171168
    %v3390 = vunpack.c.0.s8 %v3389
    %v3391 = vlaneseq
    %v3392 = vshrl.u32 %v3391, 7
    %v3393 = vsub.s32 %v3390, %v3392
    %v3394 = vrot.slane %v3386, %v3393
    %v3396 = vunpack.c.l.s4 1966171168
    %v3397 = vunpack.c.0.s8 %v3396
    %v3398 = vlaneseq
    %v3399 = vshrl.u32 %v3398, 7
    %v3400 = vsub.s32 %v3397, %v3399
    %v3401 = vrot.slane %v3387, %v3400
    %v3402 = vcombine.high %v3394, %v3394
    %v3404 = vunpack.c.l.s4 1966171168
    %v3405 = vunpack.c.0.s8 %v3404
    %v3406 = vlaneseq
    %v3407 = vshrl.u32 %v3406, 7
    %v3408 = vsub.s32 %v3405, %v3407
    %v3409 = vrot.slane %v3146, %v3408
    %v3410 = vcombine.high %v3409, %v3409
    %v3412 = vunpack.c.l.s4 1966171168
    %v3413 = vunpack.c.0.s8 %v3412
    %v3414 = vlaneseq
    %v3415 = vshrl.u32 %v3414, 7
    %v3416 = vsub.s32 %v3413, %v3415
    %v3417 = vrot.slane %v3409, %v3416
    %v3419 = vunpack.c.l.s4 1966171168
    %v3420 = vunpack.c.0.s8 %v3419
    %v3421 = vlaneseq
    %v3422 = vshrl.u32 %v3421, 7
    %v3423 = vsub.s32 %v3420, %v3422
    %v3424 = vrot.slane %v3410, %v3423
    %v3425 = vcombine.high %v3417, %v3417
    %v3426 = vcombine.high %v3424, %v3424
    %v3428 = vunpack.c.l.s4 1966171168
    %v3429 = vunpack.c.0.s8 %v3428
    %v3430 = vlaneseq
    %v3431 = vshrl.u32 %v3430, 7
    %v3432 = vsub.s32 %v3429, %v3431
    %v3433 = vrot.slane %v3147, %v3432
    %v3434 = vcombine.high %v3433, %v3433
    %v3436 = vunpack.c.l.s4 1966171168
    %v3437 = vunpack.c.0.s8 %v3436
    %v3438 = vlaneseq
    %v3439 = vshrl.u32 %v3438, 7
    %v3440 = vsub.s32 %v3437, %v3439
    %v3441 = vrot.slane %v3433, %v3440
    %v3443 = vunpack.c.l.s4 1966171168
    %v3444 = vunpack.c.0.s8 %v3443
    %v3445 = vlaneseq
    %v3446 = vshrl.u32 %v3445, 7
    %v3447 = vsub.s32 %v3444, %v3446
    %v3448 = vrot.slane %v3434, %v3447
    %v3449 = vcombine.high %v3441, %v3441
    %v3451 = vunpack.c.l.s4 1966171168
    %v3452 = vunpack.c.0.s8 %v3451
    %v3453 = vlaneseq
    %v3454 = vshrl.u32 %v3453, 7
    %v3455 = vsub.s32 %v3452, %v3454
    %v3456 = vrot.slane %v3148, %v3455
    %v3457 = vcombine.high %v3456, %v3456
    %v3459 = vunpack.c.l.s4 1966171168
    %v3460 = vunpack.c.0.s8 %v3459
    %v3461 = vlaneseq
    %v3462 = vshrl.u32 %v3461, 7
    %v3463 = vsub.s32 %v3460, %v3462
    %v3464 = vrot.slane %v3456, %v3463
    %v3466 = vunpack.c.l.s4 1966171168
    %v3467 = vunpack.c.0.s8 %v3466
    %v3468 = vlaneseq
    %v3469 = vshrl.u32 %v3468, 7
    %v3470 = vsub.s32 %v3467, %v3469
    %v3471 = vrot.slane %v3457, %v3470
    %v3472 = vcombine.high %v3464, %v3464
    %v3473 = vcombine.high %v3471, %v3471
    %v3475 = vunpack.c.l.s4 1966171168
    %v3476 = vunpack.c.0.s8 %v3475
    %v3477 = vlaneseq
    %v3478 = vshrl.u32 %v3477, 7
    %v3479 = vsub.s32 %v3476, %v3478
    %v3480 = vrot.slane %v3149, %v3479
    %v3481 = vcombine.high %v3480, %v3480
    %v3483 = vunpack.c.l.s4 1966171168
    %v3484 = vunpack.c.0.s8 %v3483
    %v3485 = vlaneseq
    %v3486 = vshrl.u32 %v3485, 7
    %v3487 = vsub.s32 %v3484, %v3486
    %v3488 = vrot.slane %v3480, %v3487
    %v3490 = vunpack.c.l.s4 1966171168
    %v3491 = vunpack.c.0.s8 %v3490
    %v3492 = vlaneseq
    %v3493 = vshrl.u32 %v3492, 7
    %v3494 = vsub.s32 %v3491, %v3493
    %v3495 = vrot.slane %v3481, %v3494
    %v3496 = vcombine.high %v3488, %v3488
    %v3498 = vunpack.c.l.s4 1966171168
    %v3499 = vunpack.c.0.s8 %v3498
    %v3500 = vlaneseq
    %v3501 = vshrl.u32 %v3500, 7
    %v3502 = vsub.s32 %v3499, %v3501
    %v3503 = vrot.slane %v3150, %v3502
    %v3504 = vcombine.high %v3503, %v3503
    %v3506 = vunpack.c.l.s4 1966171168
    %v3507 = vunpack.c.0.s8 %v3506
    %v3508 = vlaneseq
    %v3509 = vshrl.u32 %v3508, 7
    %v3510 = vsub.s32 %v3507, %v3509
    %v3511 = vrot.slane %v3503, %v3510
    %v3513 = vunpack.c.l.s4 1966171168
    %v3514 = vunpack.c.0.s8 %v3513
    %v3515 = vlaneseq
    %v3516 = vshrl.u32 %v3515, 7
    %v3517 = vsub.s32 %v3514, %v3516
    %v3518 = vrot.slane %v3504, %v3517
    %v3519 = vcombine.high %v3511, %v3511
    %v3520 = vcombine.high %v3518, %v3518
    %v3522 = vunpack.c.l.s4 1966171168
    %v3523 = vunpack.c.0.s8 %v3522
    %v3524 = vlaneseq
    %v3525 = vshrl.u32 %v3524, 7
    %v3526 = vsub.s32 %v3523, %v3525
    %v3527 = vrot.slane %v3151, %v3526
    %v3528 = vcombine.high %v3527, %v3527
    %v3530 = vunpack.c.l.s4 1966171168
    %v3531 = vunpack.c.0.s8 %v3530
    %v3532 = vlaneseq
    %v3533 = vshrl.u32 %v3532, 7
    %v3534 = vsub.s32 %v3531, %v3533
    %v3535 = vrot.slane %v3527, %v3534
    %v3537 = vunpack.c.l.s4 1966171168
    %v3538 = vunpack.c.0.s8 %v3537
    %v3539 = vlaneseq
    %v3540 = vshrl.u32 %v3539, 7
    %v3541 = vsub.s32 %v3538, %v3540
    %v3542 = vrot.slane %v3528, %v3541
    %v3543 = vcombine.high %v3535, %v3535
    %v3544 = vld [vmem:[%s7] sm:$0xf]
    %v3545 = vld [vmem:[%s7 + $0x4] sm:$0xf]
    %v3546 = vld [vmem:[%s7 + $0x8] sm:$0xf]
    %v3547 = vld [vmem:[%s7 + $0xc] sm:$0xf]
    %v3548 = vld [vmem:[%s7 + $0x10] sm:$0xf]
    %v3549 = vld [vmem:[%s7 + $0x14] sm:$0xf]
    %v3550 = vld [vmem:[%s7 + $0x18] sm:$0xf]
    %v3551 = vld [vmem:[%s7 + $0x1c] sm:$0xf]
    %v3552 = vld [vmem:[%s7 + $0x20] sm:$0xf]
    %v3553 = vld [vmem:[%s7 + $0x24] sm:$0xf]
    %v3554 = vld [vmem:[%s7 + $0x28] sm:$0xf]
    %v3555 = vld [vmem:[%s7 + $0x2c] sm:$0xf]
    %v3556 = vld [vmem:[%s7 + $0x30] sm:$0xf]
    %v3557 = vld [vmem:[%s7 + $0x34] sm:$0xf]
    %v3558 = vld [vmem:[%s7 + $0x38] sm:$0xf]
    %v3559 = vld [vmem:[%s7 + $0x3c] sm:$0xf]
    %v3560 = vld [vmem:[%s7 + $0x40] sm:$0xf]
    %v3561 = vld [vmem:[%s7 + $0x44] sm:$0xf]
    %v3562 = vld [vmem:[%s7 + $0x48] sm:$0xf]
    %v3563 = vld [vmem:[%s7 + $0x4c] sm:$0xf]
    %v3564 = vld [vmem:[%s8] sm:$0x1]
    %v3566 = vlaneseq
    %v3567 = vshrl.u32 %v3566, 7
    %v3568 = vsub.s32 0, %v3567
    %v3569 = vrot.slane %v3564, %v3568
    %v3571 = vcombine.low %v3182, %v3189
    %v3572 = vcombine.low %v3190, %v3191
    %v3573 = vcombine.low %v3206, %v3213
    %v3574 = vcombine.low %v3214, %v3229
    %v3576 = vunpack.c.l.s4 1966171168
    %v3577 = vunpack.c.0.s8 %v3576
    %v3578 = vlaneseq
    %v3579 = vshrl.u32 %v3578, 7
    %v3580 = vsub.s32 %v3577, %v3579
    %v3581 = vrot.slane %v3571, %v3580
    %v3583 = vunpack.c.l.s4 1966171168
    %v3584 = vunpack.c.0.s8 %v3583
    %v3585 = vlaneseq
    %v3586 = vshrl.u32 %v3585, 7
    %v3587 = vsub.s32 %v3584, %v3586
    %v3588 = vrot.slane %v3572, %v3587
    %v3590 = vunpack.c.l.s4 1966171168
    %v3591 = vunpack.c.0.s8 %v3590
    %v3592 = vlaneseq
    %v3593 = vshrl.u32 %v3592, 7
    %v3594 = vsub.s32 %v3591, %v3593
    %v3595 = vrot.slane %v3573, %v3594
    %v3597 = vunpack.c.l.s4 1966171168
    %v3598 = vunpack.c.0.s8 %v3597
    %v3599 = vlaneseq
    %v3600 = vshrl.u32 %v3599, 7
    %v3601 = vsub.s32 %v3598, %v3600
    %v3602 = vrot.slane %v3574, %v3601
    %v3603 = vcombine.low %v3581, %v3588
    %v3604 = vcombine.high %v3581, %v3588
    %v3605 = vcombine.low %v3595, %v3602
    %v3606 = vcombine.high %v3595, %v3602
    %v3608 = vunpack.c.l.s4 1966171168
    %v3609 = vunpack.c.0.s8 %v3608
    %v3610 = vlaneseq
    %v3611 = vshrl.u32 %v3610, 7
    %v3612 = vsub.s32 %v3609, %v3611
    %v3613 = vrot.slane %v3603, %v3612
    %v3615 = vunpack.c.l.s4 1966171168
    %v3616 = vunpack.c.0.s8 %v3615
    %v3617 = vlaneseq
    %v3618 = vshrl.u32 %v3617, 7
    %v3619 = vsub.s32 %v3616, %v3618
    %v3620 = vrot.slane %v3604, %v3619
    %v3622 = vunpack.c.l.s4 1966171168
    %v3623 = vunpack.c.0.s8 %v3622
    %v3624 = vlaneseq
    %v3625 = vshrl.u32 %v3624, 7
    %v3626 = vsub.s32 %v3623, %v3625
    %v3627 = vrot.slane %v3605, %v3626
    %v3629 = vunpack.c.l.s4 1966171168
    %v3630 = vunpack.c.0.s8 %v3629
    %v3631 = vlaneseq
    %v3632 = vshrl.u32 %v3631, 7
    %v3633 = vsub.s32 %v3630, %v3632
    %v3634 = vrot.slane %v3606, %v3633
    %v3635 = vcombine.low %v3613, %v3627
    %v3636 = vcombine.low %v3620, %v3634
    %v3637 = vcombine.low %v3236, %v3237
    %v3638 = vcombine.low %v3238, %v3253
    %v3639 = vcombine.low %v3260, %v3261
    %v3640 = vcombine.low %v3276, %v3283
    %v3642 = vunpack.c.l.s4 1966171168
    %v3643 = vunpack.c.0.s8 %v3642
    %v3644 = vlaneseq
    %v3645 = vshrl.u32 %v3644, 7
    %v3646 = vsub.s32 %v3643, %v3645
    %v3647 = vrot.slane %v3637, %v3646
    %v3649 = vunpack.c.l.s4 1966171168
    %v3650 = vunpack.c.0.s8 %v3649
    %v3651 = vlaneseq
    %v3652 = vshrl.u32 %v3651, 7
    %v3653 = vsub.s32 %v3650, %v3652
    %v3654 = vrot.slane %v3638, %v3653
    %v3656 = vunpack.c.l.s4 1966171168
    %v3657 = vunpack.c.0.s8 %v3656
    %v3658 = vlaneseq
    %v3659 = vshrl.u32 %v3658, 7
    %v3660 = vsub.s32 %v3657, %v3659
    %v3661 = vrot.slane %v3639, %v3660
    %v3663 = vunpack.c.l.s4 1966171168
    %v3664 = vunpack.c.0.s8 %v3663
    %v3665 = vlaneseq
    %v3666 = vshrl.u32 %v3665, 7
    %v3667 = vsub.s32 %v3664, %v3666
    %v3668 = vrot.slane %v3640, %v3667
    %v3669 = vcombine.low %v3647, %v3654
    %v3670 = vcombine.high %v3647, %v3654
    %v3671 = vcombine.low %v3661, %v3668
    %v3672 = vcombine.high %v3661, %v3668
    %v3674 = vunpack.c.l.s4 1966171168
    %v3675 = vunpack.c.0.s8 %v3674
    %v3676 = vlaneseq
    %v3677 = vshrl.u32 %v3676, 7
    %v3678 = vsub.s32 %v3675, %v3677
    %v3679 = vrot.slane %v3669, %v3678
    %v3681 = vunpack.c.l.s4 1966171168
    %v3682 = vunpack.c.0.s8 %v3681
    %v3683 = vlaneseq
    %v3684 = vshrl.u32 %v3683, 7
    %v3685 = vsub.s32 %v3682, %v3684
    %v3686 = vrot.slane %v3670, %v3685
    %v3688 = vunpack.c.l.s4 1966171168
    %v3689 = vunpack.c.0.s8 %v3688
    %v3690 = vlaneseq
    %v3691 = vshrl.u32 %v3690, 7
    %v3692 = vsub.s32 %v3689, %v3691
    %v3693 = vrot.slane %v3671, %v3692
    %v3695 = vunpack.c.l.s4 1966171168
    %v3696 = vunpack.c.0.s8 %v3695
    %v3697 = vlaneseq
    %v3698 = vshrl.u32 %v3697, 7
    %v3699 = vsub.s32 %v3696, %v3698
    %v3700 = vrot.slane %v3672, %v3699
    %v3701 = vcombine.low %v3679, %v3693
    %v3702 = vcombine.low %v3686, %v3700
    %v3703 = vcombine.low %v3284, %v3285
    %v3704 = vcombine.low %v3300, %v3307
    %v3705 = vcombine.low %v3308, %v3323
    %v3706 = vcombine.low %v3330, %v3331
    %v3708 = vunpack.c.l.s4 1966171168
    %v3709 = vunpack.c.0.s8 %v3708
    %v3710 = vlaneseq
    %v3711 = vshrl.u32 %v3710, 7
    %v3712 = vsub.s32 %v3709, %v3711
    %v3713 = vrot.slane %v3703, %v3712
    %v3715 = vunpack.c.l.s4 1966171168
    %v3716 = vunpack.c.0.s8 %v3715
    %v3717 = vlaneseq
    %v3718 = vshrl.u32 %v3717, 7
    %v3719 = vsub.s32 %v3716, %v3718
    %v3720 = vrot.slane %v3704, %v3719
    %v3722 = vunpack.c.l.s4 1966171168
    %v3723 = vunpack.c.0.s8 %v3722
    %v3724 = vlaneseq
    %v3725 = vshrl.u32 %v3724, 7
    %v3726 = vsub.s32 %v3723, %v3725
    %v3727 = vrot.slane %v3705, %v3726
    %v3729 = vunpack.c.l.s4 1966171168
    %v3730 = vunpack.c.0.s8 %v3729
    %v3731 = vlaneseq
    %v3732 = vshrl.u32 %v3731, 7
    %v3733 = vsub.s32 %v3730, %v3732
    %v3734 = vrot.slane %v3706, %v3733
    %v3735 = vcombine.low %v3713, %v3720
    %v3736 = vcombine.high %v3713, %v3720
    %v3737 = vcombine.low %v3727, %v3734
    %v3738 = vcombine.high %v3727, %v3734
    %v3740 = vunpack.c.l.s4 1966171168
    %v3741 = vunpack.c.0.s8 %v3740
    %v3742 = vlaneseq
    %v3743 = vshrl.u32 %v3742, 7
    %v3744 = vsub.s32 %v3741, %v3743
    %v3745 = vrot.slane %v3735, %v3744
    %v3747 = vunpack.c.l.s4 1966171168
    %v3748 = vunpack.c.0.s8 %v3747
    %v3749 = vlaneseq
    %v3750 = vshrl.u32 %v3749, 7
    %v3751 = vsub.s32 %v3748, %v3750
    %v3752 = vrot.slane %v3736, %v3751
    %v3754 = vunpack.c.l.s4 1966171168
    %v3755 = vunpack.c.0.s8 %v3754
    %v3756 = vlaneseq
    %v3757 = vshrl.u32 %v3756, 7
    %v3758 = vsub.s32 %v3755, %v3757
    %v3759 = vrot.slane %v3737, %v3758
    %v3761 = vunpack.c.l.s4 1966171168
    %v3762 = vunpack.c.0.s8 %v3761
    %v3763 = vlaneseq
    %v3764 = vshrl.u32 %v3763, 7
    %v3765 = vsub.s32 %v3762, %v3764
    %v3766 = vrot.slane %v3738, %v3765
    %v3767 = vcombine.low %v3745, %v3759
    %v3768 = vcombine.low %v3752, %v3766
    %v3769 = vcombine.low %v3332, %v3347
    %v3770 = vcombine.low %v3354, %v3355
    %v3771 = vcombine.low %v3370, %v3377
    %v3772 = vcombine.low %v3378, %v3379
    %v3774 = vunpack.c.l.s4 1966171168
    %v3775 = vunpack.c.0.s8 %v3774
    %v3776 = vlaneseq
    %v3777 = vshrl.u32 %v3776, 7
    %v3778 = vsub.s32 %v3775, %v3777
    %v3779 = vrot.slane %v3769, %v3778
    %v3781 = vunpack.c.l.s4 1966171168
    %v3782 = vunpack.c.0.s8 %v3781
    %v3783 = vlaneseq
    %v3784 = vshrl.u32 %v3783, 7
    %v3785 = vsub.s32 %v3782, %v3784
    %v3786 = vrot.slane %v3770, %v3785
    %v3788 = vunpack.c.l.s4 1966171168
    %v3789 = vunpack.c.0.s8 %v3788
    %v3790 = vlaneseq
    %v3791 = vshrl.u32 %v3790, 7
    %v3792 = vsub.s32 %v3789, %v3791
    %v3793 = vrot.slane %v3771, %v3792
    %v3795 = vunpack.c.l.s4 1966171168
    %v3796 = vunpack.c.0.s8 %v3795
    %v3797 = vlaneseq
    %v3798 = vshrl.u32 %v3797, 7
    %v3799 = vsub.s32 %v3796, %v3798
    %v3800 = vrot.slane %v3772, %v3799
    %v3801 = vcombine.low %v3779, %v3786
    %v3802 = vcombine.high %v3779, %v3786
    %v3803 = vcombine.low %v3793, %v3800
    %v3804 = vcombine.high %v3793, %v3800
    %v3806 = vunpack.c.l.s4 1966171168
    %v3807 = vunpack.c.0.s8 %v3806
    %v3808 = vlaneseq
    %v3809 = vshrl.u32 %v3808, 7
    %v3810 = vsub.s32 %v3807, %v3809
    %v3811 = vrot.slane %v3801, %v3810
    %v3813 = vunpack.c.l.s4 1966171168
    %v3814 = vunpack.c.0.s8 %v3813
    %v3815 = vlaneseq
    %v3816 = vshrl.u32 %v3815, 7
    %v3817 = vsub.s32 %v3814, %v3816
    %v3818 = vrot.slane %v3802, %v3817
    %v3820 = vunpack.c.l.s4 1966171168
    %v3821 = vunpack.c.0.s8 %v3820
    %v3822 = vlaneseq
    %v3823 = vshrl.u32 %v3822, 7
    %v3824 = vsub.s32 %v3821, %v3823
    %v3825 = vrot.slane %v3803, %v3824
    %v3827 = vunpack.c.l.s4 1966171168
    %v3828 = vunpack.c.0.s8 %v3827
    %v3829 = vlaneseq
    %v3830 = vshrl.u32 %v3829, 7
    %v3831 = vsub.s32 %v3828, %v3830
    %v3832 = vrot.slane %v3804, %v3831
    %v3833 = vcombine.low %v3811, %v3825
    %v3834 = vcombine.low %v3818, %v3832
    %v3835 = vcombine.low %v3394, %v3401
    %v3836 = vcombine.low %v3402, %v3417
    %v3837 = vcombine.low %v3424, %v3425
    %v3838 = vcombine.low %v3426, %v3441
    %v3840 = vunpack.c.l.s4 1966171168
    %v3841 = vunpack.c.0.s8 %v3840
    %v3842 = vlaneseq
    %v3843 = vshrl.u32 %v3842, 7
    %v3844 = vsub.s32 %v3841, %v3843
    %v3845 = vrot.slane %v3835, %v3844
    %v3847 = vunpack.c.l.s4 1966171168
    %v3848 = vunpack.c.0.s8 %v3847
    %v3849 = vlaneseq
    %v3850 = vshrl.u32 %v3849, 7
    %v3851 = vsub.s32 %v3848, %v3850
    %v3852 = vrot.slane %v3836, %v3851
    %v3854 = vunpack.c.l.s4 1966171168
    %v3855 = vunpack.c.0.s8 %v3854
    %v3856 = vlaneseq
    %v3857 = vshrl.u32 %v3856, 7
    %v3858 = vsub.s32 %v3855, %v3857
    %v3859 = vrot.slane %v3837, %v3858
    %v3861 = vunpack.c.l.s4 1966171168
    %v3862 = vunpack.c.0.s8 %v3861
    %v3863 = vlaneseq
    %v3864 = vshrl.u32 %v3863, 7
    %v3865 = vsub.s32 %v3862, %v3864
    %v3866 = vrot.slane %v3838, %v3865
    %v3867 = vcombine.low %v3845, %v3852
    %v3868 = vcombine.high %v3845, %v3852
    %v3869 = vcombine.low %v3859, %v3866
    %v3870 = vcombine.high %v3859, %v3866
    %v3872 = vunpack.c.l.s4 1966171168
    %v3873 = vunpack.c.0.s8 %v3872
    %v3874 = vlaneseq
    %v3875 = vshrl.u32 %v3874, 7
    %v3876 = vsub.s32 %v3873, %v3875
    %v3877 = vrot.slane %v3867, %v3876
    %v3879 = vunpack.c.l.s4 1966171168
    %v3880 = vunpack.c.0.s8 %v3879
    %v3881 = vlaneseq
    %v3882 = vshrl.u32 %v3881, 7
    %v3883 = vsub.s32 %v3880, %v3882
    %v3884 = vrot.slane %v3868, %v3883
    %v3886 = vunpack.c.l.s4 1966171168
    %v3887 = vunpack.c.0.s8 %v3886
    %v3888 = vlaneseq
    %v3889 = vshrl.u32 %v3888, 7
    %v3890 = vsub.s32 %v3887, %v3889
    %v3891 = vrot.slane %v3869, %v3890
    %v3893 = vunpack.c.l.s4 1966171168
    %v3894 = vunpack.c.0.s8 %v3893
    %v3895 = vlaneseq
    %v3896 = vshrl.u32 %v3895, 7
    %v3897 = vsub.s32 %v3894, %v3896
    %v3898 = vrot.slane %v3870, %v3897
    %v3899 = vcombine.low %v3877, %v3891
    %v3900 = vcombine.low %v3884, %v3898
    %v3901 = vcombine.low %v3448, %v3449
    %v3902 = vcombine.low %v3464, %v3471
    %v3903 = vcombine.low %v3472, %v3473
    %v3904 = vcombine.low %v3488, %v3495
    %v3906 = vunpack.c.l.s4 1966171168
    %v3907 = vunpack.c.0.s8 %v3906
    %v3908 = vlaneseq
    %v3909 = vshrl.u32 %v3908, 7
    %v3910 = vsub.s32 %v3907, %v3909
    %v3911 = vrot.slane %v3901, %v3910
    %v3913 = vunpack.c.l.s4 1966171168
    %v3914 = vunpack.c.0.s8 %v3913
    %v3915 = vlaneseq
    %v3916 = vshrl.u32 %v3915, 7
    %v3917 = vsub.s32 %v3914, %v3916
    %v3918 = vrot.slane %v3902, %v3917
    %v3920 = vunpack.c.l.s4 1966171168
    %v3921 = vunpack.c.0.s8 %v3920
    %v3922 = vlaneseq
    %v3923 = vshrl.u32 %v3922, 7
    %v3924 = vsub.s32 %v3921, %v3923
    %v3925 = vrot.slane %v3903, %v3924
    %v3927 = vunpack.c.l.s4 1966171168
    %v3928 = vunpack.c.0.s8 %v3927
    %v3929 = vlaneseq
    %v3930 = vshrl.u32 %v3929, 7
    %v3931 = vsub.s32 %v3928, %v3930
    %v3932 = vrot.slane %v3904, %v3931
    %v3933 = vcombine.low %v3911, %v3918
    %v3934 = vcombine.high %v3911, %v3918
    %v3935 = vcombine.low %v3925, %v3932
    %v3936 = vcombine.high %v3925, %v3932
    %v3938 = vunpack.c.l.s4 1966171168
    %v3939 = vunpack.c.0.s8 %v3938
    %v3940 = vlaneseq
    %v3941 = vshrl.u32 %v3940, 7
    %v3942 = vsub.s32 %v3939, %v3941
    %v3943 = vrot.slane %v3933, %v3942
    %v3945 = vunpack.c.l.s4 1966171168
    %v3946 = vunpack.c.0.s8 %v3945
    %v3947 = vlaneseq
    %v3948 = vshrl.u32 %v3947, 7
    %v3949 = vsub.s32 %v3946, %v3948
    %v3950 = vrot.slane %v3934, %v3949
    %v3952 = vunpack.c.l.s4 1966171168
    %v3953 = vunpack.c.0.s8 %v3952
    %v3954 = vlaneseq
    %v3955 = vshrl.u32 %v3954, 7
    %v3956 = vsub.s32 %v3953, %v3955
    %v3957 = vrot.slane %v3935, %v3956
    %v3959 = vunpack.c.l.s4 1966171168
    %v3960 = vunpack.c.0.s8 %v3959
    %v3961 = vlaneseq
    %v3962 = vshrl.u32 %v3961, 7
    %v3963 = vsub.s32 %v3960, %v3962
    %v3964 = vrot.slane %v3936, %v3963
    %v3965 = vcombine.low %v3943, %v3957
    %v3966 = vcombine.low %v3950, %v3964
    %v3967 = vcombine.low %v3496, %v3511
    %v3968 = vcombine.low %v3518, %v3519
    %v3969 = vcombine.low %v3520, %v3535
    %v3970 = vcombine.low %v3542, %v3543
    %v3972 = vunpack.c.l.s4 1966171168
    %v3973 = vunpack.c.0.s8 %v3972
    %v3974 = vlaneseq
    %v3975 = vshrl.u32 %v3974, 7
    %v3976 = vsub.s32 %v3973, %v3975
    %v3977 = vrot.slane %v3967, %v3976
    %v3979 = vunpack.c.l.s4 1966171168
    %v3980 = vunpack.c.0.s8 %v3979
    %v3981 = vlaneseq
    %v3982 = vshrl.u32 %v3981, 7
    %v3983 = vsub.s32 %v3980, %v3982
    %v3984 = vrot.slane %v3968, %v3983
    %v3986 = vunpack.c.l.s4 1966171168
    %v3987 = vunpack.c.0.s8 %v3986
    %v3988 = vlaneseq
    %v3989 = vshrl.u32 %v3988, 7
    %v3990 = vsub.s32 %v3987, %v3989
    %v3991 = vrot.slane %v3969, %v3990
    %v3993 = vunpack.c.l.s4 1966171168
    %v3994 = vunpack.c.0.s8 %v3993
    %v3995 = vlaneseq
    %v3996 = vshrl.u32 %v3995, 7
    %v3997 = vsub.s32 %v3994, %v3996
    %v3998 = vrot.slane %v3970, %v3997
    %v3999 = vcombine.low %v3977, %v3984
    %v4000 = vcombine.high %v3977, %v3984
    %v4001 = vcombine.low %v3991, %v3998
    %v4002 = vcombine.high %v3991, %v3998
    %v4004 = vunpack.c.l.s4 1966171168
    %v4005 = vunpack.c.0.s8 %v4004
    %v4006 = vlaneseq
    %v4007 = vshrl.u32 %v4006, 7
    %v4008 = vsub.s32 %v4005, %v4007
    %v4009 = vrot.slane %v3999, %v4008
    %v4011 = vunpack.c.l.s4 1966171168
    %v4012 = vunpack.c.0.s8 %v4011
    %v4013 = vlaneseq
    %v4014 = vshrl.u32 %v4013, 7
    %v4015 = vsub.s32 %v4012, %v4014
    %v4016 = vrot.slane %v4000, %v4015
    %v4018 = vunpack.c.l.s4 1966171168
    %v4019 = vunpack.c.0.s8 %v4018
    %v4020 = vlaneseq
    %v4021 = vshrl.u32 %v4020, 7
    %v4022 = vsub.s32 %v4019, %v4021
    %v4023 = vrot.slane %v4001, %v4022
    %v4025 = vunpack.c.l.s4 1966171168
    %v4026 = vunpack.c.0.s8 %v4025
    %v4027 = vlaneseq
    %v4028 = vshrl.u32 %v4027, 7
    %v4029 = vsub.s32 %v4026, %v4028
    %v4030 = vrot.slane %v4002, %v4029
    %v4031 = vcombine.low %v4009, %v4023
    %v4032 = vcombine.low %v4016, %v4030
    %v4060 = vunpack.c.l.b16 %v3544
    %v4061 = vunpack.c.l.b16 %v3545
    %v4062 = vunpack.c.l.b16 %v3546
    %v4063 = vunpack.c.l.b16 %v3547
    %v4064 = vunpack.c.l.b16 %v3548
    %v4065 = vunpack.c.l.b16 %v3549
    %v4066 = vunpack.c.l.b16 %v3550
    %v4067 = vunpack.c.l.b16 %v3551
    %v4068 = vunpack.c.l.b16 %v3552
    %v4069 = vunpack.c.l.b16 %v3553
    %v4070 = vunpack.c.l.b16 %v3554
    %v4071 = vunpack.c.l.b16 %v3555
    %v4072 = vunpack.c.l.b16 %v3556
    %v4073 = vunpack.c.l.b16 %v3557
    %v4074 = vunpack.c.l.b16 %v3558
    %v4075 = vunpack.c.l.b16 %v3559
    %v4076 = vunpack.c.l.b16 %v3560
    %v4077 = vunpack.c.l.b16 %v3561
    %v4078 = vunpack.c.l.b16 %v3562
    %v4079 = vunpack.c.l.b16 %v3563
    %v4080 = vpack.c.b16 %v4061, %v4060
    %v4081 = vpack.c.b16 %v4063, %v4062
    %v4082 = vpack.c.b16 %v4065, %v4064
    %v4083 = vpack.c.b16 %v4067, %v4066
    %v4084 = vpack.c.b16 %v4069, %v4068
    %v4085 = vpack.c.b16 %v4071, %v4070
    %v4086 = vpack.c.b16 %v4073, %v4072
    %v4087 = vpack.c.b16 %v4075, %v4074
    %v4088 = vpack.c.b16 %v4077, %v4076
    %v4089 = vpack.c.b16 %v4079, %v4078
    %vm4100 = vcmask 261120
    %v4102 = vsel %vm4100, %v3636, 0
    %v4105 = vsel %vm4100, %v3702, 0
    %v4108 = vsel %vm4100, %v3768, 0
    %v4111 = vsel %vm4100, %v3834, 0
    %v4114 = vsel %vm4100, %v3900, 0
    %v4117 = vsel %vm4100, %v3966, 0
    %v4120 = vsel %vm4100, %v4032, 0
    %4122 = vmatprep.subr.bf16.mxu0 0
    %4123 = vmatpush1.bf16.msra.mxu0 %v4087
    %4124 = vmatprep.subr.bf16.mxu0 0
    %4125 = vmatpush1.bf16.msra.mxu0 %v4086
    %4126 = vmatprep.subr.bf16.mxu0 0
    %4127 = vmatpush1.bf16.msra.mxu0 %v4085
    %4128 = vmatprep.subr.bf16.mxu0 0
    %4129 = vmatpush1.bf16.msra.mxu0 %v4084
    %4130 = vmatprep.subr.bf16.mxu0 0
    %4131 = vmatpush1.bf16.msra.mxu0 %v4083
    %4132 = vmatprep.subr.bf16.mxu0 0
    %4133 = vmatpush1.bf16.msra.mxu0 %v4082
    %4134 = vmatprep.subr.bf16.mxu0 0
    %4135 = vmatpush1.bf16.msra.mxu0 %v4081
    %4136 = vmatprep.subr.bf16.mxu0 0
    %4137 = vmatpush1.bf16.msra.mxu0 %v4080
    %4138 = vmatprep.subr.bf16.mxu0 0
    %4139 = vmatpush2.bf16.msra.mxu0 0
    %4140 = vmatprep.subr.bf16.mxu0 0
    %4141 = vmatpush2.bf16.msra.mxu0 0
    %4142 = vmatprep.subr.bf16.mxu0 0
    %4143 = vmatpush2.bf16.msra.mxu0 0
    %4144 = vmatprep.subr.bf16.mxu0 0
    %4145 = vmatpush2.bf16.msra.mxu0 0
    %4146 = vmatprep.subr.bf16.mxu0 0
    %4147 = vmatpush2.bf16.msra.mxu0 0
    %4148 = vmatprep.subr.bf16.mxu0 0
    %4149 = vmatpush2.bf16.msra.mxu0 0
    %4150 = vmatprep.subr.bf16.mxu0 0
    %4151 = vmatpush2.bf16.msra.mxu0 %v4089
    %4152 = vmatprep.subr.bf16.mxu0 0
    %4153 = vmatpush2.bf16.msra.mxu0 %v4088
    %4154 = vmatprep.mubr.bf16.mxu0 %v4102
    %4155 = vmatmul.mubr.bf16.gmra.mxu0 %v3635
    %v4156 = vpop.f32.mrf.mxu0
    %v4157 = vadd.f32 %v3569, %v4156
    %v4158 = vpop.f32.mrf.mxu0
    %v4159 = vpop.f32.mrf.mxu0
    %v4160 = vadd.f32 %v3569, %v4159
    %v4161 = vpop.f32.mrf.mxu0
    %4162 = vmatprep.mubr.bf16.mxu0 %v4105
    %4163 = vmatmul.mubr.bf16.gmra.mxu0 %v3701
    %v4164 = vpop.f32.mrf.mxu0
    %v4165 = vadd.f32 %v3569, %v4164
    %v4166 = vpop.f32.mrf.mxu0
    %v4167 = vpop.f32.mrf.mxu0
    %v4168 = vadd.f32 %v3569, %v4167
    %v4169 = vpop.f32.mrf.mxu0
    %4170 = vmatprep.mubr.bf16.mxu0 %v4108
    %4171 = vmatmul.mubr.bf16.gmra.mxu0 %v3767
    %v4172 = vpop.f32.mrf.mxu0
    %v4173 = vadd.f32 %v3569, %v4172
    %v4174 = vpop.f32.mrf.mxu0
    %v4175 = vpop.f32.mrf.mxu0
    %v4176 = vadd.f32 %v3569, %v4175
    %v4177 = vpop.f32.mrf.mxu0
    %4178 = vmatprep.mubr.bf16.mxu0 %v4111
    %4179 = vmatmul.mubr.bf16.gmra.mxu0 %v3833
    %v4180 = vpop.f32.mrf.mxu0
    %v4181 = vadd.f32 %v3569, %v4180
    %v4182 = vpop.f32.mrf.mxu0
    %v4183 = vpop.f32.mrf.mxu0
    %v4184 = vadd.f32 %v3569, %v4183
    %v4185 = vpop.f32.mrf.mxu0
    %4186 = vmatprep.mubr.bf16.mxu0 %v4114
    %4187 = vmatmul.mubr.bf16.gmra.mxu0 %v3899
    %v4188 = vpop.f32.mrf.mxu0
    %v4189 = vadd.f32 %v3569, %v4188
    %v4190 = vpop.f32.mrf.mxu0
    %v4191 = vpop.f32.mrf.mxu0
    %v4192 = vadd.f32 %v3569, %v4191
    %v4193 = vpop.f32.mrf.mxu0
    %4194 = vmatprep.mubr.bf16.mxu0 %v4117
    %4195 = vmatmul.mubr.bf16.gmra.mxu0 %v3965
    %v4196 = vpop.f32.mrf.mxu0
    %v4197 = vadd.f32 %v3569, %v4196
    %v4198 = vpop.f32.mrf.mxu0
    %v4199 = vpop.f32.mrf.mxu0
    %v4200 = vadd.f32 %v3569, %v4199
    %v4201 = vpop.f32.mrf.mxu0
    %4202 = vmatprep.mubr.bf16.mxu0 %v4120
    %4203 = vmatmul.mubr.bf16.gmra.mxu0 %v4031
    %v4204 = vpop.f32.mrf.mxu0
    %v4205 = vadd.f32 %v3569, %v4204
    %v4206 = vpop.f32.mrf.mxu0
    %v4207 = vpop.f32.mrf.mxu0
    %v4208 = vadd.f32 %v3569, %v4207
    %v4209 = vpop.f32.mrf.mxu0
    %4210 = vdwg.mxu0
    %v4211 = vmax.f32 %v4157, 0.0
    %v4212 = vmax.f32 %v4160, 0.0
    %v4213 = vmax.f32 %v4165, 0.0
    %v4214 = vmax.f32 %v4168, 0.0
    %v4215 = vmax.f32 %v4173, 0.0
    %v4216 = vmax.f32 %v4176, 0.0
    %v4217 = vmax.f32 %v4181, 0.0
    %v4218 = vmax.f32 %v4184, 0.0
    %v4219 = vmax.f32 %v4189, 0.0
    %v4220 = vmax.f32 %v4192, 0.0
    %v4221 = vmax.f32 %v4197, 0.0
    %v4222 = vmax.f32 %v4200, 0.0
    %v4223 = vmax.f32 %v4205, 0.0
    %v4224 = vmax.f32 %v4208, 0.0
    %v4239 = vcombine.high %v4211, %v4211
    %v4241 = vunpack.c.l.s4 1983009808
    %v4242 = vunpack.c.0.s8 %v4241
    %v4243 = vlaneseq
    %v4244 = vshrl.u32 %v4243, 7
    %v4245 = vsub.s32 %v4242, %v4244
    %v4246 = vrot.slane %v4211, %v4245
    %v4248 = vunpack.c.l.s4 1983009808
    %v4249 = vunpack.c.0.s8 %v4248
    %v4250 = vlaneseq
    %v4251 = vshrl.u32 %v4250, 7
    %v4252 = vsub.s32 %v4249, %v4251
    %v4253 = vrot.slane %v4239, %v4252
    %v4254 = vcombine.high %v4246, %v4246
    %v4255 = vcombine.high %v4253, %v4253
    %v4256 = vcombine.high %v4212, %v4212
    %v4258 = vunpack.c.l.s4 1983009808
    %v4259 = vunpack.c.0.s8 %v4258
    %v4260 = vlaneseq
    %v4261 = vshrl.u32 %v4260, 7
    %v4262 = vsub.s32 %v4259, %v4261
    %v4263 = vrot.slane %v4212, %v4262
    %v4265 = vunpack.c.l.s4 1983009808
    %v4266 = vunpack.c.0.s8 %v4265
    %v4267 = vlaneseq
    %v4268 = vshrl.u32 %v4267, 7
    %v4269 = vsub.s32 %v4266, %v4268
    %v4270 = vrot.slane %v4256, %v4269
    %v4271 = vcombine.high %v4263, %v4263
    %v4272 = vcombine.high %v4270, %v4270
    %v4273 = vcombine.high %v4213, %v4213
    %v4275 = vunpack.c.l.s4 1983009808
    %v4276 = vunpack.c.0.s8 %v4275
    %v4277 = vlaneseq
    %v4278 = vshrl.u32 %v4277, 7
    %v4279 = vsub.s32 %v4276, %v4278
    %v4280 = vrot.slane %v4213, %v4279
    %v4282 = vunpack.c.l.s4 1983009808
    %v4283 = vunpack.c.0.s8 %v4282
    %v4284 = vlaneseq
    %v4285 = vshrl.u32 %v4284, 7
    %v4286 = vsub.s32 %v4283, %v4285
    %v4287 = vrot.slane %v4273, %v4286
    %v4288 = vcombine.high %v4280, %v4280
    %v4289 = vcombine.high %v4287, %v4287
    %v4290 = vcombine.high %v4214, %v4214
    %v4292 = vunpack.c.l.s4 1983009808
    %v4293 = vunpack.c.0.s8 %v4292
    %v4294 = vlaneseq
    %v4295 = vshrl.u32 %v4294, 7
    %v4296 = vsub.s32 %v4293, %v4295
    %v4297 = vrot.slane %v4214, %v4296
    %v4299 = vunpack.c.l.s4 1983009808
    %v4300 = vunpack.c.0.s8 %v4299
    %v4301 = vlaneseq
    %v4302 = vshrl.u32 %v4301, 7
    %v4303 = vsub.s32 %v4300, %v4302
    %v4304 = vrot.slane %v4290, %v4303
    %v4305 = vcombine.high %v4297, %v4297
    %v4306 = vcombine.high %v4304, %v4304
    %v4307 = vcombine.high %v4215, %v4215
    %v4309 = vunpack.c.l.s4 1983009808
    %v4310 = vunpack.c.0.s8 %v4309
    %v4311 = vlaneseq
    %v4312 = vshrl.u32 %v4311, 7
    %v4313 = vsub.s32 %v4310, %v4312
    %v4314 = vrot.slane %v4215, %v4313
    %v4316 = vunpack.c.l.s4 1983009808
    %v4317 = vunpack.c.0.s8 %v4316
    %v4318 = vlaneseq
    %v4319 = vshrl.u32 %v4318, 7
    %v4320 = vsub.s32 %v4317, %v4319
    %v4321 = vrot.slane %v4307, %v4320
    %v4322 = vcombine.high %v4314, %v4314
    %v4323 = vcombine.high %v4321, %v4321
    %v4324 = vcombine.high %v4216, %v4216
    %v4326 = vunpack.c.l.s4 1983009808
    %v4327 = vunpack.c.0.s8 %v4326
    %v4328 = vlaneseq
    %v4329 = vshrl.u32 %v4328, 7
    %v4330 = vsub.s32 %v4327, %v4329
    %v4331 = vrot.slane %v4216, %v4330
    %v4333 = vunpack.c.l.s4 1983009808
    %v4334 = vunpack.c.0.s8 %v4333
    %v4335 = vlaneseq
    %v4336 = vshrl.u32 %v4335, 7
    %v4337 = vsub.s32 %v4334, %v4336
    %v4338 = vrot.slane %v4324, %v4337
    %v4339 = vcombine.high %v4331, %v4331
    %v4340 = vcombine.high %v4338, %v4338
    %v4341 = vcombine.high %v4217, %v4217
    %v4343 = vunpack.c.l.s4 1983009808
    %v4344 = vunpack.c.0.s8 %v4343
    %v4345 = vlaneseq
    %v4346 = vshrl.u32 %v4345, 7
    %v4347 = vsub.s32 %v4344, %v4346
    %v4348 = vrot.slane %v4217, %v4347
    %v4350 = vunpack.c.l.s4 1983009808
    %v4351 = vunpack.c.0.s8 %v4350
    %v4352 = vlaneseq
    %v4353 = vshrl.u32 %v4352, 7
    %v4354 = vsub.s32 %v4351, %v4353
    %v4355 = vrot.slane %v4341, %v4354
    %v4356 = vcombine.high %v4348, %v4348
    %v4357 = vcombine.high %v4355, %v4355
    %v4358 = vcombine.high %v4218, %v4218
    %v4360 = vunpack.c.l.s4 1983009808
    %v4361 = vunpack.c.0.s8 %v4360
    %v4362 = vlaneseq
    %v4363 = vshrl.u32 %v4362, 7
    %v4364 = vsub.s32 %v4361, %v4363
    %v4365 = vrot.slane %v4218, %v4364
    %v4367 = vunpack.c.l.s4 1983009808
    %v4368 = vunpack.c.0.s8 %v4367
    %v4369 = vlaneseq
    %v4370 = vshrl.u32 %v4369, 7
    %v4371 = vsub.s32 %v4368, %v4370
    %v4372 = vrot.slane %v4358, %v4371
    %v4373 = vcombine.high %v4365, %v4365
    %v4374 = vcombine.high %v4372, %v4372
    %v4375 = vcombine.high %v4219, %v4219
    %v4377 = vunpack.c.l.s4 1983009808
    %v4378 = vunpack.c.0.s8 %v4377
    %v4379 = vlaneseq
    %v4380 = vshrl.u32 %v4379, 7
    %v4381 = vsub.s32 %v4378, %v4380
    %v4382 = vrot.slane %v4219, %v4381
    %v4384 = vunpack.c.l.s4 1983009808
    %v4385 = vunpack.c.0.s8 %v4384
    %v4386 = vlaneseq
    %v4387 = vshrl.u32 %v4386, 7
    %v4388 = vsub.s32 %v4385, %v4387
    %v4389 = vrot.slane %v4375, %v4388
    %v4390 = vcombine.high %v4382, %v4382
    %v4391 = vcombine.high %v4389, %v4389
    %v4392 = vcombine.high %v4220, %v4220
    %v4394 = vunpack.c.l.s4 1983009808
    %v4395 = vunpack.c.0.s8 %v4394
    %v4396 = vlaneseq
    %v4397 = vshrl.u32 %v4396, 7
    %v4398 = vsub.s32 %v4395, %v4397
    %v4399 = vrot.slane %v4220, %v4398
    %v4401 = vunpack.c.l.s4 1983009808
    %v4402 = vunpack.c.0.s8 %v4401
    %v4403 = vlaneseq
    %v4404 = vshrl.u32 %v4403, 7
    %v4405 = vsub.s32 %v4402, %v4404
    %v4406 = vrot.slane %v4392, %v4405
    %v4407 = vcombine.high %v4399, %v4399
    %v4408 = vcombine.high %v4406, %v4406
    %v4409 = vcombine.high %v4221, %v4221
    %v4411 = vunpack.c.l.s4 1983009808
    %v4412 = vunpack.c.0.s8 %v4411
    %v4413 = vlaneseq
    %v4414 = vshrl.u32 %v4413, 7
    %v4415 = vsub.s32 %v4412, %v4414
    %v4416 = vrot.slane %v4221, %v4415
    %v4418 = vunpack.c.l.s4 1983009808
    %v4419 = vunpack.c.0.s8 %v4418
    %v4420 = vlaneseq
    %v4421 = vshrl.u32 %v4420, 7
    %v4422 = vsub.s32 %v4419, %v4421
    %v4423 = vrot.slane %v4409, %v4422
    %v4424 = vcombine.high %v4416, %v4416
    %v4425 = vcombine.high %v4423, %v4423
    %v4426 = vcombine.high %v4222, %v4222
    %v4428 = vunpack.c.l.s4 1983009808
    %v4429 = vunpack.c.0.s8 %v4428
    %v4430 = vlaneseq
    %v4431 = vshrl.u32 %v4430, 7
    %v4432 = vsub.s32 %v4429, %v4431
    %v4433 = vrot.slane %v4222, %v4432
    %v4435 = vunpack.c.l.s4 1983009808
    %v4436 = vunpack.c.0.s8 %v4435
    %v4437 = vlaneseq
    %v4438 = vshrl.u32 %v4437, 7
    %v4439 = vsub.s32 %v4436, %v4438
    %v4440 = vrot.slane %v4426, %v4439
    %v4441 = vcombine.high %v4433, %v4433
    %v4442 = vcombine.high %v4440, %v4440
    %v4443 = vcombine.high %v4223, %v4223
    %v4445 = vunpack.c.l.s4 1983009808
    %v4446 = vunpack.c.0.s8 %v4445
    %v4447 = vlaneseq
    %v4448 = vshrl.u32 %v4447, 7
    %v4449 = vsub.s32 %v4446, %v4448
    %v4450 = vrot.slane %v4223, %v4449
    %v4452 = vunpack.c.l.s4 1983009808
    %v4453 = vunpack.c.0.s8 %v4452
    %v4454 = vlaneseq
    %v4455 = vshrl.u32 %v4454, 7
    %v4456 = vsub.s32 %v4453, %v4455
    %v4457 = vrot.slane %v4443, %v4456
    %v4458 = vcombine.high %v4450, %v4450
    %v4459 = vcombine.high %v4457, %v4457
    %v4460 = vcombine.high %v4224, %v4224
    %v4462 = vunpack.c.l.s4 1983009808
    %v4463 = vunpack.c.0.s8 %v4462
    %v4464 = vlaneseq
    %v4465 = vshrl.u32 %v4464, 7
    %v4466 = vsub.s32 %v4463, %v4465
    %v4467 = vrot.slane %v4224, %v4466
    %v4469 = vunpack.c.l.s4 1983009808
    %v4470 = vunpack.c.0.s8 %v4469
    %v4471 = vlaneseq
    %v4472 = vshrl.u32 %v4471, 7
    %v4473 = vsub.s32 %v4470, %v4472
    %v4474 = vrot.slane %v4460, %v4473
    %v4475 = vcombine.high %v4467, %v4467
    %v4476 = vcombine.high %v4474, %v4474
    %v4477 = vcombine.low %v4246, %v4254
    %v4478 = vcombine.low %v4253, %v4255
    %v4480 = vunpack.c.l.s4 1983009808
    %v4481 = vunpack.c.0.s8 %v4480
    %v4482 = vlaneseq
    %v4483 = vshrl.u32 %v4482, 7
    %v4484 = vsub.s32 %v4481, %v4483
    %v4485 = vrot.slane %v4477, %v4484
    %v4487 = vunpack.c.l.s4 1983009808
    %v4488 = vunpack.c.0.s8 %v4487
    %v4489 = vlaneseq
    %v4490 = vshrl.u32 %v4489, 7
    %v4491 = vsub.s32 %v4488, %v4490
    %v4492 = vrot.slane %v4478, %v4491
    %v4493 = vcombine.low %v4485, %v4492
    %v4494 = vcombine.low %v4263, %v4271
    %v4496 = vunpack.c.l.s4 1983009808
    %v4497 = vunpack.c.0.s8 %v4496
    %v4498 = vlaneseq
    %v4499 = vshrl.u32 %v4498, 7
    %v4500 = vsub.s32 %v4497, %v4499
    %v4501 = vrot.slane %v4494, %v4500
    %v4503 = vunpack.c.l.s4 1983009808
    %v4504 = vunpack.c.0.s8 %v4503
    %v4505 = vlaneseq
    %v4506 = vshrl.u32 %v4505, 7
    %v4507 = vsub.s32 %v4504, %v4506
    %v4508 = vrot.slane %v4270, %v4507
    %v4509 = vcombine.low %v4501, %v4508
    %v4510 = vcombine.low %v4272, %v4280
    %v4511 = vcombine.low %v4288, %v4287
    %v4513 = vunpack.c.l.s4 1983009808
    %v4514 = vunpack.c.0.s8 %v4513
    %v4515 = vlaneseq
    %v4516 = vshrl.u32 %v4515, 7
    %v4517 = vsub.s32 %v4514, %v4516
    %v4518 = vrot.slane %v4510, %v4517
    %v4520 = vunpack.c.l.s4 1983009808
    %v4521 = vunpack.c.0.s8 %v4520
    %v4522 = vlaneseq
    %v4523 = vshrl.u32 %v4522, 7
    %v4524 = vsub.s32 %v4521, %v4523
    %v4525 = vrot.slane %v4511, %v4524
    %v4526 = vcombine.low %v4518, %v4525
    %v4527 = vcombine.low %v4289, %v4297
    %v4529 = vunpack.c.l.s4 1983009808
    %v4530 = vunpack.c.0.s8 %v4529
    %v4531 = vlaneseq
    %v4532 = vshrl.u32 %v4531, 7
    %v4533 = vsub.s32 %v4530, %v4532
    %v4534 = vrot.slane %v4527, %v4533
    %v4536 = vunpack.c.l.s4 1983009808
    %v4537 = vunpack.c.0.s8 %v4536
    %v4538 = vlaneseq
    %v4539 = vshrl.u32 %v4538, 7
    %v4540 = vsub.s32 %v4537, %v4539
    %v4541 = vrot.slane %v4305, %v4540
    %v4542 = vcombine.low %v4534, %v4541
    %v4543 = vcombine.low %v4304, %v4306
    %v4544 = vcombine.low %v4314, %v4322
    %v4546 = vunpack.c.l.s4 1983009808
    %v4547 = vunpack.c.0.s8 %v4546
    %v4548 = vlaneseq
    %v4549 = vshrl.u32 %v4548, 7
    %v4550 = vsub.s32 %v4547, %v4549
    %v4551 = vrot.slane %v4543, %v4550
    %v4553 = vunpack.c.l.s4 1983009808
    %v4554 = vunpack.c.0.s8 %v4553
    %v4555 = vlaneseq
    %v4556 = vshrl.u32 %v4555, 7
    %v4557 = vsub.s32 %v4554, %v4556
    %v4558 = vrot.slane %v4544, %v4557
    %v4559 = vcombine.low %v4551, %v4558
    %v4560 = vcombine.low %v4321, %v4323
    %v4562 = vunpack.c.l.s4 1983009808
    %v4563 = vunpack.c.0.s8 %v4562
    %v4564 = vlaneseq
    %v4565 = vshrl.u32 %v4564, 7
    %v4566 = vsub.s32 %v4563, %v4565
    %v4567 = vrot.slane %v4560, %v4566
    %v4569 = vunpack.c.l.s4 1983009808
    %v4570 = vunpack.c.0.s8 %v4569
    %v4571 = vlaneseq
    %v4572 = vshrl.u32 %v4571, 7
    %v4573 = vsub.s32 %v4570, %v4572
    %v4574 = vrot.slane %v4331, %v4573
    %v4575 = vcombine.low %v4567, %v4574
    %v4576 = vcombine.low %v4339, %v4338
    %v4577 = vcombine.low %v4340, %v4348
    %v4579 = vunpack.c.l.s4 1983009808
    %v4580 = vunpack.c.0.s8 %v4579
    %v4581 = vlaneseq
    %v4582 = vshrl.u32 %v4581, 7
    %v4583 = vsub.s32 %v4580, %v4582
    %v4584 = vrot.slane %v4576, %v4583
    %v4586 = vunpack.c.l.s4 1983009808
    %v4587 = vunpack.c.0.s8 %v4586
    %v4588 = vlaneseq
    %v4589 = vshrl.u32 %v4588, 7
    %v4590 = vsub.s32 %v4587, %v4589
    %v4591 = vrot.slane %v4577, %v4590
    %v4592 = vcombine.low %v4584, %v4591
    %v4593 = vcombine.low %v4356, %v4355
    %v4595 = vunpack.c.l.s4 1983009808
    %v4596 = vunpack.c.0.s8 %v4595
    %v4597 = vlaneseq
    %v4598 = vshrl.u32 %v4597, 7
    %v4599 = vsub.s32 %v4596, %v4598
    %v4600 = vrot.slane %v4593, %v4599
    %v4602 = vunpack.c.l.s4 1983009808
    %v4603 = vunpack.c.0.s8 %v4602
    %v4604 = vlaneseq
    %v4605 = vshrl.u32 %v4604, 7
    %v4606 = vsub.s32 %v4603, %v4605
    %v4607 = vrot.slane %v4357, %v4606
    %v4608 = vcombine.low %v4600, %v4607
    %v4609 = vcombine.low %v4365, %v4373
    %v4610 = vcombine.low %v4372, %v4374
    %v4612 = vunpack.c.l.s4 1983009808
    %v4613 = vunpack.c.0.s8 %v4612
    %v4614 = vlaneseq
    %v4615 = vshrl.u32 %v4614, 7
    %v4616 = vsub.s32 %v4613, %v4615
    %v4617 = vrot.slane %v4609, %v4616
    %v4619 = vunpack.c.l.s4 1983009808
    %v4620 = vunpack.c.0.s8 %v4619
    %v4621 = vlaneseq
    %v4622 = vshrl.u32 %v4621, 7
    %v4623 = vsub.s32 %v4620, %v4622
    %v4624 = vrot.slane %v4610, %v4623
    %v4625 = vcombine.low %v4617, %v4624
    %v4626 = vcombine.low %v4382, %v4390
    %v4628 = vunpack.c.l.s4 1983009808
    %v4629 = vunpack.c.0.s8 %v4628
    %v4630 = vlaneseq
    %v4631 = vshrl.u32 %v4630, 7
    %v4632 = vsub.s32 %v4629, %v4631
    %v4633 = vrot.slane %v4626, %v4632
    %v4635 = vunpack.c.l.s4 1983009808
    %v4636 = vunpack.c.0.s8 %v4635
    %v4637 = vlaneseq
    %v4638 = vshrl.u32 %v4637, 7
    %v4639 = vsub.s32 %v4636, %v4638
    %v4640 = vrot.slane %v4389, %v4639
    %v4641 = vcombine.low %v4633, %v4640
    %v4642 = vcombine.low %v4391, %v4399
    %v4643 = vcombine.low %v4407, %v4406
    %v4645 = vunpack.c.l.s4 1983009808
    %v4646 = vunpack.c.0.s8 %v4645
    %v4647 = vlaneseq
    %v4648 = vshrl.u32 %v4647, 7
    %v4649 = vsub.s32 %v4646, %v4648
    %v4650 = vrot.slane %v4642, %v4649
    %v4652 = vunpack.c.l.s4 1983009808
    %v4653 = vunpack.c.0.s8 %v4652
    %v4654 = vlaneseq
    %v4655 = vshrl.u32 %v4654, 7
    %v4656 = vsub.s32 %v4653, %v4655
    %v4657 = vrot.slane %v4643, %v4656
    %v4658 = vcombine.low %v4650, %v4657
    %v4659 = vcombine.low %v4408, %v4416
    %v4661 = vunpack.c.l.s4 1983009808
    %v4662 = vunpack.c.0.s8 %v4661
    %v4663 = vlaneseq
    %v4664 = vshrl.u32 %v4663, 7
    %v4665 = vsub.s32 %v4662, %v4664
    %v4666 = vrot.slane %v4659, %v4665
    %v4668 = vunpack.c.l.s4 1983009808
    %v4669 = vunpack.c.0.s8 %v4668
    %v4670 = vlaneseq
    %v4671 = vshrl.u32 %v4670, 7
    %v4672 = vsub.s32 %v4669, %v4671
    %v4673 = vrot.slane %v4424, %v4672
    %v4674 = vcombine.low %v4666, %v4673
    %v4675 = vcombine.low %v4423, %v4425
    %v4676 = vcombine.low %v4433, %v4441
    %v4678 = vunpack.c.l.s4 1983009808
    %v4679 = vunpack.c.0.s8 %v4678
    %v4680 = vlaneseq
    %v4681 = vshrl.u32 %v4680, 7
    %v4682 = vsub.s32 %v4679, %v4681
    %v4683 = vrot.slane %v4675, %v4682
    %v4685 = vunpack.c.l.s4 1983009808
    %v4686 = vunpack.c.0.s8 %v4685
    %v4687 = vlaneseq
    %v4688 = vshrl.u32 %v4687, 7
    %v4689 = vsub.s32 %v4686, %v4688
    %v4690 = vrot.slane %v4676, %v4689
    %v4691 = vcombine.low %v4683, %v4690
    %v4692 = vcombine.low %v4440, %v4442
    %v4694 = vunpack.c.l.s4 1983009808
    %v4695 = vunpack.c.0.s8 %v4694
    %v4696 = vlaneseq
    %v4697 = vshrl.u32 %v4696, 7
    %v4698 = vsub.s32 %v4695, %v4697
    %v4699 = vrot.slane %v4692, %v4698
    %v4701 = vunpack.c.l.s4 1983009808
    %v4702 = vunpack.c.0.s8 %v4701
    %v4703 = vlaneseq
    %v4704 = vshrl.u32 %v4703, 7
    %v4705 = vsub.s32 %v4702, %v4704
    %v4706 = vrot.slane %v4450, %v4705
    %v4707 = vcombine.low %v4699, %v4706
    %v4708 = vcombine.low %v4458, %v4457
    %v4709 = vcombine.low %v4459, %v4467
    %v4711 = vunpack.c.l.s4 1983009808
    %v4712 = vunpack.c.0.s8 %v4711
    %v4713 = vlaneseq
    %v4714 = vshrl.u32 %v4713, 7
    %v4715 = vsub.s32 %v4712, %v4714
    %v4716 = vrot.slane %v4708, %v4715
    %v4718 = vunpack.c.l.s4 1983009808
    %v4719 = vunpack.c.0.s8 %v4718
    %v4720 = vlaneseq
    %v4721 = vshrl.u32 %v4720, 7
    %v4722 = vsub.s32 %v4719, %v4721
    %v4723 = vrot.slane %v4709, %v4722
    %v4724 = vcombine.low %v4716, %v4723
    %v4725 = vcombine.low %v4475, %v4474
    %v4727 = vunpack.c.l.s4 1983009808
    %v4728 = vunpack.c.0.s8 %v4727
    %v4729 = vlaneseq
    %v4730 = vshrl.u32 %v4729, 7
    %v4731 = vsub.s32 %v4728, %v4730
    %v4732 = vrot.slane %v4725, %v4731
    %v4734 = vunpack.c.l.s4 1983009808
    %v4735 = vunpack.c.0.s8 %v4734
    %v4736 = vlaneseq
    %v4737 = vshrl.u32 %v4736, 7
    %v4738 = vsub.s32 %v4735, %v4737
    %v4739 = vrot.slane %v4476, %v4738
    %v4740 = vcombine.low %v4732, %v4739
    %vm4757 = vcmask 1045504
    %v4758 = vsel %vm4757, %v4509, -inf
    %v4759 = vmax.f32 %v4493, %v4758
    %v4760 = vrot.slane %v4759, 4
    %v4761 = vmax.f32 %v4759, %v4760
    %v4762 = vrot.slane %v4761, 2
    %v4763 = vmax.f32 %v4761, %v4762
    %v4764 = vrot.slane %v4763, 1
    %v4765 = vmax.f32 %v4763, %v4764
    %v4766 = vsel %vm4757, %v4542, -inf
    %v4767 = vmax.f32 %v4526, %v4766
    %v4768 = vrot.slane %v4767, 4
    %v4769 = vmax.f32 %v4767, %v4768
    %v4770 = vrot.slane %v4769, 2
    %v4771 = vmax.f32 %v4769, %v4770
    %v4772 = vrot.slane %v4771, 1
    %v4773 = vmax.f32 %v4771, %v4772
    %v4774 = vsel %vm4757, %v4575, -inf
    %v4775 = vmax.f32 %v4559, %v4774
    %v4776 = vrot.slane %v4775, 4
    %v4777 = vmax.f32 %v4775, %v4776
    %v4778 = vrot.slane %v4777, 2
    %v4779 = vmax.f32 %v4777, %v4778
    %v4780 = vrot.slane %v4779, 1
    %v4781 = vmax.f32 %v4779, %v4780
    %v4782 = vsel %vm4757, %v4608, -inf
    %v4783 = vmax.f32 %v4592, %v4782
    %v4784 = vrot.slane %v4783, 4
    %v4785 = vmax.f32 %v4783, %v4784
    %v4786 = vrot.slane %v4785, 2
    %v4787 = vmax.f32 %v4785, %v4786
    %v4788 = vrot.slane %v4787, 1
    %v4789 = vmax.f32 %v4787, %v4788
    %v4790 = vsel %vm4757, %v4641, -inf
    %v4791 = vmax.f32 %v4625, %v4790
    %v4792 = vrot.slane %v4791, 4
    %v4793 = vmax.f32 %v4791, %v4792
    %v4794 = vrot.slane %v4793, 2
    %v4795 = vmax.f32 %v4793, %v4794
    %v4796 = vrot.slane %v4795, 1
    %v4797 = vmax.f32 %v4795, %v4796
    %v4798 = vsel %vm4757, %v4674, -inf
    %v4799 = vmax.f32 %v4658, %v4798
    %v4800 = vrot.slane %v4799, 4
    %v4801 = vmax.f32 %v4799, %v4800
    %v4802 = vrot.slane %v4801, 2
    %v4803 = vmax.f32 %v4801, %v4802
    %v4804 = vrot.slane %v4803, 1
    %v4805 = vmax.f32 %v4803, %v4804
    %v4806 = vsel %vm4757, %v4707, -inf
    %v4807 = vmax.f32 %v4691, %v4806
    %v4808 = vrot.slane %v4807, 4
    %v4809 = vmax.f32 %v4807, %v4808
    %v4810 = vrot.slane %v4809, 2
    %v4811 = vmax.f32 %v4809, %v4810
    %v4812 = vrot.slane %v4811, 1
    %v4813 = vmax.f32 %v4811, %v4812
    %v4814 = vsel %vm4757, %v4740, -inf
    %v4815 = vmax.f32 %v4724, %v4814
    %v4816 = vrot.slane %v4815, 4
    %v4817 = vmax.f32 %v4815, %v4816
    %v4818 = vrot.slane %v4817, 2
    %v4819 = vmax.f32 %v4817, %v4818
    %v4820 = vrot.slane %v4819, 1
    %v4821 = vmax.f32 %v4819, %v4820
    %vm4830 = vcmask 1041409
    %v4831 = vsel %vm4830, %v333, %v326
    %vm4832 = vcmask 1042434
    %v4833 = vsel %vm4832, %v340, %v4831
    %vm4834 = vcmask 1043459
    %v4835 = vsel %vm4834, %v347, %v4833
    %vm4836 = vcmask 1044484
    %v4837 = vsel %vm4836, %v354, %v4835
    %vm4838 = vcmask 1045509
    %v4839 = vsel %vm4838, %v361, %v4837
    %vm4840 = vcmask 1046534
    %v4841 = vsel %vm4840, %v368, %v4839
    %vm4842 = vcmask 1047559
    %v4843 = vsel %vm4842, %v375, %v4841
    %v4853 = vsel %vm4830, %v3087, %v3079
    %v4854 = vsel %vm4832, %v3095, %v4853
    %v4855 = vsel %vm4834, %v3103, %v4854
    %v4856 = vsel %vm4836, %v3111, %v4855
    %v4857 = vsel %vm4838, %v3119, %v4856
    %v4858 = vsel %vm4840, %v3127, %v4857
    %v4859 = vsel %vm4842, %v3135, %v4858
    %v4869 = vsel %vm4830, %v4773, %v4765
    %v4870 = vsel %vm4832, %v4781, %v4869
    %v4871 = vsel %vm4834, %v4789, %v4870
    %v4872 = vsel %vm4836, %v4797, %v4871
    %v4873 = vsel %vm4838, %v4805, %v4872
    %v4874 = vsel %vm4840, %v4813, %v4873
    %v4875 = vsel %vm4842, %v4821, %v4874
    %v4877 = vld [vmem:[%s9] sm:$0xff]
    %v4878 = vld [vmem:[%s9 + $0x8] sm:$0xff]
    %v4879 = vld [vmem:[%s9 + $0x10] sm:$0xff]
    %v4880 = vmul.f32 %v4843, %v4877
    %v4881 = vmul.f32 %v4859, %v4878
    %v4882 = vmul.f32 %v4875, %v4879
    %v4883 = vpack.c.bf16 %v4880, %v4880
    %v4884 = vpack.c.bf16 %v4881, %v4881
    %v4885 = vpack.c.bf16 %v4882, %v4882
    %v4886 = vld [vmem:[%s10] sm:$0xf]
    %v4887 = vld [vmem:[%s10 + $0x4] sm:$0xf]
    %v4888 = vld [vmem:[%s10 + $0x8] sm:$0xf]
    %v4889 = vld [vmem:[%s10 + $0xc] sm:$0xf]
    %v4890 = vld [vmem:[%s10 + $0x10] sm:$0xf]
    %v4891 = vld [vmem:[%s10 + $0x14] sm:$0xf]
    %v4892 = vld [vmem:[%s10 + $0x18] sm:$0xf]
    %v4893 = vld [vmem:[%s10 + $0x1c] sm:$0xf]
    %v4894 = vld [vmem:[%s10 + $0x20] sm:$0xf]
    %v4895 = vld [vmem:[%s10 + $0x24] sm:$0xf]
    %v4896 = vld [vmem:[%s10 + $0x28] sm:$0xf]
    %v4897 = vld [vmem:[%s10 + $0x2c] sm:$0xf]
    %v4898 = vld [vmem:[%s10 + $0x30] sm:$0xf]
    %v4899 = vld [vmem:[%s10 + $0x34] sm:$0xf]
    %v4900 = vld [vmem:[%s10 + $0x38] sm:$0xf]
    %v4901 = vld [vmem:[%s10 + $0x3c] sm:$0xf]
    %v4902 = vld [vmem:[%s10 + $0x40] sm:$0xf]
    %v4903 = vld [vmem:[%s10 + $0x44] sm:$0xf]
    %v4904 = vld [vmem:[%s10 + $0x48] sm:$0xf]
    %v4905 = vld [vmem:[%s10 + $0x4c] sm:$0xf]
    %v4906 = vld [vmem:[%s10 + $0x50] sm:$0xf]
    %v4907 = vld [vmem:[%s10 + $0x54] sm:$0xf]
    %v4908 = vld [vmem:[%s10 + $0x58] sm:$0xf]
    %v4909 = vld [vmem:[%s10 + $0x5c] sm:$0xf]
    %v4910 = vld [vmem:[%s10 + $0x60] sm:$0xf]
    %v4911 = vld [vmem:[%s10 + $0x64] sm:$0xf]
    %v4912 = vld [vmem:[%s10 + $0x68] sm:$0xf]
    %v4913 = vld [vmem:[%s10 + $0x6c] sm:$0xf]
    %v4914 = vld [vmem:[%s10 + $0x70] sm:$0xf]
    %v4915 = vld [vmem:[%s10 + $0x74] sm:$0xf]
    %v4916 = vld [vmem:[%s10 + $0x78] sm:$0xf]
    %v4917 = vld [vmem:[%s10 + $0x7c] sm:$0xf]
    %v4918 = vld [vmem:[%s10 + $0x80] sm:$0xf]
    %v4919 = vld [vmem:[%s10 + $0x84] sm:$0xf]
    %v4920 = vld [vmem:[%s10 + $0x88] sm:$0xf]
    %v4921 = vld [vmem:[%s10 + $0x8c] sm:$0xf]
    %v4922 = vld [vmem:[%s10 + $0x90] sm:$0xf]
    %v4923 = vld [vmem:[%s10 + $0x94] sm:$0xf]
    %v4924 = vld [vmem:[%s10 + $0x98] sm:$0xf]
    %v4925 = vld [vmem:[%s10 + $0x9c] sm:$0xf]
    %v4926 = vld [vmem:[%s10 + $0xa0] sm:$0xf]
    %v4927 = vld [vmem:[%s10 + $0xa4] sm:$0xf]
    %v4928 = vld [vmem:[%s10 + $0xa8] sm:$0xf]
    %v4929 = vld [vmem:[%s10 + $0xac] sm:$0xf]
    %v4930 = vld [vmem:[%s10 + $0xb0] sm:$0xf]
    %v4931 = vld [vmem:[%s10 + $0xb4] sm:$0xf]
    %v4932 = vld [vmem:[%s10 + $0xb8] sm:$0xf]
    %v4933 = vld [vmem:[%s10 + $0xbc] sm:$0xf]
    %v4934 = vld [vmem:[%s11] sm:$0x1]
    %v4936 = vlaneseq
    %v4937 = vshrl.u32 %v4936, 7
    %v4938 = vsub.s32 0, %v4937
    %v4939 = vrot.slane %v4934, %v4938
    %v4989 = vunpack.c.l.b16 %v4886
    %v4990 = vunpack.c.l.b16 %v4887
    %v4991 = vunpack.c.l.b16 %v4888
    %v4992 = vunpack.c.l.b16 %v4889
    %v4993 = vunpack.c.l.b16 %v4890
    %v4994 = vunpack.c.l.b16 %v4891
    %v4995 = vunpack.c.l.b16 %v4892
    %v4996 = vunpack.c.l.b16 %v4893
    %v4997 = vunpack.c.l.b16 %v4894
    %v4998 = vunpack.c.l.b16 %v4895
    %v4999 = vunpack.c.l.b16 %v4896
    %v5000 = vunpack.c.l.b16 %v4897
    %v5001 = vunpack.c.l.b16 %v4898
    %v5002 = vunpack.c.l.b16 %v4899
    %v5003 = vunpack.c.l.b16 %v4900
    %v5004 = vunpack.c.l.b16 %v4901
    %v5005 = vunpack.c.l.b16 %v4902
    %v5006 = vunpack.c.l.b16 %v4903
    %v5007 = vunpack.c.l.b16 %v4904
    %v5008 = vunpack.c.l.b16 %v4905
    %v5009 = vunpack.c.l.b16 %v4906
    %v5010 = vunpack.c.l.b16 %v4907
    %v5011 = vunpack.c.l.b16 %v4908
    %v5012 = vunpack.c.l.b16 %v4909
    %v5013 = vunpack.c.l.b16 %v4910
    %v5014 = vunpack.c.l.b16 %v4911
    %v5015 = vunpack.c.l.b16 %v4912
    %v5016 = vunpack.c.l.b16 %v4913
    %v5017 = vunpack.c.l.b16 %v4914
    %v5018 = vunpack.c.l.b16 %v4915
    %v5019 = vunpack.c.l.b16 %v4916
    %v5020 = vunpack.c.l.b16 %v4917
    %v5021 = vunpack.c.l.b16 %v4918
    %v5022 = vunpack.c.l.b16 %v4919
    %v5023 = vunpack.c.l.b16 %v4920
    %v5024 = vunpack.c.l.b16 %v4921
    %v5025 = vunpack.c.l.b16 %v4922
    %v5026 = vunpack.c.l.b16 %v4923
    %v5027 = vunpack.c.l.b16 %v4924
    %v5028 = vunpack.c.l.b16 %v4925
    %v5029 = vunpack.c.l.b16 %v4926
    %v5030 = vunpack.c.l.b16 %v4927
    %v5031 = vunpack.c.l.b16 %v4928
    %v5032 = vunpack.c.l.b16 %v4929
    %v5033 = vunpack.c.l.b16 %v4930
    %v5034 = vunpack.c.l.b16 %v4931
    %v5035 = vunpack.c.l.b16 %v4932
    %v5036 = vunpack.c.l.b16 %v4933
    %v5037 = vpack.c.b16 %v4990, %v4989
    %v5038 = vpack.c.b16 %v4992, %v4991
    %v5039 = vpack.c.b16 %v4994, %v4993
    %v5040 = vpack.c.b16 %v4996, %v4995
    %v5041 = vpack.c.b16 %v4998, %v4997
    %v5042 = vpack.c.b16 %v5000, %v4999
    %v5043 = vpack.c.b16 %v5002, %v5001
    %v5044 = vpack.c.b16 %v5004, %v5003
    %v5045 = vpack.c.b16 %v5006, %v5005
    %v5046 = vpack.c.b16 %v5008, %v5007
    %v5047 = vpack.c.b16 %v5010, %v5009
    %v5048 = vpack.c.b16 %v5012, %v5011
    %v5049 = vpack.c.b16 %v5014, %v5013
    %v5050 = vpack.c.b16 %v5016, %v5015
    %v5051 = vpack.c.b16 %v5018, %v5017
    %v5052 = vpack.c.b16 %v5020, %v5019
    %v5053 = vpack.c.b16 %v5022, %v5021
    %v5054 = vpack.c.b16 %v5024, %v5023
    %v5055 = vpack.c.b16 %v5026, %v5025
    %v5056 = vpack.c.b16 %v5028, %v5027
    %v5057 = vpack.c.b16 %v5030, %v5029
    %v5058 = vpack.c.b16 %v5032, %v5031
    %v5059 = vpack.c.b16 %v5034, %v5033
    %v5060 = vpack.c.b16 %v5036, %v5035
    %5085 = vmatprep.subr.bf16.mxu0 0
    %5086 = vmatpush1.bf16.msra.mxu0 %v5044
    %5087 = vmatprep.subr.bf16.mxu0 0
    %5088 = vmatpush1.bf16.msra.mxu0 %v5043
    %5089 = vmatprep.subr.bf16.mxu0 0
    %5090 = vmatpush1.bf16.msra.mxu0 %v5042
    %5091 = vmatprep.subr.bf16.mxu0 0
    %5092 = vmatpush1.bf16.msra.mxu0 %v5041
    %5093 = vmatprep.subr.bf16.mxu0 0
    %5094 = vmatpush1.bf16.msra.mxu0 %v5040
    %5095 = vmatprep.subr.bf16.mxu0 0
    %5096 = vmatpush1.bf16.msra.mxu0 %v5039
    %5097 = vmatprep.subr.bf16.mxu0 0
    %5098 = vmatpush1.bf16.msra.mxu0 %v5038
    %5099 = vmatprep.subr.bf16.mxu0 0
    %5100 = vmatpush1.bf16.msra.mxu0 %v5037
    %5101 = vmatprep.subr.bf16.mxu0 0
    %5102 = vmatpush2.bf16.msra.mxu0 %v5052
    %5103 = vmatprep.subr.bf16.mxu0 0
    %5104 = vmatpush2.bf16.msra.mxu0 %v5051
    %5105 = vmatprep.subr.bf16.mxu0 0
    %5106 = vmatpush2.bf16.msra.mxu0 %v5050
    %5107 = vmatprep.subr.bf16.mxu0 0
    %5108 = vmatpush2.bf16.msra.mxu0 %v5049
    %5109 = vmatprep.subr.bf16.mxu0 0
    %5110 = vmatpush2.bf16.msra.mxu0 %v5048
    %5111 = vmatprep.subr.bf16.mxu0 0
    %5112 = vmatpush2.bf16.msra.mxu0 %v5047
    %5113 = vmatprep.subr.bf16.mxu0 0
    %5114 = vmatpush2.bf16.msra.mxu0 %v5046
    %5115 = vmatprep.subr.bf16.mxu0 0
    %5116 = vmatpush2.bf16.msra.mxu0 %v5045
    %5117 = vmatprep.mubr.bf16.mxu0 %v4884
    %5118 = vmatmul.mubr.bf16.gmra.mxu0 %v4883
    %v5119 = vpop.f32.mrf.mxu0
    %v5120 = vadd.f32 %v4939, %v5119
    %v5121 = vpop.f32.mrf.mxu0
    %v5122 = vpop.f32.mrf.mxu0
    %v5123 = vpop.f32.mrf.mxu0
    %5124 = vdwg.mxu0
    %5125 = vmatprep.subr.bf16.mxu0 0
    %5126 = vmatpush1.bf16.msra.mxu0 %v5060
    %5127 = vmatprep.subr.bf16.mxu0 0
    %5128 = vmatpush1.bf16.msra.mxu0 %v5059
    %5129 = vmatprep.subr.bf16.mxu0 0
    %5130 = vmatpush1.bf16.msra.mxu0 %v5058
    %5131 = vmatprep.subr.bf16.mxu0 0
    %5132 = vmatpush1.bf16.msra.mxu0 %v5057
    %5133 = vmatprep.subr.bf16.mxu0 0
    %5134 = vmatpush1.bf16.msra.mxu0 %v5056
    %5135 = vmatprep.subr.bf16.mxu0 0
    %5136 = vmatpush1.bf16.msra.mxu0 %v5055
    %5137 = vmatprep.subr.bf16.mxu0 0
    %5138 = vmatpush1.bf16.msra.mxu0 %v5054
    %5139 = vmatprep.subr.bf16.mxu0 0
    %5140 = vmatpush1.bf16.msra.mxu0 %v5053
    %5141 = vmatprep.subr.bf16.mxu0 0
    %5142 = vmatpush2.bf16.msra.mxu0 0
    %5143 = vmatprep.subr.bf16.mxu0 0
    %5144 = vmatpush2.bf16.msra.mxu0 0
    %5145 = vmatprep.subr.bf16.mxu0 0
    %5146 = vmatpush2.bf16.msra.mxu0 0
    %5147 = vmatprep.subr.bf16.mxu0 0
    %5148 = vmatpush2.bf16.msra.mxu0 0
    %5149 = vmatprep.subr.bf16.mxu0 0
    %5150 = vmatpush2.bf16.msra.mxu0 0
    %5151 = vmatprep.subr.bf16.mxu0 0
    %5152 = vmatpush2.bf16.msra.mxu0 0
    %5153 = vmatprep.subr.bf16.mxu0 0
    %5154 = vmatpush2.bf16.msra.mxu0 0
    %5155 = vmatprep.subr.bf16.mxu0 0
    %5156 = vmatpush2.bf16.msra.mxu0 0
    %5157 = vmatprep.mubr.bf16.mxu0 0
    %5158 = vmatmul.mubr.bf16.gmra.mxu0 %v4885
    %v5159 = vpop.f32.mrf.mxu0
    %v5160 = vadd.f32 %v5120, %v5159
    %v5161 = vpop.f32.mrf.mxu0
    %v5162 = vpop.f32.mrf.mxu0
    %v5163 = vpop.f32.mrf.mxu0
    %5164 = vdwg.mxu0
    %5165 = vst [vmem:[#allocation7] sm:$0xff] %v5160
    // Predicated region
    $region58: #{tpu_custom_call.1} parent=1 // pred_check
      _
    $region59: #{tpu_custom_call.1} parent=1 // pred_check_branch
      %5167 = sbr.rel (0) target = $region61
    $region60: #{tpu_custom_call.1} parent=1 // pred_region
      %s5169 = ssub.s32 128, 128
      %5170 = vsyncadd [#allocation4], %s5169
      %s5172 = sshll.u32 [#allocation7], 4
      %s5173 = int_to_ptr.vmem [resolvable:$true] %s5172
      %5175 = dma.vmem_to_hbm [thread:$0]  %s5173, 128, %s12, [#allocation4]
    $region61: #{tpu_custom_call.1} parent=1 // pred_fallthru
      _
    // Predicated region
    $region62: #{tpu_custom_call.1} parent=1 // pred_check
      _
    $region63: #{tpu_custom_call.1} parent=1 // pred_check_branch
      %5177 = sbr.rel (0) target = $region65
    $region64: #{tpu_custom_call.1} parent=1 // pred_region
      %5178 = dma.done [#allocation4], 128
    $region65: #{tpu_custom_call.1} parent=1 // pred_fallthru
      _
    %5179 = vsyncpa [#allocation3], 1
    %5180 = vsyncpa [#allocation6], 1
    %5181 = vsyncpa [#allocation4], 1

</llo_original>
